<compile_context>
chip_gen: v6e
topology: v6e:2x2x1
jax: 0.10.0
libtpu: 0.0.40
codegen_flags: <defaults>
</compile_context>

<pallas_src>
import jax
import jax.numpy as jnp
from jax.experimental import pallas as pl
from jax.experimental.pallas import tpu as pltpu

EPS = 1e-5


# ------------------------------ Pallas kernel ---------------------------------

def _make_stage_kernel(cin, cout, oh, ow):
    """Fused conv(3x3,s2,p1) + BN(eval) + ReLU + maxpool(2,2) for one image."""

    def kernel(x_ref, wb_ref, shift_ref, re_ref, ro_ref, ce_ref, co_ref, o_ref):
        # x_ref:   (2, 2, oh+1, (ow+1)*cin)  parity-split padded input (bf16)
        # wb_ref:  (9, ow*cin, ow*cout)      block-diag conv weights, BN scale folded (bf16)
        # shift:   (1, ow*cout)              BN shift (+ conv bias), tiled over ow (f32)
        # re/ro:   (oh//2, oh)               0/1 row-pool selection (bf16)
        # ce/co:   (ow*cout, (ow//2)*cout)   0/1 col-pool selection (bf16)
        # o_ref:   (oh//2, (ow//2)*cout)     pooled output, lane-dense
        z = None
        for kh in range(3):                       # 9 taps, f32 accumulation
            for kw in range(3):
                par_h, r0 = kh % 2, kh // 2
                par_w, c0 = kw % 2, kw // 2
                tap = x_ref[par_h, par_w, r0:r0 + oh, c0 * cin:(c0 + ow) * cin]
                part = jnp.dot(tap, wb_ref[kh * 3 + kw],
                               preferred_element_type=jnp.float32)
                z = part if z is None else z + part
        # BN shift + ReLU, then drop to bf16 so the pooling matmuls are single-pass MXU.
        # (0/1 selection matmuls are exact in bf16; stages 1-2 output bf16 anyway.)
        zb = jnp.maximum(z + shift_ref[...], 0.0).astype(jnp.bfloat16)
        zr = jnp.maximum(                                            # 2x1 row pool
            jnp.dot(re_ref[...], zb, preferred_element_type=jnp.float32),
            jnp.dot(ro_ref[...], zb, preferred_element_type=jnp.float32),
        ).astype(jnp.bfloat16)                                       # exact cast (values are bf16)
        zp = jnp.maximum(                                            # 1x2 col pool
            jnp.dot(zr, ce_ref[...], preferred_element_type=jnp.float32),
            jnp.dot(zr, co_ref[...], preferred_element_type=jnp.float32))
        o_ref[...] = zp.astype(o_ref.dtype)

    return kernel


# ------------------------------ stage wrapper ----------------------------------

def _full_spec(shape):
    # whole-array block, same for every grid step (weights / small constants)
    return pl.BlockSpec(shape, lambda n, _s=len(shape): (0,) * _s)


def stage(x_nhwc, p, *, out_dtype):
    """conv(3x3,s2,p1) -> BN(eval) -> ReLU -> maxpool(2,2), fully fused in one pallas_call."""
    N, H, W, Cin = x_nhwc.shape
    assert H % 4 == 0 and W % 4 == 0, "stage requires spatial dims divisible by 4"
    Cout = p["w"].shape[0]
    OH, OW = H // 2, W // 2          # conv output
    PH, PW = OH // 2, OW // 2        # pooled output
    Hh, Wh = H // 2 + 1, W // 2 + 1  # parity-plane dims of the padded input

    # ---- fold BN into the conv weights / bias (trace-time, tiny) ----
    scale = p["gamma"] * jax.lax.rsqrt(p["var"] + EPS)               # (Cout,)
    w_eff = jnp.transpose(p["w"], (2, 3, 1, 0)) * scale              # (3,3,Cin,Cout), scale folded
    shift = scale * (p["b"] - p["mean"]) + p["beta"]                 # (Cout,)

    # block-diagonal weights: (9, OW*Cin, OW*Cout)
    eye_w = jnp.eye(OW, dtype=jnp.float32)
    wb = (eye_w[None, :, None, :, None]
          * w_eff.reshape(9, 1, Cin, 1, Cout)).reshape(9, OW * Cin, OW * Cout)
    wb = wb.astype(jnp.bfloat16)
    shift_row = jnp.tile(shift, OW).reshape(1, OW * Cout).astype(jnp.float32)

    # 0/1 pooling selection matrices (bf16 -> single-pass MXU; selection sums are exact)
    re = jnp.eye(OH, dtype=jnp.float32)[0::2, :].astype(jnp.bfloat16)   # (PH, OH)
    ro = jnp.eye(OH, dtype=jnp.float32)[1::2, :].astype(jnp.bfloat16)
    eye_c = jnp.eye(Cout, dtype=jnp.float32)
    ce = (jnp.eye(OW, dtype=jnp.float32)[:, 0::2][:, None, :, None]
          * eye_c[None, :, None, :]).reshape(OW * Cout, PW * Cout).astype(jnp.bfloat16)
    co = (jnp.eye(OW, dtype=jnp.float32)[:, 1::2][:, None, :, None]
          * eye_c[None, :, None, :]).reshape(OW * Cout, PW * Cout).astype(jnp.bfloat16)

    # ---- pad + parity-split the input (1x copy; replaces the 9x HBM im2col) ----
    xp = jnp.pad(x_nhwc, ((0, 0), (1, 1), (1, 1), (0, 0)))
    xp = xp.reshape(N, Hh, 2, Wh, 2, Cin).transpose(0, 2, 4, 1, 3, 5)
    xpar = xp.reshape(N, 2, 2, Hh, Wh * Cin).astype(jnp.bfloat16)

    kernel = _make_stage_kernel(Cin, Cout, OH, OW)
    out = pl.pallas_call(
        kernel,
        out_shape=jax.ShapeDtypeStruct((N, PH, PW * Cout), out_dtype),
        grid=(N,),
        in_specs=[
            pl.BlockSpec((None, 2, 2, Hh, Wh * Cin), lambda n: (n, 0, 0, 0, 0)),
            _full_spec((9, OW * Cin, OW * Cout)),
            _full_spec((1, OW * Cout)),
            _full_spec((PH, OH)),
            _full_spec((PH, OH)),
            _full_spec((OW * Cout, PW * Cout)),
            _full_spec((OW * Cout, PW * Cout)),
        ],
        out_specs=pl.BlockSpec((None, PH, PW * Cout), lambda n: (n, 0, 0)),
        compiler_params=pltpu.CompilerParams(dimension_semantics=("parallel",)),
    )(xpar, wb, shift_row, re, ro, ce, co)

    return out.reshape(N, PH, PW, Cout)      # back to NHWC (free row-major view)


def image_model_forward(x_nchw, params):
    x = jnp.transpose(x_nchw, (0, 2, 3, 1))                       # NCHW -> NHWC
    x = stage(x, params["layer1"], out_dtype=jnp.bfloat16)
    x = stage(x, params["layer2"], out_dtype=jnp.bfloat16)
    x = stage(x, params["layer3"], out_dtype=jnp.float32)
    return jnp.transpose(x, (0, 3, 1, 2))                         # NHWC -> NCHW


# --------------------------- params & pure-JAX reference -----------------------

def init_params(key):
    params = {}
    specs = [(3, 8), (8, 16), (16, 32)]
    keys = jax.random.split(key, len(specs))
    for i, (cin, cout) in enumerate(specs):
        kw_, kb, kg, kbt, km, kv = jax.random.split(keys[i], 6)
        params[f"layer{i + 1}"] = dict(
            w=0.1 * jax.random.normal(kw_, (cout, cin, 3, 3), jnp.float32),
            b=0.1 * jax.random.normal(kb, (cout,), jnp.float32),
            gamma=1.0 + 0.1 * jax.random.normal(kg, (cout,), jnp.float32),
            beta=0.1 * jax.random.normal(kbt, (cout,), jnp.float32),
            mean=0.1 * jax.random.normal(km, (cout,), jnp.float32),
            var=0.5 + jax.random.uniform(kv, (cout,), jnp.float32),
        )
    return params


def reference(x_nchw, params):
    # pure-JAX f32 reference (same eval-mode BN semantics)
    y = x_nchw
    for i in range(3):
        p = params[f"layer{i + 1}"]
        y = jax.lax.conv_general_dilated(
            y, p["w"], window_strides=(2, 2), padding=((1, 1), (1, 1)),
            dimension_numbers=("NCHW", "OIHW", "NCHW"))
        y = y + p["b"][None, :, None, None]
        scale = (p["gamma"] / jnp.sqrt(p["var"] + EPS))[None, :, None, None]
        y = (y - p["mean"][None, :, None, None]) * scale + p["beta"][None, :, None, None]
        y = jnp.maximum(y, 0.0)
        y = jax.lax.reduce_window(y, -jnp.inf, jax.lax.max,
                                  (1, 1, 2, 2), (1, 1, 2, 2), "VALID")
    return y


# ------------------------------------ main -------------------------------------

if __name__ == "__main__":
    key = jax.random.PRNGKey(0)
    kx, kp = jax.random.split(key)
    # 64x64 is the smallest spatial size keeping every (conv s2 + pool s2) output >= 1
    x = jax.random.normal(kx, (2, 3, 64, 64), jnp.float32)   # NCHW, like PyTorch
    params = init_params(kp)

    forward = jax.jit(image_model_forward)
    out = jax.block_until_ready(forward(x, params))

    assert out.shape == (2, 32, 1, 1), out.shape
    ref = reference(x, params)
    # bf16 activations/weights per perf guidance -> slightly widened tolerance vs pure-f32
    assert jnp.allclose(out, ref, rtol=2e-2, atol=2e-2), float(jnp.max(jnp.abs(out - ref)))

    print("KERNEL_OK")
</pallas_src>

<mosaic_0001>
module attributes {stable_mosaic.version = 11 : i64} {
  func.func @kernel(%arg0: i32, %arg1: memref<1x2x2x33x99xbf16, #tpu.memory_space<vmem>>, %arg2: memref<9x96x256xbf16, #tpu.memory_space<vmem>>, %arg3: memref<1x256xf32, #tpu.memory_space<vmem>>, %arg4: memref<16x32xbf16, #tpu.memory_space<vmem>>, %arg5: memref<16x32xbf16, #tpu.memory_space<vmem>>, %arg6: memref<256x128xbf16, #tpu.memory_space<vmem>>, %arg7: memref<256x128xbf16, #tpu.memory_space<vmem>>, %arg8: memref<1x16x128xbf16, #tpu.memory_space<vmem>>) attributes {dimension_semantics = [#tpu.dimension_semantics<parallel>], iteration_bounds = array<i64: 2>, scalar_prefetch = 0 : i64, scratch_operands = 0 : i64, tpu.core_type = #tpu.core_type<tc>, window_params = [{transform_indices = @transform_0, window_bounds = array<i64: 1, 2, 2, 33, 99>}, {pipeline_mode = #tpu.pipeline_mode<synchronous>, transform_indices = @transform_1, window_bounds = array<i64: 9, 96, 256>}, {pipeline_mode = #tpu.pipeline_mode<synchronous>, transform_indices = @transform_2, window_bounds = array<i64: 1, 256>}, {pipeline_mode = #tpu.pipeline_mode<synchronous>, transform_indices = @transform_3, window_bounds = array<i64: 16, 32>}, {pipeline_mode = #tpu.pipeline_mode<synchronous>, transform_indices = @transform_4, window_bounds = array<i64: 16, 32>}, {pipeline_mode = #tpu.pipeline_mode<synchronous>, transform_indices = @transform_5, window_bounds = array<i64: 256, 128>}, {pipeline_mode = #tpu.pipeline_mode<synchronous>, transform_indices = @transform_6, window_bounds = array<i64: 256, 128>}, {transform_indices = @transform_7, window_bounds = array<i64: 1, 16, 128>}]} {
    %c0 = arith.constant 0 : index
    %c0_0 = arith.constant 0 : index
    %c0_1 = arith.constant 0 : index
    %c0_2 = arith.constant 0 : index
    %c0_3 = arith.constant 0 : index
    %0 = vector.load %arg1[%c0, %c0_0, %c0_1, %c0_2, %c0_3] : memref<1x2x2x33x99xbf16, #tpu.memory_space<vmem>>, vector<1x1x1x32x96xbf16>
    %1 = vector.shape_cast %0 : vector<1x1x1x32x96xbf16> to vector<32x96xbf16>
    %c0_4 = arith.constant 0 : index
    %c0_5 = arith.constant 0 : index
    %c0_6 = arith.constant 0 : index
    %2 = vector.load %arg2[%c0_4, %c0_5, %c0_6] : memref<9x96x256xbf16, #tpu.memory_space<vmem>>, vector<1x96x256xbf16>
    %3 = vector.shape_cast %2 : vector<1x96x256xbf16> to vector<96x256xbf16>
    %cst = arith.constant dense<0.000000e+00> : vector<32x256xf32>
    %4 = tpu.matmul %1, %3, %cst {dimension_numbers = #tpu.dot_dimension_numbers<[1], [0], [0], [1], [0, 0, 1, 1], [], []>} : vector<32x96xbf16>, vector<96x256xbf16>, vector<32x256xf32> -> vector<32x256xf32>
    %c0_7 = arith.constant 0 : index
    %c0_8 = arith.constant 0 : index
    %c1 = arith.constant 1 : index
    %c0_9 = arith.constant 0 : index
    %c0_10 = arith.constant 0 : index
    %5 = vector.load %arg1[%c0_7, %c0_8, %c1, %c0_9, %c0_10] : memref<1x2x2x33x99xbf16, #tpu.memory_space<vmem>>, vector<1x1x1x32x96xbf16>
    %6 = vector.shape_cast %5 : vector<1x1x1x32x96xbf16> to vector<32x96xbf16>
    %c1_11 = arith.constant 1 : index
    %c0_12 = arith.constant 0 : index
    %c0_13 = arith.constant 0 : index
    %7 = vector.load %arg2[%c1_11, %c0_12, %c0_13] : memref<9x96x256xbf16, #tpu.memory_space<vmem>>, vector<1x96x256xbf16>
    %8 = vector.shape_cast %7 : vector<1x96x256xbf16> to vector<96x256xbf16>
    %cst_14 = arith.constant dense<0.000000e+00> : vector<32x256xf32>
    %9 = tpu.matmul %6, %8, %cst_14 {dimension_numbers = #tpu.dot_dimension_numbers<[1], [0], [0], [1], [0, 0, 1, 1], [], []>} : vector<32x96xbf16>, vector<96x256xbf16>, vector<32x256xf32> -> vector<32x256xf32>
    %10 = arith.addf %4, %9 : vector<32x256xf32>
    %c0_15 = arith.constant 0 : index
    %c0_16 = arith.constant 0 : index
    %c0_17 = arith.constant 0 : index
    %c0_18 = arith.constant 0 : index
    %c3 = arith.constant 3 : index
    %11 = vector.load %arg1[%c0_15, %c0_16, %c0_17, %c0_18, %c3] : memref<1x2x2x33x99xbf16, #tpu.memory_space<vmem>>, vector<1x1x1x32x96xbf16>
    %12 = vector.shape_cast %11 : vector<1x1x1x32x96xbf16> to vector<32x96xbf16>
    %c2 = arith.constant 2 : index
    %c0_19 = arith.constant 0 : index
    %c0_20 = arith.constant 0 : index
    %13 = vector.load %arg2[%c2, %c0_19, %c0_20] : memref<9x96x256xbf16, #tpu.memory_space<vmem>>, vector<1x96x256xbf16>
    %14 = vector.shape_cast %13 : vector<1x96x256xbf16> to vector<96x256xbf16>
    %cst_21 = arith.constant dense<0.000000e+00> : vector<32x256xf32>
    %15 = tpu.matmul %12, %14, %cst_21 {dimension_numbers = #tpu.dot_dimension_numbers<[1], [0], [0], [1], [0, 0, 1, 1], [], []>} : vector<32x96xbf16>, vector<96x256xbf16>, vector<32x256xf32> -> vector<32x256xf32>
    %16 = arith.addf %10, %15 : vector<32x256xf32>
    %c0_22 = arith.constant 0 : index
    %c1_23 = arith.constant 1 : index
    %c0_24 = arith.constant 0 : index
    %c0_25 = arith.constant 0 : index
    %c0_26 = arith.constant 0 : index
    %17 = vector.load %arg1[%c0_22, %c1_23, %c0_24, %c0_25, %c0_26] : memref<1x2x2x33x99xbf16, #tpu.memory_space<vmem>>, vector<1x1x1x32x96xbf16>
    %18 = vector.shape_cast %17 : vector<1x1x1x32x96xbf16> to vector<32x96xbf16>
    %c3_27 = arith.constant 3 : index
    %c0_28 = arith.constant 0 : index
    %c0_29 = arith.constant 0 : index
    %19 = vector.load %arg2[%c3_27, %c0_28, %c0_29] : memref<9x96x256xbf16, #tpu.memory_space<vmem>>, vector<1x96x256xbf16>
    %20 = vector.shape_cast %19 : vector<1x96x256xbf16> to vector<96x256xbf16>
    %cst_30 = arith.constant dense<0.000000e+00> : vector<32x256xf32>
    %21 = tpu.matmul %18, %20, %cst_30 {dimension_numbers = #tpu.dot_dimension_numbers<[1], [0], [0], [1], [0, 0, 1, 1], [], []>} : vector<32x96xbf16>, vector<96x256xbf16>, vector<32x256xf32> -> vector<32x256xf32>
    %22 = arith.addf %16, %21 : vector<32x256xf32>
    %c0_31 = arith.constant 0 : index
    %c1_32 = arith.constant 1 : index
    %c1_33 = arith.constant 1 : index
    %c0_34 = arith.constant 0 : index
    %c0_35 = arith.constant 0 : index
    %23 = vector.load %arg1[%c0_31, %c1_32, %c1_33, %c0_34, %c0_35] : memref<1x2x2x33x99xbf16, #tpu.memory_space<vmem>>, vector<1x1x1x32x96xbf16>
    %24 = vector.shape_cast %23 : vector<1x1x1x32x96xbf16> to vector<32x96xbf16>
    %c4 = arith.constant 4 : index
    %c0_36 = arith.constant 0 : index
    %c0_37 = arith.constant 0 : index
    %25 = vector.load %arg2[%c4, %c0_36, %c0_37] : memref<9x96x256xbf16, #tpu.memory_space<vmem>>, vector<1x96x256xbf16>
    %26 = vector.shape_cast %25 : vector<1x96x256xbf16> to vector<96x256xbf16>
    %cst_38 = arith.constant dense<0.000000e+00> : vector<32x256xf32>
    %27 = tpu.matmul %24, %26, %cst_38 {dimension_numbers = #tpu.dot_dimension_numbers<[1], [0], [0], [1], [0, 0, 1, 1], [], []>} : vector<32x96xbf16>, vector<96x256xbf16>, vector<32x256xf32> -> vector<32x256xf32>
    %28 = arith.addf %22, %27 : vector<32x256xf32>
    %c0_39 = arith.constant 0 : index
    %c1_40 = arith.constant 1 : index
    %c0_41 = arith.constant 0 : index
    %c0_42 = arith.constant 0 : index
    %c3_43 = arith.constant 3 : index
    %29 = vector.load %arg1[%c0_39, %c1_40, %c0_41, %c0_42, %c3_43] : memref<1x2x2x33x99xbf16, #tpu.memory_space<vmem>>, vector<1x1x1x32x96xbf16>
    %30 = vector.shape_cast %29 : vector<1x1x1x32x96xbf16> to vector<32x96xbf16>
    %c5 = arith.constant 5 : index
    %c0_44 = arith.constant 0 : index
    %c0_45 = arith.constant 0 : index
    %31 = vector.load %arg2[%c5, %c0_44, %c0_45] : memref<9x96x256xbf16, #tpu.memory_space<vmem>>, vector<1x96x256xbf16>
    %32 = vector.shape_cast %31 : vector<1x96x256xbf16> to vector<96x256xbf16>
    %cst_46 = arith.constant dense<0.000000e+00> : vector<32x256xf32>
    %33 = tpu.matmul %30, %32, %cst_46 {dimension_numbers = #tpu.dot_dimension_numbers<[1], [0], [0], [1], [0, 0, 1, 1], [], []>} : vector<32x96xbf16>, vector<96x256xbf16>, vector<32x256xf32> -> vector<32x256xf32>
    %34 = arith.addf %28, %33 : vector<32x256xf32>
    %c0_47 = arith.constant 0 : index
    %c0_48 = arith.constant 0 : index
    %c0_49 = arith.constant 0 : index
    %c1_50 = arith.constant 1 : index
    %c0_51 = arith.constant 0 : index
    %35 = vector.load %arg1[%c0_47, %c0_48, %c0_49, %c1_50, %c0_51] : memref<1x2x2x33x99xbf16, #tpu.memory_space<vmem>>, vector<1x1x1x32x96xbf16>
    %36 = vector.shape_cast %35 : vector<1x1x1x32x96xbf16> to vector<32x96xbf16>
    %c6 = arith.constant 6 : index
    %c0_52 = arith.constant 0 : index
    %c0_53 = arith.constant 0 : index
    %37 = vector.load %arg2[%c6, %c0_52, %c0_53] : memref<9x96x256xbf16, #tpu.memory_space<vmem>>, vector<1x96x256xbf16>
    %38 = vector.shape_cast %37 : vector<1x96x256xbf16> to vector<96x256xbf16>
    %cst_54 = arith.constant dense<0.000000e+00> : vector<32x256xf32>
    %39 = tpu.matmul %36, %38, %cst_54 {dimension_numbers = #tpu.dot_dimension_numbers<[1], [0], [0], [1], [0, 0, 1, 1], [], []>} : vector<32x96xbf16>, vector<96x256xbf16>, vector<32x256xf32> -> vector<32x256xf32>
    %40 = arith.addf %34, %39 : vector<32x256xf32>
    %c0_55 = arith.constant 0 : index
    %c0_56 = arith.constant 0 : index
    %c1_57 = arith.constant 1 : index
    %c1_58 = arith.constant 1 : index
    %c0_59 = arith.constant 0 : index
    %41 = vector.load %arg1[%c0_55, %c0_56, %c1_57, %c1_58, %c0_59] : memref<1x2x2x33x99xbf16, #tpu.memory_space<vmem>>, vector<1x1x1x32x96xbf16>
    %42 = vector.shape_cast %41 : vector<1x1x1x32x96xbf16> to vector<32x96xbf16>
    %c7 = arith.constant 7 : index
    %c0_60 = arith.constant 0 : index
    %c0_61 = arith.constant 0 : index
    %43 = vector.load %arg2[%c7, %c0_60, %c0_61] : memref<9x96x256xbf16, #tpu.memory_space<vmem>>, vector<1x96x256xbf16>
    %44 = vector.shape_cast %43 : vector<1x96x256xbf16> to vector<96x256xbf16>
    %cst_62 = arith.constant dense<0.000000e+00> : vector<32x256xf32>
    %45 = tpu.matmul %42, %44, %cst_62 {dimension_numbers = #tpu.dot_dimension_numbers<[1], [0], [0], [1], [0, 0, 1, 1], [], []>} : vector<32x96xbf16>, vector<96x256xbf16>, vector<32x256xf32> -> vector<32x256xf32>
    %46 = arith.addf %40, %45 : vector<32x256xf32>
    %c0_63 = arith.constant 0 : index
    %c0_64 = arith.constant 0 : index
    %c0_65 = arith.constant 0 : index
    %c1_66 = arith.constant 1 : index
    %c3_67 = arith.constant 3 : index
    %47 = vector.load %arg1[%c0_63, %c0_64, %c0_65, %c1_66, %c3_67] : memref<1x2x2x33x99xbf16, #tpu.memory_space<vmem>>, vector<1x1x1x32x96xbf16>
    %48 = vector.shape_cast %47 : vector<1x1x1x32x96xbf16> to vector<32x96xbf16>
    %c8 = arith.constant 8 : index
    %c0_68 = arith.constant 0 : index
    %c0_69 = arith.constant 0 : index
    %49 = vector.load %arg2[%c8, %c0_68, %c0_69] : memref<9x96x256xbf16, #tpu.memory_space<vmem>>, vector<1x96x256xbf16>
    %50 = vector.shape_cast %49 : vector<1x96x256xbf16> to vector<96x256xbf16>
    %cst_70 = arith.constant dense<0.000000e+00> : vector<32x256xf32>
    %51 = tpu.matmul %48, %50, %cst_70 {dimension_numbers = #tpu.dot_dimension_numbers<[1], [0], [0], [1], [0, 0, 1, 1], [], []>} : vector<32x96xbf16>, vector<96x256xbf16>, vector<32x256xf32> -> vector<32x256xf32>
    %52 = arith.addf %46, %51 : vector<32x256xf32>
    %c0_71 = arith.constant 0 : index
    %c0_72 = arith.constant 0 : index
    %53 = vector.load %arg3[%c0_71, %c0_72] : memref<1x256xf32, #tpu.memory_space<vmem>>, vector<1x256xf32>
    %54 = vector.broadcast %53 : vector<1x256xf32> to vector<32x256xf32>
    %55 = arith.addf %52, %54 : vector<32x256xf32>
    %cst_73 = arith.constant 0.000000e+00 : f32
    %56 = vector.broadcast %cst_73 : f32 to vector<32x256xf32>
    %57 = arith.maximumf %55, %56 : vector<32x256xf32>
    %58 = arith.truncf %57 : vector<32x256xf32> to vector<32x256xbf16>
    %c0_74 = arith.constant 0 : index
    %c0_75 = arith.constant 0 : index
    %59 = vector.load %arg4[%c0_74, %c0_75] : memref<16x32xbf16, #tpu.memory_space<vmem>>, vector<16x32xbf16>
    %cst_76 = arith.constant dense<0.000000e+00> : vector<16x256xf32>
    %60 = tpu.matmul %59, %58, %cst_76 {dimension_numbers = #tpu.dot_dimension_numbers<[1], [0], [0], [1], [0, 0, 1, 1], [], []>} : vector<16x32xbf16>, vector<32x256xbf16>, vector<16x256xf32> -> vector<16x256xf32>
    %c0_77 = arith.constant 0 : index
    %c0_78 = arith.constant 0 : index
    %61 = vector.load %arg5[%c0_77, %c0_78] : memref<16x32xbf16, #tpu.memory_space<vmem>>, vector<16x32xbf16>
    %cst_79 = arith.constant dense<0.000000e+00> : vector<16x256xf32>
    %62 = tpu.matmul %61, %58, %cst_79 {dimension_numbers = #tpu.dot_dimension_numbers<[1], [0], [0], [1], [0, 0, 1, 1], [], []>} : vector<16x32xbf16>, vector<32x256xbf16>, vector<16x256xf32> -> vector<16x256xf32>
    %63 = arith.maximumf %60, %62 : vector<16x256xf32>
    %64 = arith.truncf %63 : vector<16x256xf32> to vector<16x256xbf16>
    %c0_80 = arith.constant 0 : index
    %c0_81 = arith.constant 0 : index
    %65 = vector.load %arg6[%c0_80, %c0_81] : memref<256x128xbf16, #tpu.memory_space<vmem>>, vector<256x128xbf16>
    %cst_82 = arith.constant dense<0.000000e+00> : vector<16x128xf32>
    %66 = tpu.matmul %64, %65, %cst_82 {dimension_numbers = #tpu.dot_dimension_numbers<[1], [0], [0], [1], [0, 0, 1, 1], [], []>} : vector<16x256xbf16>, vector<256x128xbf16>, vector<16x128xf32> -> vector<16x128xf32>
    %c0_83 = arith.constant 0 : index
    %c0_84 = arith.constant 0 : index
    %67 = vector.load %arg7[%c0_83, %c0_84] : memref<256x128xbf16, #tpu.memory_space<vmem>>, vector<256x128xbf16>
    %cst_85 = arith.constant dense<0.000000e+00> : vector<16x128xf32>
    %68 = tpu.matmul %64, %67, %cst_85 {dimension_numbers = #tpu.dot_dimension_numbers<[1], [0], [0], [1], [0, 0, 1, 1], [], []>} : vector<16x256xbf16>, vector<256x128xbf16>, vector<16x128xf32> -> vector<16x128xf32>
    %69 = arith.maximumf %66, %68 : vector<16x128xf32>
    %70 = arith.truncf %69 : vector<16x128xf32> to vector<16x128xbf16>
    %c0_86 = arith.constant 0 : index
    %c0_87 = arith.constant 0 : index
    %c0_88 = arith.constant 0 : index
    %71 = vector.load %arg8[%c0_86, %c0_87, %c0_88] : memref<1x16x128xbf16, #tpu.memory_space<vmem>>, vector<1x16x128xbf16>
    %72 = vector.shape_cast %71 : vector<1x16x128xbf16> to vector<16x128xbf16>
    %73 = vector.shape_cast %70 : vector<16x128xbf16> to vector<1x16x128xbf16>
    tpu.vector_store %arg8[%c0_86, %c0_87, %c0_88], %73 {strides = array<i32>} : memref<1x16x128xbf16, #tpu.memory_space<vmem>>, vector<1x16x128xbf16>,
    return
  }
  func.func @transform_0(%arg0: i32) -> (i32, i32, i32, i32, i32) {
    %c0_i32 = arith.constant 0 : i32
    %c0_i32_0 = arith.constant 0 : i32
    %c0_i32_1 = arith.constant 0 : i32
    %c0_i32_2 = arith.constant 0 : i32
    %c0_i32_3 = arith.constant 0 : i32
    return %arg0, %c0_i32, %c0_i32_0, %c0_i32_1, %c0_i32_2 : i32, i32, i32, i32, i32
  }
  func.func @transform_1(%arg0: i32) -> (i32, i32, i32) {
    %c0_i32 = arith.constant 0 : i32
    %c0_i32_0 = arith.constant 0 : i32
    %c0_i32_1 = arith.constant 0 : i32
    %c0_i32_2 = arith.constant 0 : i32
    return %c0_i32, %c0_i32_0, %c0_i32_1 : i32, i32, i32
  }
  func.func @transform_2(%arg0: i32) -> (i32, i32) {
    %c0_i32 = arith.constant 0 : i32
    %c0_i32_0 = arith.constant 0 : i32
    %c0_i32_1 = arith.constant 0 : i32
    return %c0_i32, %c0_i32_0 : i32, i32
  }
  func.func @transform_3(%arg0: i32) -> (i32, i32) {
    %c0_i32 = arith.constant 0 : i32
    %c0_i32_0 = arith.constant 0 : i32
    %c0_i32_1 = arith.constant 0 : i32
    return %c0_i32, %c0_i32_0 : i32, i32
  }
  func.func @transform_4(%arg0: i32) -> (i32, i32) {
    %c0_i32 = arith.constant 0 : i32
    %c0_i32_0 = arith.constant 0 : i32
    %c0_i32_1 = arith.constant 0 : i32
    return %c0_i32, %c0_i32_0 : i32, i32
  }
  func.func @transform_5(%arg0: i32) -> (i32, i32) {
    %c0_i32 = arith.constant 0 : i32
    %c0_i32_0 = arith.constant 0 : i32
    %c0_i32_1 = arith.constant 0 : i32
    return %c0_i32, %c0_i32_0 : i32, i32
  }
  func.func @transform_6(%arg0: i32) -> (i32, i32) {
    %c0_i32 = arith.constant 0 : i32
    %c0_i32_0 = arith.constant 0 : i32
    %c0_i32_1 = arith.constant 0 : i32
    return %c0_i32, %c0_i32_0 : i32, i32
  }
  func.func @transform_7(%arg0: i32) -> (i32, i32, i32) {
    %c0_i32 = arith.constant 0 : i32
    %c0_i32_0 = arith.constant 0 : i32
    %c0_i32_1 = arith.constant 0 : i32
    return %arg0, %c0_i32, %c0_i32_0 : i32, i32, i32
  }
}

module attributes {stable_mosaic.version = 11 : i64} {
  func.func @kernel(%arg0: i32, %arg1: memref<1x2x2x9x72xbf16, #tpu.memory_space<vmem>>, %arg2: memref<9x64x128xbf16, #tpu.memory_space<vmem>>, %arg3: memref<1x128xf32, #tpu.memory_space<vmem>>, %arg4: memref<4x8xbf16, #tpu.memory_space<vmem>>, %arg5: memref<4x8xbf16, #tpu.memory_space<vmem>>, %arg6: memref<128x64xbf16, #tpu.memory_space<vmem>>, %arg7: memref<128x64xbf16, #tpu.memory_space<vmem>>, %arg8: memref<1x4x64xbf16, #tpu.memory_space<vmem>>) attributes {dimension_semantics = [#tpu.dimension_semantics<parallel>], iteration_bounds = array<i64: 2>, scalar_prefetch = 0 : i64, scratch_operands = 0 : i64, tpu.core_type = #tpu.core_type<tc>, window_params = [{transform_indices = @transform_0, window_bounds = array<i64: 1, 2, 2, 9, 72>}, {pipeline_mode = #tpu.pipeline_mode<synchronous>, transform_indices = @transform_1, window_bounds = array<i64: 9, 64, 128>}, {pipeline_mode = #tpu.pipeline_mode<synchronous>, transform_indices = @transform_2, window_bounds = array<i64: 1, 128>}, {pipeline_mode = #tpu.pipeline_mode<synchronous>, transform_indices = @transform_3, window_bounds = array<i64: 4, 8>}, {pipeline_mode = #tpu.pipeline_mode<synchronous>, transform_indices = @transform_4, window_bounds = array<i64: 4, 8>}, {pipeline_mode = #tpu.pipeline_mode<synchronous>, transform_indices = @transform_5, window_bounds = array<i64: 128, 64>}, {pipeline_mode = #tpu.pipeline_mode<synchronous>, transform_indices = @transform_6, window_bounds = array<i64: 128, 64>}, {transform_indices = @transform_7, window_bounds = array<i64: 1, 4, 64>}]} {
    %c0 = arith.constant 0 : index
    %c0_0 = arith.constant 0 : index
    %c0_1 = arith.constant 0 : index
    %c0_2 = arith.constant 0 : index
    %c0_3 = arith.constant 0 : index
    %0 = vector.load %arg1[%c0, %c0_0, %c0_1, %c0_2, %c0_3] : memref<1x2x2x9x72xbf16, #tpu.memory_space<vmem>>, vector<1x1x1x8x64xbf16>
    %1 = vector.shape_cast %0 : vector<1x1x1x8x64xbf16> to vector<8x64xbf16>
    %c0_4 = arith.constant 0 : index
    %c0_5 = arith.constant 0 : index
    %c0_6 = arith.constant 0 : index
    %2 = vector.load %arg2[%c0_4, %c0_5, %c0_6] : memref<9x64x128xbf16, #tpu.memory_space<vmem>>, vector<1x64x128xbf16>
    %3 = vector.shape_cast %2 : vector<1x64x128xbf16> to vector<64x128xbf16>
    %cst = arith.constant dense<0.000000e+00> : vector<8x128xf32>
    %4 = tpu.matmul %1, %3, %cst {dimension_numbers = #tpu.dot_dimension_numbers<[1], [0], [0], [1], [0, 0, 1, 1], [], []>} : vector<8x64xbf16>, vector<64x128xbf16>, vector<8x128xf32> -> vector<8x128xf32>
    %c0_7 = arith.constant 0 : index
    %c0_8 = arith.constant 0 : index
    %c1 = arith.constant 1 : index
    %c0_9 = arith.constant 0 : index
    %c0_10 = arith.constant 0 : index
    %5 = vector.load %arg1[%c0_7, %c0_8, %c1, %c0_9, %c0_10] : memref<1x2x2x9x72xbf16, #tpu.memory_space<vmem>>, vector<1x1x1x8x64xbf16>
    %6 = vector.shape_cast %5 : vector<1x1x1x8x64xbf16> to vector<8x64xbf16>
    %c1_11 = arith.constant 1 : index
    %c0_12 = arith.constant 0 : index
    %c0_13 = arith.constant 0 : index
    %7 = vector.load %arg2[%c1_11, %c0_12, %c0_13] : memref<9x64x128xbf16, #tpu.memory_space<vmem>>, vector<1x64x128xbf16>
    %8 = vector.shape_cast %7 : vector<1x64x128xbf16> to vector<64x128xbf16>
    %cst_14 = arith.constant dense<0.000000e+00> : vector<8x128xf32>
    %9 = tpu.matmul %6, %8, %cst_14 {dimension_numbers = #tpu.dot_dimension_numbers<[1], [0], [0], [1], [0, 0, 1, 1], [], []>} : vector<8x64xbf16>, vector<64x128xbf16>, vector<8x128xf32> -> vector<8x128xf32>
    %10 = arith.addf %4, %9 : vector<8x128xf32>
    %c0_15 = arith.constant 0 : index
    %c0_16 = arith.constant 0 : index
    %c0_17 = arith.constant 0 : index
    %c0_18 = arith.constant 0 : index
    %c8 = arith.constant 8 : index
    %11 = vector.load %arg1[%c0_15, %c0_16, %c0_17, %c0_18, %c8] : memref<1x2x2x9x72xbf16, #tpu.memory_space<vmem>>, vector<1x1x1x8x64xbf16>
    %12 = vector.shape_cast %11 : vector<1x1x1x8x64xbf16> to vector<8x64xbf16>
    %c2 = arith.constant 2 : index
    %c0_19 = arith.constant 0 : index
    %c0_20 = arith.constant 0 : index
    %13 = vector.load %arg2[%c2, %c0_19, %c0_20] : memref<9x64x128xbf16, #tpu.memory_space<vmem>>, vector<1x64x128xbf16>
    %14 = vector.shape_cast %13 : vector<1x64x128xbf16> to vector<64x128xbf16>
    %cst_21 = arith.constant dense<0.000000e+00> : vector<8x128xf32>
    %15 = tpu.matmul %12, %14, %cst_21 {dimension_numbers = #tpu.dot_dimension_numbers<[1], [0], [0], [1], [0, 0, 1, 1], [], []>} : vector<8x64xbf16>, vector<64x128xbf16>, vector<8x128xf32> -> vector<8x128xf32>
    %16 = arith.addf %10, %15 : vector<8x128xf32>
    %c0_22 = arith.constant 0 : index
    %c1_23 = arith.constant 1 : index
    %c0_24 = arith.constant 0 : index
    %c0_25 = arith.constant 0 : index
    %c0_26 = arith.constant 0 : index
    %17 = vector.load %arg1[%c0_22, %c1_23, %c0_24, %c0_25, %c0_26] : memref<1x2x2x9x72xbf16, #tpu.memory_space<vmem>>, vector<1x1x1x8x64xbf16>
    %18 = vector.shape_cast %17 : vector<1x1x1x8x64xbf16> to vector<8x64xbf16>
    %c3 = arith.constant 3 : index
    %c0_27 = arith.constant 0 : index
    %c0_28 = arith.constant 0 : index
    %19 = vector.load %arg2[%c3, %c0_27, %c0_28] : memref<9x64x128xbf16, #tpu.memory_space<vmem>>, vector<1x64x128xbf16>
    %20 = vector.shape_cast %19 : vector<1x64x128xbf16> to vector<64x128xbf16>
    %cst_29 = arith.constant dense<0.000000e+00> : vector<8x128xf32>
    %21 = tpu.matmul %18, %20, %cst_29 {dimension_numbers = #tpu.dot_dimension_numbers<[1], [0], [0], [1], [0, 0, 1, 1], [], []>} : vector<8x64xbf16>, vector<64x128xbf16>, vector<8x128xf32> -> vector<8x128xf32>
    %22 = arith.addf %16, %21 : vector<8x128xf32>
    %c0_30 = arith.constant 0 : index
    %c1_31 = arith.constant 1 : index
    %c1_32 = arith.constant 1 : index
    %c0_33 = arith.constant 0 : index
    %c0_34 = arith.constant 0 : index
    %23 = vector.load %arg1[%c0_30, %c1_31, %c1_32, %c0_33, %c0_34] : memref<1x2x2x9x72xbf16, #tpu.memory_space<vmem>>, vector<1x1x1x8x64xbf16>
    %24 = vector.shape_cast %23 : vector<1x1x1x8x64xbf16> to vector<8x64xbf16>
    %c4 = arith.constant 4 : index
    %c0_35 = arith.constant 0 : index
    %c0_36 = arith.constant 0 : index
    %25 = vector.load %arg2[%c4, %c0_35, %c0_36] : memref<9x64x128xbf16, #tpu.memory_space<vmem>>, vector<1x64x128xbf16>
    %26 = vector.shape_cast %25 : vector<1x64x128xbf16> to vector<64x128xbf16>
    %cst_37 = arith.constant dense<0.000000e+00> : vector<8x128xf32>
    %27 = tpu.matmul %24, %26, %cst_37 {dimension_numbers = #tpu.dot_dimension_numbers<[1], [0], [0], [1], [0, 0, 1, 1], [], []>} : vector<8x64xbf16>, vector<64x128xbf16>, vector<8x128xf32> -> vector<8x128xf32>
    %28 = arith.addf %22, %27 : vector<8x128xf32>
    %c0_38 = arith.constant 0 : index
    %c1_39 = arith.constant 1 : index
    %c0_40 = arith.constant 0 : index
    %c0_41 = arith.constant 0 : index
    %c8_42 = arith.constant 8 : index
    %29 = vector.load %arg1[%c0_38, %c1_39, %c0_40, %c0_41, %c8_42] : memref<1x2x2x9x72xbf16, #tpu.memory_space<vmem>>, vector<1x1x1x8x64xbf16>
    %30 = vector.shape_cast %29 : vector<1x1x1x8x64xbf16> to vector<8x64xbf16>
    %c5 = arith.constant 5 : index
    %c0_43 = arith.constant 0 : index
    %c0_44 = arith.constant 0 : index
    %31 = vector.load %arg2[%c5, %c0_43, %c0_44] : memref<9x64x128xbf16, #tpu.memory_space<vmem>>, vector<1x64x128xbf16>
    %32 = vector.shape_cast %31 : vector<1x64x128xbf16> to vector<64x128xbf16>
    %cst_45 = arith.constant dense<0.000000e+00> : vector<8x128xf32>
    %33 = tpu.matmul %30, %32, %cst_45 {dimension_numbers = #tpu.dot_dimension_numbers<[1], [0], [0], [1], [0, 0, 1, 1], [], []>} : vector<8x64xbf16>, vector<64x128xbf16>, vector<8x128xf32> -> vector<8x128xf32>
    %34 = arith.addf %28, %33 : vector<8x128xf32>
    %c0_46 = arith.constant 0 : index
    %c0_47 = arith.constant 0 : index
    %c0_48 = arith.constant 0 : index
    %c1_49 = arith.constant 1 : index
    %c0_50 = arith.constant 0 : index
    %35 = vector.load %arg1[%c0_46, %c0_47, %c0_48, %c1_49, %c0_50] : memref<1x2x2x9x72xbf16, #tpu.memory_space<vmem>>, vector<1x1x1x8x64xbf16>
    %36 = vector.shape_cast %35 : vector<1x1x1x8x64xbf16> to vector<8x64xbf16>
    %c6 = arith.constant 6 : index
    %c0_51 = arith.constant 0 : index
    %c0_52 = arith.constant 0 : index
    %37 = vector.load %arg2[%c6, %c0_51, %c0_52] : memref<9x64x128xbf16, #tpu.memory_space<vmem>>, vector<1x64x128xbf16>
    %38 = vector.shape_cast %37 : vector<1x64x128xbf16> to vector<64x128xbf16>
    %cst_53 = arith.constant dense<0.000000e+00> : vector<8x128xf32>
    %39 = tpu.matmul %36, %38, %cst_53 {dimension_numbers = #tpu.dot_dimension_numbers<[1], [0], [0], [1], [0, 0, 1, 1], [], []>} : vector<8x64xbf16>, vector<64x128xbf16>, vector<8x128xf32> -> vector<8x128xf32>
    %40 = arith.addf %34, %39 : vector<8x128xf32>
    %c0_54 = arith.constant 0 : index
    %c0_55 = arith.constant 0 : index
    %c1_56 = arith.constant 1 : index
    %c1_57 = arith.constant 1 : index
    %c0_58 = arith.constant 0 : index
    %41 = vector.load %arg1[%c0_54, %c0_55, %c1_56, %c1_57, %c0_58] : memref<1x2x2x9x72xbf16, #tpu.memory_space<vmem>>, vector<1x1x1x8x64xbf16>
    %42 = vector.shape_cast %41 : vector<1x1x1x8x64xbf16> to vector<8x64xbf16>
    %c7 = arith.constant 7 : index
    %c0_59 = arith.constant 0 : index
    %c0_60 = arith.constant 0 : index
    %43 = vector.load %arg2[%c7, %c0_59, %c0_60] : memref<9x64x128xbf16, #tpu.memory_space<vmem>>, vector<1x64x128xbf16>
    %44 = vector.shape_cast %43 : vector<1x64x128xbf16> to vector<64x128xbf16>
    %cst_61 = arith.constant dense<0.000000e+00> : vector<8x128xf32>
    %45 = tpu.matmul %42, %44, %cst_61 {dimension_numbers = #tpu.dot_dimension_numbers<[1], [0], [0], [1], [0, 0, 1, 1], [], []>} : vector<8x64xbf16>, vector<64x128xbf16>, vector<8x128xf32> -> vector<8x128xf32>
    %46 = arith.addf %40, %45 : vector<8x128xf32>
    %c0_62 = arith.constant 0 : index
    %c0_63 = arith.constant 0 : index
    %c0_64 = arith.constant 0 : index
    %c1_65 = arith.constant 1 : index
    %c8_66 = arith.constant 8 : index
    %47 = vector.load %arg1[%c0_62, %c0_63, %c0_64, %c1_65, %c8_66] : memref<1x2x2x9x72xbf16, #tpu.memory_space<vmem>>, vector<1x1x1x8x64xbf16>
    %48 = vector.shape_cast %47 : vector<1x1x1x8x64xbf16> to vector<8x64xbf16>
    %c8_67 = arith.constant 8 : index
    %c0_68 = arith.constant 0 : index
    %c0_69 = arith.constant 0 : index
    %49 = vector.load %arg2[%c8_67, %c0_68, %c0_69] : memref<9x64x128xbf16, #tpu.memory_space<vmem>>, vector<1x64x128xbf16>
    %50 = vector.shape_cast %49 : vector<1x64x128xbf16> to vector<64x128xbf16>
    %cst_70 = arith.constant dense<0.000000e+00> : vector<8x128xf32>
    %51 = tpu.matmul %48, %50, %cst_70 {dimension_numbers = #tpu.dot_dimension_numbers<[1], [0], [0], [1], [0, 0, 1, 1], [], []>} : vector<8x64xbf16>, vector<64x128xbf16>, vector<8x128xf32> -> vector<8x128xf32>
    %52 = arith.addf %46, %51 : vector<8x128xf32>
    %c0_71 = arith.constant 0 : index
    %c0_72 = arith.constant 0 : index
    %53 = vector.load %arg3[%c0_71, %c0_72] : memref<1x128xf32, #tpu.memory_space<vmem>>, vector<1x128xf32>
    %54 = vector.broadcast %53 : vector<1x128xf32> to vector<8x128xf32>
    %55 = arith.addf %52, %54 : vector<8x128xf32>
    %cst_73 = arith.constant 0.000000e+00 : f32
    %56 = vector.broadcast %cst_73 : f32 to vector<8x128xf32>
    %57 = arith.maximumf %55, %56 : vector<8x128xf32>
    %58 = arith.truncf %57 : vector<8x128xf32> to vector<8x128xbf16>
    %c0_74 = arith.constant 0 : index
    %c0_75 = arith.constant 0 : index
    %59 = vector.load %arg4[%c0_74, %c0_75] : memref<4x8xbf16, #tpu.memory_space<vmem>>, vector<4x8xbf16>
    %cst_76 = arith.constant dense<0.000000e+00> : vector<4x128xf32>
    %60 = tpu.matmul %59, %58, %cst_76 {dimension_numbers = #tpu.dot_dimension_numbers<[1], [0], [0], [1], [0, 0, 1, 1], [], []>} : vector<4x8xbf16>, vector<8x128xbf16>, vector<4x128xf32> -> vector<4x128xf32>
    %c0_77 = arith.constant 0 : index
    %c0_78 = arith.constant 0 : index
    %61 = vector.load %arg5[%c0_77, %c0_78] : memref<4x8xbf16, #tpu.memory_space<vmem>>, vector<4x8xbf16>
    %cst_79 = arith.constant dense<0.000000e+00> : vector<4x128xf32>
    %62 = tpu.matmul %61, %58, %cst_79 {dimension_numbers = #tpu.dot_dimension_numbers<[1], [0], [0], [1], [0, 0, 1, 1], [], []>} : vector<4x8xbf16>, vector<8x128xbf16>, vector<4x128xf32> -> vector<4x128xf32>
    %63 = arith.maximumf %60, %62 : vector<4x128xf32>
    %64 = arith.truncf %63 : vector<4x128xf32> to vector<4x128xbf16>
    %c0_80 = arith.constant 0 : index
    %c0_81 = arith.constant 0 : index
    %65 = vector.load %arg6[%c0_80, %c0_81] : memref<128x64xbf16, #tpu.memory_space<vmem>>, vector<128x64xbf16>
    %cst_82 = arith.constant dense<0.000000e+00> : vector<4x64xf32>
    %66 = tpu.matmul %64, %65, %cst_82 {dimension_numbers = #tpu.dot_dimension_numbers<[1], [0], [0], [1], [0, 0, 1, 1], [], []>} : vector<4x128xbf16>, vector<128x64xbf16>, vector<4x64xf32> -> vector<4x64xf32>
    %c0_83 = arith.constant 0 : index
    %c0_84 = arith.constant 0 : index
    %67 = vector.load %arg7[%c0_83, %c0_84] : memref<128x64xbf16, #tpu.memory_space<vmem>>, vector<128x64xbf16>
    %cst_85 = arith.constant dense<0.000000e+00> : vector<4x64xf32>
    %68 = tpu.matmul %64, %67, %cst_85 {dimension_numbers = #tpu.dot_dimension_numbers<[1], [0], [0], [1], [0, 0, 1, 1], [], []>} : vector<4x128xbf16>, vector<128x64xbf16>, vector<4x64xf32> -> vector<4x64xf32>
    %69 = arith.maximumf %66, %68 : vector<4x64xf32>
    %70 = arith.truncf %69 : vector<4x64xf32> to vector<4x64xbf16>
    %c0_86 = arith.constant 0 : index
    %c0_87 = arith.constant 0 : index
    %c0_88 = arith.constant 0 : index
    %71 = vector.load %arg8[%c0_86, %c0_87, %c0_88] : memref<1x4x64xbf16, #tpu.memory_space<vmem>>, vector<1x4x64xbf16>
    %72 = vector.shape_cast %71 : vector<1x4x64xbf16> to vector<4x64xbf16>
    %73 = vector.shape_cast %70 : vector<4x64xbf16> to vector<1x4x64xbf16>
    tpu.vector_store %arg8[%c0_86, %c0_87, %c0_88], %73 {strides = array<i32>} : memref<1x4x64xbf16, #tpu.memory_space<vmem>>, vector<1x4x64xbf16>,
    return
  }
  func.func @transform_0(%arg0: i32) -> (i32, i32, i32, i32, i32) {
    %c0_i32 = arith.constant 0 : i32
    %c0_i32_0 = arith.constant 0 : i32
    %c0_i32_1 = arith.constant 0 : i32
    %c0_i32_2 = arith.constant 0 : i32
    %c0_i32_3 = arith.constant 0 : i32
    return %arg0, %c0_i32, %c0_i32_0, %c0_i32_1, %c0_i32_2 : i32, i32, i32, i32, i32
  }
  func.func @transform_1(%arg0: i32) -> (i32, i32, i32) {
    %c0_i32 = arith.constant 0 : i32
    %c0_i32_0 = arith.constant 0 : i32
    %c0_i32_1 = arith.constant 0 : i32
    %c0_i32_2 = arith.constant 0 : i32
    return %c0_i32, %c0_i32_0, %c0_i32_1 : i32, i32, i32
  }
  func.func @transform_2(%arg0: i32) -> (i32, i32) {
    %c0_i32 = arith.constant 0 : i32
    %c0_i32_0 = arith.constant 0 : i32
    %c0_i32_1 = arith.constant 0 : i32
    return %c0_i32, %c0_i32_0 : i32, i32
  }
  func.func @transform_3(%arg0: i32) -> (i32, i32) {
    %c0_i32 = arith.constant 0 : i32
    %c0_i32_0 = arith.constant 0 : i32
    %c0_i32_1 = arith.constant 0 : i32
    return %c0_i32, %c0_i32_0 : i32, i32
  }
  func.func @transform_4(%arg0: i32) -> (i32, i32) {
    %c0_i32 = arith.constant 0 : i32
    %c0_i32_0 = arith.constant 0 : i32
    %c0_i32_1 = arith.constant 0 : i32
    return %c0_i32, %c0_i32_0 : i32, i32
  }
  func.func @transform_5(%arg0: i32) -> (i32, i32) {
    %c0_i32 = arith.constant 0 : i32
    %c0_i32_0 = arith.constant 0 : i32
    %c0_i32_1 = arith.constant 0 : i32
    return %c0_i32, %c0_i32_0 : i32, i32
  }
  func.func @transform_6(%arg0: i32) -> (i32, i32) {
    %c0_i32 = arith.constant 0 : i32
    %c0_i32_0 = arith.constant 0 : i32
    %c0_i32_1 = arith.constant 0 : i32
    return %c0_i32, %c0_i32_0 : i32, i32
  }
  func.func @transform_7(%arg0: i32) -> (i32, i32, i32) {
    %c0_i32 = arith.constant 0 : i32
    %c0_i32_0 = arith.constant 0 : i32
    %c0_i32_1 = arith.constant 0 : i32
    return %arg0, %c0_i32, %c0_i32_0 : i32, i32, i32
  }
}

module attributes {stable_mosaic.version = 11 : i64} {
  func.func @kernel(%arg0: i32, %arg1: memref<1x2x2x3x48xbf16, #tpu.memory_space<vmem>>, %arg2: memref<9x32x64xbf16, #tpu.memory_space<vmem>>, %arg3: memref<1x64xf32, #tpu.memory_space<vmem>>, %arg4: memref<1x2xbf16, #tpu.memory_space<vmem>>, %arg5: memref<1x2xbf16, #tpu.memory_space<vmem>>, %arg6: memref<64x32xbf16, #tpu.memory_space<vmem>>, %arg7: memref<64x32xbf16, #tpu.memory_space<vmem>>, %arg8: memref<1x1x32xf32, #tpu.memory_space<vmem>>) attributes {dimension_semantics = [#tpu.dimension_semantics<parallel>], iteration_bounds = array<i64: 2>, scalar_prefetch = 0 : i64, scratch_operands = 0 : i64, tpu.core_type = #tpu.core_type<tc>, window_params = [{transform_indices = @transform_0, window_bounds = array<i64: 1, 2, 2, 3, 48>}, {pipeline_mode = #tpu.pipeline_mode<synchronous>, transform_indices = @transform_1, window_bounds = array<i64: 9, 32, 64>}, {pipeline_mode = #tpu.pipeline_mode<synchronous>, transform_indices = @transform_2, window_bounds = array<i64: 1, 64>}, {pipeline_mode = #tpu.pipeline_mode<synchronous>, transform_indices = @transform_3, window_bounds = array<i64: 1, 2>}, {pipeline_mode = #tpu.pipeline_mode<synchronous>, transform_indices = @transform_4, window_bounds = array<i64: 1, 2>}, {pipeline_mode = #tpu.pipeline_mode<synchronous>, transform_indices = @transform_5, window_bounds = array<i64: 64, 32>}, {pipeline_mode = #tpu.pipeline_mode<synchronous>, transform_indices = @transform_6, window_bounds = array<i64: 64, 32>}, {transform_indices = @transform_7, window_bounds = array<i64: 1, 1, 32>}]} {
    %c0 = arith.constant 0 : index
    %c0_0 = arith.constant 0 : index
    %c0_1 = arith.constant 0 : index
    %c0_2 = arith.constant 0 : index
    %c0_3 = arith.constant 0 : index
    %0 = vector.load %arg1[%c0, %c0_0, %c0_1, %c0_2, %c0_3] : memref<1x2x2x3x48xbf16, #tpu.memory_space<vmem>>, vector<1x1x1x2x32xbf16>
    %1 = vector.shape_cast %0 : vector<1x1x1x2x32xbf16> to vector<2x32xbf16>
    %c0_4 = arith.constant 0 : index
    %c0_5 = arith.constant 0 : index
    %c0_6 = arith.constant 0 : index
    %2 = vector.load %arg2[%c0_4, %c0_5, %c0_6] : memref<9x32x64xbf16, #tpu.memory_space<vmem>>, vector<1x32x64xbf16>
    %3 = vector.shape_cast %2 : vector<1x32x64xbf16> to vector<32x64xbf16>
    %cst = arith.constant dense<0.000000e+00> : vector<2x64xf32>
    %4 = tpu.matmul %1, %3, %cst {dimension_numbers = #tpu.dot_dimension_numbers<[1], [0], [0], [1], [0, 0, 1, 1], [], []>} : vector<2x32xbf16>, vector<32x64xbf16>, vector<2x64xf32> -> vector<2x64xf32>
    %c0_7 = arith.constant 0 : index
    %c0_8 = arith.constant 0 : index
    %c1 = arith.constant 1 : index
    %c0_9 = arith.constant 0 : index
    %c0_10 = arith.constant 0 : index
    %5 = vector.load %arg1[%c0_7, %c0_8, %c1, %c0_9, %c0_10] : memref<1x2x2x3x48xbf16, #tpu.memory_space<vmem>>, vector<1x1x1x2x32xbf16>
    %6 = vector.shape_cast %5 : vector<1x1x1x2x32xbf16> to vector<2x32xbf16>
    %c1_11 = arith.constant 1 : index
    %c0_12 = arith.constant 0 : index
    %c0_13 = arith.constant 0 : index
    %7 = vector.load %arg2[%c1_11, %c0_12, %c0_13] : memref<9x32x64xbf16, #tpu.memory_space<vmem>>, vector<1x32x64xbf16>
    %8 = vector.shape_cast %7 : vector<1x32x64xbf16> to vector<32x64xbf16>
    %cst_14 = arith.constant dense<0.000000e+00> : vector<2x64xf32>
    %9 = tpu.matmul %6, %8, %cst_14 {dimension_numbers = #tpu.dot_dimension_numbers<[1], [0], [0], [1], [0, 0, 1, 1], [], []>} : vector<2x32xbf16>, vector<32x64xbf16>, vector<2x64xf32> -> vector<2x64xf32>
    %10 = arith.addf %4, %9 : vector<2x64xf32>
    %c0_15 = arith.constant 0 : index
    %c0_16 = arith.constant 0 : index
    %c0_17 = arith.constant 0 : index
    %c0_18 = arith.constant 0 : index
    %c16 = arith.constant 16 : index
    %11 = vector.load %arg1[%c0_15, %c0_16, %c0_17, %c0_18, %c16] : memref<1x2x2x3x48xbf16, #tpu.memory_space<vmem>>, vector<1x1x1x2x32xbf16>
    %12 = vector.shape_cast %11 : vector<1x1x1x2x32xbf16> to vector<2x32xbf16>
    %c2 = arith.constant 2 : index
    %c0_19 = arith.constant 0 : index
    %c0_20 = arith.constant 0 : index
    %13 = vector.load %arg2[%c2, %c0_19, %c0_20] : memref<9x32x64xbf16, #tpu.memory_space<vmem>>, vector<1x32x64xbf16>
    %14 = vector.shape_cast %13 : vector<1x32x64xbf16> to vector<32x64xbf16>
    %cst_21 = arith.constant dense<0.000000e+00> : vector<2x64xf32>
    %15 = tpu.matmul %12, %14, %cst_21 {dimension_numbers = #tpu.dot_dimension_numbers<[1], [0], [0], [1], [0, 0, 1, 1], [], []>} : vector<2x32xbf16>, vector<32x64xbf16>, vector<2x64xf32> -> vector<2x64xf32>
    %16 = arith.addf %10, %15 : vector<2x64xf32>
    %c0_22 = arith.constant 0 : index
    %c1_23 = arith.constant 1 : index
    %c0_24 = arith.constant 0 : index
    %c0_25 = arith.constant 0 : index
    %c0_26 = arith.constant 0 : index
    %17 = vector.load %arg1[%c0_22, %c1_23, %c0_24, %c0_25, %c0_26] : memref<1x2x2x3x48xbf16, #tpu.memory_space<vmem>>, vector<1x1x1x2x32xbf16>
    %18 = vector.shape_cast %17 : vector<1x1x1x2x32xbf16> to vector<2x32xbf16>
    %c3 = arith.constant 3 : index
    %c0_27 = arith.constant 0 : index
    %c0_28 = arith.constant 0 : index
    %19 = vector.load %arg2[%c3, %c0_27, %c0_28] : memref<9x32x64xbf16, #tpu.memory_space<vmem>>, vector<1x32x64xbf16>
    %20 = vector.shape_cast %19 : vector<1x32x64xbf16> to vector<32x64xbf16>
    %cst_29 = arith.constant dense<0.000000e+00> : vector<2x64xf32>
    %21 = tpu.matmul %18, %20, %cst_29 {dimension_numbers = #tpu.dot_dimension_numbers<[1], [0], [0], [1], [0, 0, 1, 1], [], []>} : vector<2x32xbf16>, vector<32x64xbf16>, vector<2x64xf32> -> vector<2x64xf32>
    %22 = arith.addf %16, %21 : vector<2x64xf32>
    %c0_30 = arith.constant 0 : index
    %c1_31 = arith.constant 1 : index
    %c1_32 = arith.constant 1 : index
    %c0_33 = arith.constant 0 : index
    %c0_34 = arith.constant 0 : index
    %23 = vector.load %arg1[%c0_30, %c1_31, %c1_32, %c0_33, %c0_34] : memref<1x2x2x3x48xbf16, #tpu.memory_space<vmem>>, vector<1x1x1x2x32xbf16>
    %24 = vector.shape_cast %23 : vector<1x1x1x2x32xbf16> to vector<2x32xbf16>
    %c4 = arith.constant 4 : index
    %c0_35 = arith.constant 0 : index
    %c0_36 = arith.constant 0 : index
    %25 = vector.load %arg2[%c4, %c0_35, %c0_36] : memref<9x32x64xbf16, #tpu.memory_space<vmem>>, vector<1x32x64xbf16>
    %26 = vector.shape_cast %25 : vector<1x32x64xbf16> to vector<32x64xbf16>
    %cst_37 = arith.constant dense<0.000000e+00> : vector<2x64xf32>
    %27 = tpu.matmul %24, %26, %cst_37 {dimension_numbers = #tpu.dot_dimension_numbers<[1], [0], [0], [1], [0, 0, 1, 1], [], []>} : vector<2x32xbf16>, vector<32x64xbf16>, vector<2x64xf32> -> vector<2x64xf32>
    %28 = arith.addf %22, %27 : vector<2x64xf32>
    %c0_38 = arith.constant 0 : index
    %c1_39 = arith.constant 1 : index
    %c0_40 = arith.constant 0 : index
    %c0_41 = arith.constant 0 : index
    %c16_42 = arith.constant 16 : index
    %29 = vector.load %arg1[%c0_38, %c1_39, %c0_40, %c0_41, %c16_42] : memref<1x2x2x3x48xbf16, #tpu.memory_space<vmem>>, vector<1x1x1x2x32xbf16>
    %30 = vector.shape_cast %29 : vector<1x1x1x2x32xbf16> to vector<2x32xbf16>
    %c5 = arith.constant 5 : index
    %c0_43 = arith.constant 0 : index
    %c0_44 = arith.constant 0 : index
    %31 = vector.load %arg2[%c5, %c0_43, %c0_44] : memref<9x32x64xbf16, #tpu.memory_space<vmem>>, vector<1x32x64xbf16>
    %32 = vector.shape_cast %31 : vector<1x32x64xbf16> to vector<32x64xbf16>
    %cst_45 = arith.constant dense<0.000000e+00> : vector<2x64xf32>
    %33 = tpu.matmul %30, %32, %cst_45 {dimension_numbers = #tpu.dot_dimension_numbers<[1], [0], [0], [1], [0, 0, 1, 1], [], []>} : vector<2x32xbf16>, vector<32x64xbf16>, vector<2x64xf32> -> vector<2x64xf32>
    %34 = arith.addf %28, %33 : vector<2x64xf32>
    %c0_46 = arith.constant 0 : index
    %c0_47 = arith.constant 0 : index
    %c0_48 = arith.constant 0 : index
    %c1_49 = arith.constant 1 : index
    %c0_50 = arith.constant 0 : index
    %35 = vector.load %arg1[%c0_46, %c0_47, %c0_48, %c1_49, %c0_50] : memref<1x2x2x3x48xbf16, #tpu.memory_space<vmem>>, vector<1x1x1x2x32xbf16>
    %36 = vector.shape_cast %35 : vector<1x1x1x2x32xbf16> to vector<2x32xbf16>
    %c6 = arith.constant 6 : index
    %c0_51 = arith.constant 0 : index
    %c0_52 = arith.constant 0 : index
    %37 = vector.load %arg2[%c6, %c0_51, %c0_52] : memref<9x32x64xbf16, #tpu.memory_space<vmem>>, vector<1x32x64xbf16>
    %38 = vector.shape_cast %37 : vector<1x32x64xbf16> to vector<32x64xbf16>
    %cst_53 = arith.constant dense<0.000000e+00> : vector<2x64xf32>
    %39 = tpu.matmul %36, %38, %cst_53 {dimension_numbers = #tpu.dot_dimension_numbers<[1], [0], [0], [1], [0, 0, 1, 1], [], []>} : vector<2x32xbf16>, vector<32x64xbf16>, vector<2x64xf32> -> vector<2x64xf32>
    %40 = arith.addf %34, %39 : vector<2x64xf32>
    %c0_54 = arith.constant 0 : index
    %c0_55 = arith.constant 0 : index
    %c1_56 = arith.constant 1 : index
    %c1_57 = arith.constant 1 : index
    %c0_58 = arith.constant 0 : index
    %41 = vector.load %arg1[%c0_54, %c0_55, %c1_56, %c1_57, %c0_58] : memref<1x2x2x3x48xbf16, #tpu.memory_space<vmem>>, vector<1x1x1x2x32xbf16>
    %42 = vector.shape_cast %41 : vector<1x1x1x2x32xbf16> to vector<2x32xbf16>
    %c7 = arith.constant 7 : index
    %c0_59 = arith.constant 0 : index
    %c0_60 = arith.constant 0 : index
    %43 = vector.load %arg2[%c7, %c0_59, %c0_60] : memref<9x32x64xbf16, #tpu.memory_space<vmem>>, vector<1x32x64xbf16>
    %44 = vector.shape_cast %43 : vector<1x32x64xbf16> to vector<32x64xbf16>
    %cst_61 = arith.constant dense<0.000000e+00> : vector<2x64xf32>
    %45 = tpu.matmul %42, %44, %cst_61 {dimension_numbers = #tpu.dot_dimension_numbers<[1], [0], [0], [1], [0, 0, 1, 1], [], []>} : vector<2x32xbf16>, vector<32x64xbf16>, vector<2x64xf32> -> vector<2x64xf32>
    %46 = arith.addf %40, %45 : vector<2x64xf32>
    %c0_62 = arith.constant 0 : index
    %c0_63 = arith.constant 0 : index
    %c0_64 = arith.constant 0 : index
    %c1_65 = arith.constant 1 : index
    %c16_66 = arith.constant 16 : index
    %47 = vector.load %arg1[%c0_62, %c0_63, %c0_64, %c1_65, %c16_66] : memref<1x2x2x3x48xbf16, #tpu.memory_space<vmem>>, vector<1x1x1x2x32xbf16>
    %48 = vector.shape_cast %47 : vector<1x1x1x2x32xbf16> to vector<2x32xbf16>
    %c8 = arith.constant 8 : index
    %c0_67 = arith.constant 0 : index
    %c0_68 = arith.constant 0 : index
    %49 = vector.load %arg2[%c8, %c0_67, %c0_68] : memref<9x32x64xbf16, #tpu.memory_space<vmem>>, vector<1x32x64xbf16>
    %50 = vector.shape_cast %49 : vector<1x32x64xbf16> to vector<32x64xbf16>
    %cst_69 = arith.constant dense<0.000000e+00> : vector<2x64xf32>
    %51 = tpu.matmul %48, %50, %cst_69 {dimension_numbers = #tpu.dot_dimension_numbers<[1], [0], [0], [1], [0, 0, 1, 1], [], []>} : vector<2x32xbf16>, vector<32x64xbf16>, vector<2x64xf32> -> vector<2x64xf32>
    %52 = arith.addf %46, %51 : vector<2x64xf32>
    %c0_70 = arith.constant 0 : index
    %c0_71 = arith.constant 0 : index
    %53 = vector.load %arg3[%c0_70, %c0_71] : memref<1x64xf32, #tpu.memory_space<vmem>>, vector<1x64xf32>
    %54 = vector.broadcast %53 : vector<1x64xf32> to vector<2x64xf32>
    %55 = arith.addf %52, %54 : vector<2x64xf32>
    %cst_72 = arith.constant 0.000000e+00 : f32
    %56 = vector.broadcast %cst_72 : f32 to vector<2x64xf32>
    %57 = arith.maximumf %55, %56 : vector<2x64xf32>
    %58 = arith.truncf %57 : vector<2x64xf32> to vector<2x64xbf16>
    %c0_73 = arith.constant 0 : index
    %c0_74 = arith.constant 0 : index
    %59 = vector.load %arg4[%c0_73, %c0_74] : memref<1x2xbf16, #tpu.memory_space<vmem>>, vector<1x2xbf16>
    %cst_75 = arith.constant dense<0.000000e+00> : vector<1x64xf32>
    %60 = tpu.matmul %59, %58, %cst_75 {dimension_numbers = #tpu.dot_dimension_numbers<[1], [0], [0], [1], [0, 0, 1, 1], [], []>} : vector<1x2xbf16>, vector<2x64xbf16>, vector<1x64xf32> -> vector<1x64xf32>
    %c0_76 = arith.constant 0 : index
    %c0_77 = arith.constant 0 : index
    %61 = vector.load %arg5[%c0_76, %c0_77] : memref<1x2xbf16, #tpu.memory_space<vmem>>, vector<1x2xbf16>
    %cst_78 = arith.constant dense<0.000000e+00> : vector<1x64xf32>
    %62 = tpu.matmul %61, %58, %cst_78 {dimension_numbers = #tpu.dot_dimension_numbers<[1], [0], [0], [1], [0, 0, 1, 1], [], []>} : vector<1x2xbf16>, vector<2x64xbf16>, vector<1x64xf32> -> vector<1x64xf32>
    %63 = arith.maximumf %60, %62 : vector<1x64xf32>
    %64 = arith.truncf %63 : vector<1x64xf32> to vector<1x64xbf16>
    %c0_79 = arith.constant 0 : index
    %c0_80 = arith.constant 0 : index
    %65 = vector.load %arg6[%c0_79, %c0_80] : memref<64x32xbf16, #tpu.memory_space<vmem>>, vector<64x32xbf16>
    %cst_81 = arith.constant dense<0.000000e+00> : vector<1x32xf32>
    %66 = tpu.matmul %64, %65, %cst_81 {dimension_numbers = #tpu.dot_dimension_numbers<[1], [0], [0], [1], [0, 0, 1, 1], [], []>} : vector<1x64xbf16>, vector<64x32xbf16>, vector<1x32xf32> -> vector<1x32xf32>
    %c0_82 = arith.constant 0 : index
    %c0_83 = arith.constant 0 : index
    %67 = vector.load %arg7[%c0_82, %c0_83] : memref<64x32xbf16, #tpu.memory_space<vmem>>, vector<64x32xbf16>
    %cst_84 = arith.constant dense<0.000000e+00> : vector<1x32xf32>
    %68 = tpu.matmul %64, %67, %cst_84 {dimension_numbers = #tpu.dot_dimension_numbers<[1], [0], [0], [1], [0, 0, 1, 1], [], []>} : vector<1x64xbf16>, vector<64x32xbf16>, vector<1x32xf32> -> vector<1x32xf32>
    %69 = arith.maximumf %66, %68 : vector<1x32xf32>
    %c0_85 = arith.constant 0 : index
    %c0_86 = arith.constant 0 : index
    %c0_87 = arith.constant 0 : index
    %70 = vector.load %arg8[%c0_85, %c0_86, %c0_87] : memref<1x1x32xf32, #tpu.memory_space<vmem>>, vector<1x1x32xf32>
    %71 = vector.shape_cast %70 : vector<1x1x32xf32> to vector<1x32xf32>
    %72 = vector.shape_cast %69 : vector<1x32xf32> to vector<1x1x32xf32>
    tpu.vector_store %arg8[%c0_85, %c0_86, %c0_87], %72 {strides = array<i32>} : memref<1x1x32xf32, #tpu.memory_space<vmem>>, vector<1x1x32xf32>,
    return
  }
  func.func @transform_0(%arg0: i32) -> (i32, i32, i32, i32, i32) {
    %c0_i32 = arith.constant 0 : i32
    %c0_i32_0 = arith.constant 0 : i32
    %c0_i32_1 = arith.constant 0 : i32
    %c0_i32_2 = arith.constant 0 : i32
    %c0_i32_3 = arith.constant 0 : i32
    return %arg0, %c0_i32, %c0_i32_0, %c0_i32_1, %c0_i32_2 : i32, i32, i32, i32, i32
  }
  func.func @transform_1(%arg0: i32) -> (i32, i32, i32) {
    %c0_i32 = arith.constant 0 : i32
    %c0_i32_0 = arith.constant 0 : i32
    %c0_i32_1 = arith.constant 0 : i32
    %c0_i32_2 = arith.constant 0 : i32
    return %c0_i32, %c0_i32_0, %c0_i32_1 : i32, i32, i32
  }
  func.func @transform_2(%arg0: i32) -> (i32, i32) {
    %c0_i32 = arith.constant 0 : i32
    %c0_i32_0 = arith.constant 0 : i32
    %c0_i32_1 = arith.constant 0 : i32
    return %c0_i32, %c0_i32_0 : i32, i32
  }
  func.func @transform_3(%arg0: i32) -> (i32, i32) {
    %c0_i32 = arith.constant 0 : i32
    %c0_i32_0 = arith.constant 0 : i32
    %c0_i32_1 = arith.constant 0 : i32
    return %c0_i32, %c0_i32_0 : i32, i32
  }
  func.func @transform_4(%arg0: i32) -> (i32, i32) {
    %c0_i32 = arith.constant 0 : i32
    %c0_i32_0 = arith.constant 0 : i32
    %c0_i32_1 = arith.constant 0 : i32
    return %c0_i32, %c0_i32_0 : i32, i32
  }
  func.func @transform_5(%arg0: i32) -> (i32, i32) {
    %c0_i32 = arith.constant 0 : i32
    %c0_i32_0 = arith.constant 0 : i32
    %c0_i32_1 = arith.constant 0 : i32
    return %c0_i32, %c0_i32_0 : i32, i32
  }
  func.func @transform_6(%arg0: i32) -> (i32, i32) {
    %c0_i32 = arith.constant 0 : i32
    %c0_i32_0 = arith.constant 0 : i32
    %c0_i32_1 = arith.constant 0 : i32
    return %c0_i32, %c0_i32_0 : i32, i32
  }
  func.func @transform_7(%arg0: i32) -> (i32, i32, i32) {
    %c0_i32 = arith.constant 0 : i32
    %c0_i32_0 = arith.constant 0 : i32
    %c0_i32_1 = arith.constant 0 : i32
    return %arg0, %c0_i32, %c0_i32_0 : i32, i32, i32
  }
}

</mosaic_0001>

<llo_original>
// kernel: tile.18
$region0: #{tile.18}
  #allocation0 [shape = 's32[1]{0}', space=sflag, size = 0x4, scoped, tag = 'scoped memory for tile.18']
  %s0 = inlined_call_operand.vmem [shape: f32[8], index: 0, kind: input, shape index: {}]
  %s1 = inlined_call_operand.vmem [shape: f32[32,8], index: 1, kind: output, shape index: {}]
  // Predicated region
  $region2: #{tile.18} parent=0 // pred_check
    _
  $region3: #{tile.18} parent=0 // pred_check_branch
    %3 = sbr.rel (0) target = $region5
  $region4: #{tile.18} parent=0 // pred_region
    _
  $region5: #{tile.18} parent=0 // pred_fallthru
    _
  %v4 = vld [vmem:[%s0] ss:$0 sm:$0xff]
  %5 = vst [vmem:[%s1] sm:$0xff] %v4
  %s6 = scalar_lea.vmem %s1, 8
  %7 = vst [vmem:[%s6] sm:$0xff] %v4
  %s8 = scalar_lea.vmem %s1, 16
  %9 = vst [vmem:[%s8] sm:$0xff] %v4
  %s10 = scalar_lea.vmem %s1, 24
  %11 = vst [vmem:[%s10] sm:$0xff] %v4

// kernel: tile.19
$region0: #{tile.19}
  %s0 = inlined_call_operand.vmem [shape: f32[32,8], index: 0, kind: input, shape index: {}]
  %s1 = inlined_call_operand.vmem [shape: f32[1,256], index: 1, kind: output, shape index: {}]
  $region1: #{tile.19} parent=0
    #allocation0 [shape = 'u8[8192]{0}', space=vmem, size = 0x2000, scoped, tag = 'scoped mem for output reshape']
    %s2 = smov 3
    %v3 = vld [vmem:[%s0] ss:$16 sm:%s2]
    %vm4 = vcmask 64512
    %5 = vst.msk [vmem:[#allocation0] ss:$8 sm:$0x3] %vm4, %v3
    %s6 = scalar_lea.vmem %s0, 15
    %s7 = smov 3
    %v8 = vld [vmem:[%s6] ss:$16 sm:%s7]
    %9 = vrot.lane.b32.xlu0 %v8, 120
    %v10 = vpop.permute.xlu0 %9
    %vm11 = vcmask 1048512
    %12 = vst.msk [vmem:[#allocation0] ss:$8 sm:$0x3] %vm11, %v10
    %s13 = scalar_lea.vmem %s0, 14
    %s14 = smov 3
    %v15 = vld [vmem:[%s13] ss:$16 sm:%s14]
    %16 = vrot.lane.b32.xlu0 %v15, 112
    %v17 = vpop.permute.xlu0 %16
    %vm18 = vcmask 982912
    %19 = vst.msk [vmem:[#allocation0] ss:$8 sm:$0x3] %vm18, %v17
    %s20 = scalar_lea.vmem %s0, 13
    %s21 = smov 3
    %v22 = vld [vmem:[%s20] ss:$16 sm:%s21]
    %23 = vrot.lane.b32.xlu0 %v22, 104
    %v24 = vpop.permute.xlu0 %23
    %vm25 = vcmask 917312
    %26 = vst.msk [vmem:[#allocation0] ss:$8 sm:$0x3] %vm25, %v24
    %s27 = scalar_lea.vmem %s0, 12
    %s28 = smov 3
    %v29 = vld [vmem:[%s27] ss:$16 sm:%s28]
    %30 = vrot.lane.b32.xlu0 %v29, 96
    %v31 = vpop.permute.xlu0 %30
    %vm32 = vcmask 851712
    %33 = vst.msk [vmem:[#allocation0] ss:$8 sm:$0x3] %vm32, %v31
    %s34 = scalar_lea.vmem %s0, 11
    %s35 = smov 3
    %v36 = vld [vmem:[%s34] ss:$16 sm:%s35]
    %37 = vrot.lane.b32.xlu0 %v36, 88
    %v38 = vpop.permute.xlu0 %37
    %vm39 = vcmask 786112
    %40 = vst.msk [vmem:[#allocation0] ss:$8 sm:$0x3] %vm39, %v38
    %s41 = scalar_lea.vmem %s0, 10
    %s42 = smov 3
    %v43 = vld [vmem:[%s41] ss:$16 sm:%s42]
    %44 = vrot.lane.b32.xlu0 %v43, 80
    %v45 = vpop.permute.xlu0 %44
    %vm46 = vcmask 720512
    %47 = vst.msk [vmem:[#allocation0] ss:$8 sm:$0x3] %vm46, %v45
    %s48 = scalar_lea.vmem %s0, 9
    %s49 = smov 3
    %v50 = vld [vmem:[%s48] ss:$16 sm:%s49]
    %51 = vrot.lane.b32.xlu0 %v50, 72
    %v52 = vpop.permute.xlu0 %51
    %vm53 = vcmask 654912
    %54 = vst.msk [vmem:[#allocation0] ss:$8 sm:$0x3] %vm53, %v52
    %s55 = scalar_lea.vmem %s0, 8
    %s56 = smov 3
    %v57 = vld [vmem:[%s55] ss:$16 sm:%s56]
    %58 = vrot.lane.b32.xlu0 %v57, 64
    %v59 = vpop.permute.xlu0 %58
    %vm60 = vcmask 589312
    %61 = vst.msk [vmem:[#allocation0] ss:$8 sm:$0x3] %vm60, %v59
    %s62 = scalar_lea.vmem %s0, 7
    %s63 = smov 3
    %v64 = vld [vmem:[%s62] ss:$16 sm:%s63]
    %65 = vrot.lane.b32.xlu0 %v64, 56
    %v66 = vpop.permute.xlu0 %65
    %vm67 = vcmask 523712
    %68 = vst.msk [vmem:[#allocation0] ss:$8 sm:$0x3] %vm67, %v66
    %s69 = scalar_lea.vmem %s0, 6
    %s70 = smov 3
    %v71 = vld [vmem:[%s69] ss:$16 sm:%s70]
    %72 = vrot.lane.b32.xlu0 %v71, 48
    %v73 = vpop.permute.xlu0 %72
    %vm74 = vcmask 458112
    %75 = vst.msk [vmem:[#allocation0] ss:$8 sm:$0x3] %vm74, %v73
    %s76 = scalar_lea.vmem %s0, 5
    %s77 = smov 3
    %v78 = vld [vmem:[%s76] ss:$16 sm:%s77]
    %79 = vrot.lane.b32.xlu0 %v78, 40
    %v80 = vpop.permute.xlu0 %79
    %vm81 = vcmask 392512
    %82 = vst.msk [vmem:[#allocation0] ss:$8 sm:$0x3] %vm81, %v80
    %s83 = scalar_lea.vmem %s0, 4
    %s84 = smov 3
    %v85 = vld [vmem:[%s83] ss:$16 sm:%s84]
    %86 = vrot.lane.b32.xlu0 %v85, 32
    %v87 = vpop.permute.xlu0 %86
    %vm88 = vcmask 326912
    %89 = vst.msk [vmem:[#allocation0] ss:$8 sm:$0x3] %vm88, %v87
    %s90 = scalar_lea.vmem %s0, 3
    %s91 = smov 3
    %v92 = vld [vmem:[%s90] ss:$16 sm:%s91]
    %93 = vrot.lane.b32.xlu0 %v92, 24
    %v94 = vpop.permute.xlu0 %93
    %vm95 = vcmask 261312
    %96 = vst.msk [vmem:[#allocation0] ss:$8 sm:$0x3] %vm95, %v94
    %s97 = scalar_lea.vmem %s0, 2
    %s98 = smov 3
    %v99 = vld [vmem:[%s97] ss:$16 sm:%s98]
    %100 = vrot.lane.b32.xlu0 %v99, 16
    %v101 = vpop.permute.xlu0 %100
    %vm102 = vcmask 195712
    %103 = vst.msk [vmem:[#allocation0] ss:$8 sm:$0x3] %vm102, %v101
    %s104 = scalar_lea.vmem %s0, 1
    %s105 = smov 3
    %v106 = vld [vmem:[%s104] ss:$16 sm:%s105]
    %107 = vrot.lane.b32.xlu0 %v106, 8
    %v108 = vpop.permute.xlu0 %107
    %vm109 = vcmask 130112
    %110 = vst.msk [vmem:[#allocation0] ss:$8 sm:$0x3] %vm109, %v108
    %s112 = sshll.u32 1, 1
    %s113 = ssub.s32 %s112, 1
    %v115 = vld [vmem:[#allocation0] sm:%s113]
    %s116 = sshll.u32 1, 1
    %s117 = ssub.s32 %s116, 1
    %118 = vst [vmem:[%s1] sm:%s117] %v115
    %s119 = scalar_lea.vmem [#allocation0], 8
    %v120 = vld [vmem:[%s119] sm:%s113]
    %s121 = sshll.u32 1, 1
    %s122 = ssub.s32 %s121, 1
    %s123 = scalar_lea.vmem %s1, 1
    %124 = vst [vmem:[%s123] sm:%s122] %v120

// kernel: image_model_forward.3
$region0: #{image_model_forward.3}
  #allocation0 [shape = 'u32[]', space=smem, size = 0x4, offset = 0x4, fixed_abs, tag = 'smem constant byte address 0x4 - core index']
  #allocation1 [shape = 'u32[144,128]{1,0:T(1,128)}', space=vmem, size = 0x12000, scoped, tag = 'internal scratch']
  %s0 = inlined_call_operand.vmem [shape: bf16[2,2,2,33,99], index: 0, kind: input, shape index: {}]
  %s1 = inlined_call_operand.vmem [shape: bf16[9,96,256], index: 1, kind: input, shape index: {}]
  %s2 = inlined_call_operand.vmem [shape: f32[1,256], index: 2, kind: input, shape index: {}]
  %s3 = inlined_call_operand.vmem [shape: bf16[16,32], index: 3, kind: input, shape index: {}]
  %s4 = inlined_call_operand.vmem [shape: bf16[16,32], index: 4, kind: input, shape index: {}]
  %s5 = inlined_call_operand.vmem [shape: bf16[256,128], index: 5, kind: input, shape index: {}]
  %s6 = inlined_call_operand.vmem [shape: bf16[256,128], index: 6, kind: input, shape index: {}]
  %s7 = inlined_call_operand.vmem [shape: bf16[2,16,128], index: 7, kind: output, shape index: {}]
  %s8 = sld [smem:[#allocation0]]
  $region61: #{image_model_forward.3} parent=0
    _
  %s10 = ssub.s32 1, %s8
  %s11 = scalar_select 0, %s10, %s8
  loop: start=0, step=1, limit=4
  $region2: #{image_model_forward.3} parent=0 // loop_pre_header
    _
  $region3: #{image_model_forward.3} parent=0 // loop_header
    %s13 = sphi 0, %s17
    %p14 = scmp.ge.s32.totalorder %s13, 4
    %s23 = sphi 0, %s25
    %s26 = sphi 0, %s23
    %s27 = sphi 0, %s26
    %s43 = sphi 0, %s27
    %s47 = sphi 0, %s47
    %s49 = sphi 0, %s47
    %s50 = sphi 0, %s49
    %s64 = sphi 0, %s50
    %s68 = sphi 0, %s68
    %s70 = sphi 0, %s68
    %s71 = sphi 0, %s70
    %s85 = sphi 0, %s71
    %s89 = sphi 0, %s89
    %s91 = sphi 0, %s89
    %s92 = sphi 0, %s91
    %s106 = sphi 0, %s92
    %s110 = sphi 0, %s110
    %s112 = sphi 0, %s110
    %s113 = sphi 0, %s112
    %s127 = sphi 0, %s113
    %s131 = sphi 0, %s131
    %s133 = sphi 0, %s131
    %s134 = sphi 0, %s133
    %s148 = sphi 0, %s134
    %s152 = sphi 0, %s152
    %s154 = sphi 0, %s152
    %s155 = sphi 0, %s154
    %s169 = sphi 0, %s155
    %s175 = sphi 0, %s177
    %s178 = sphi 0, %s175
    %s179 = sphi 0, %s178
    %s195 = sphi 0, %s179
  $region4: #{image_model_forward.3} parent=0 // loop_header_branch
    %16 = sbr.rel (%p14) target = $region8
  $region5: #{image_model_forward.3} parent=0 // loop_body
    %s18 = ssub.s32 %s13, 1
    %s19 = ssub.s32 %s13, 2
    %s20 = sadd.s32 %s13, 1
    %s21 = ssub.s32 %s13, %s20
    %p22 = scmp.eq.s32.totalorder %s21, 0
    %s24 = sadd.s32 %s23, 1
    %s25 = scalar_select %p22, %s23, %s24
    %p28 = pneg %p22
    %p29 = scmp.eq.s32.totalorder %s13, 1
    %p30 = por %p28, %p29
    %p31 = scmp.ne.s32.totalorder %s23, %s26
    %p32 = scmp.eq.s32.totalorder %s13, 0
    %p33 = por %p31, %p32
    %p34 = scmp.ne.s32.totalorder %s23, %s26
    %p35 = scmp.eq.s32.totalorder %s18, 1
    %p36 = por %p34, %p35
    %p37 = scmp.ne.s32.totalorder %s26, %s27
    %p38 = scmp.eq.s32.totalorder %s18, 0
    %p39 = por %p37, %p38
    %p40 = scmp.ne.s32.totalorder %s26, %s27
    %p41 = scmp.eq.s32.totalorder %s19, 1
    %p42 = por %p40, %p41
    %p44 = scmp.ne.s32.totalorder %s27, %s43
    %p45 = scmp.eq.s32.totalorder %s19, 0
    %p46 = por %p44, %p45
    %s48 = sadd.s32 %s47, 1
    %p51 = scmp.eq.s32.totalorder %s13, 1
    %p52 = scmp.ne.s32.totalorder %s47, %s49
    %p53 = scmp.eq.s32.totalorder %s13, 0
    %p54 = por %p52, %p53
    %p55 = scmp.ne.s32.totalorder %s47, %s49
    %p56 = scmp.eq.s32.totalorder %s18, 1
    %p57 = por %p55, %p56
    %p58 = scmp.ne.s32.totalorder %s49, %s50
    %p59 = scmp.eq.s32.totalorder %s18, 0
    %p60 = por %p58, %p59
    %p61 = scmp.ne.s32.totalorder %s49, %s50
    %p62 = scmp.eq.s32.totalorder %s19, 1
    %p63 = por %p61, %p62
    %p65 = scmp.ne.s32.totalorder %s50, %s64
    %p66 = scmp.eq.s32.totalorder %s19, 0
    %p67 = por %p65, %p66
    %s69 = sadd.s32 %s68, 1
    %p72 = scmp.eq.s32.totalorder %s13, 1
    %p73 = scmp.ne.s32.totalorder %s68, %s70
    %p74 = scmp.eq.s32.totalorder %s13, 0
    %p75 = por %p73, %p74
    %p76 = scmp.ne.s32.totalorder %s68, %s70
    %p77 = scmp.eq.s32.totalorder %s18, 1
    %p78 = por %p76, %p77
    %p79 = scmp.ne.s32.totalorder %s70, %s71
    %p80 = scmp.eq.s32.totalorder %s18, 0
    %p81 = por %p79, %p80
    %p82 = scmp.ne.s32.totalorder %s70, %s71
    %p83 = scmp.eq.s32.totalorder %s19, 1
    %p84 = por %p82, %p83
    %p86 = scmp.ne.s32.totalorder %s71, %s85
    %p87 = scmp.eq.s32.totalorder %s19, 0
    %p88 = por %p86, %p87
    %s90 = sadd.s32 %s89, 1
    %p93 = scmp.eq.s32.totalorder %s13, 1
    %p94 = scmp.ne.s32.totalorder %s89, %s91
    %p95 = scmp.eq.s32.totalorder %s13, 0
    %p96 = por %p94, %p95
    %p97 = scmp.ne.s32.totalorder %s89, %s91
    %p98 = scmp.eq.s32.totalorder %s18, 1
    %p99 = por %p97, %p98
    %p100 = scmp.ne.s32.totalorder %s91, %s92
    %p101 = scmp.eq.s32.totalorder %s18, 0
    %p102 = por %p100, %p101
    %p103 = scmp.ne.s32.totalorder %s91, %s92
    %p104 = scmp.eq.s32.totalorder %s19, 1
    %p105 = por %p103, %p104
    %p107 = scmp.ne.s32.totalorder %s92, %s106
    %p108 = scmp.eq.s32.totalorder %s19, 0
    %p109 = por %p107, %p108
    %s111 = sadd.s32 %s110, 1
    %p114 = scmp.eq.s32.totalorder %s13, 1
    %p115 = scmp.ne.s32.totalorder %s110, %s112
    %p116 = scmp.eq.s32.totalorder %s13, 0
    %p117 = por %p115, %p116
    %p118 = scmp.ne.s32.totalorder %s110, %s112
    %p119 = scmp.eq.s32.totalorder %s18, 1
    %p120 = por %p118, %p119
    %p121 = scmp.ne.s32.totalorder %s112, %s113
    %p122 = scmp.eq.s32.totalorder %s18, 0
    %p123 = por %p121, %p122
    %p124 = scmp.ne.s32.totalorder %s112, %s113
    %p125 = scmp.eq.s32.totalorder %s19, 1
    %p126 = por %p124, %p125
    %p128 = scmp.ne.s32.totalorder %s113, %s127
    %p129 = scmp.eq.s32.totalorder %s19, 0
    %p130 = por %p128, %p129
    %s132 = sadd.s32 %s131, 1
    %p135 = scmp.eq.s32.totalorder %s13, 1
    %p136 = scmp.ne.s32.totalorder %s131, %s133
    %p137 = scmp.eq.s32.totalorder %s13, 0
    %p138 = por %p136, %p137
    %p139 = scmp.ne.s32.totalorder %s131, %s133
    %p140 = scmp.eq.s32.totalorder %s18, 1
    %p141 = por %p139, %p140
    %p142 = scmp.ne.s32.totalorder %s133, %s134
    %p143 = scmp.eq.s32.totalorder %s18, 0
    %p144 = por %p142, %p143
    %p145 = scmp.ne.s32.totalorder %s133, %s134
    %p146 = scmp.eq.s32.totalorder %s19, 1
    %p147 = por %p145, %p146
    %p149 = scmp.ne.s32.totalorder %s134, %s148
    %p150 = scmp.eq.s32.totalorder %s19, 0
    %p151 = por %p149, %p150
    %s153 = sadd.s32 %s152, 1
    %p156 = scmp.eq.s32.totalorder %s13, 1
    %p157 = scmp.ne.s32.totalorder %s152, %s154
    %p158 = scmp.eq.s32.totalorder %s13, 0
    %p159 = por %p157, %p158
    %p160 = scmp.ne.s32.totalorder %s152, %s154
    %p161 = scmp.eq.s32.totalorder %s18, 1
    %p162 = por %p160, %p161
    %p163 = scmp.ne.s32.totalorder %s154, %s155
    %p164 = scmp.eq.s32.totalorder %s18, 0
    %p165 = por %p163, %p164
    %p166 = scmp.ne.s32.totalorder %s154, %s155
    %p167 = scmp.eq.s32.totalorder %s19, 1
    %p168 = por %p166, %p167
    %p170 = scmp.ne.s32.totalorder %s155, %s169
    %p171 = scmp.eq.s32.totalorder %s19, 0
    %p172 = por %p170, %p171
    %s173 = ssub.s32 %s13, %s20
    %p174 = scmp.eq.s32.totalorder %s173, 0
    %s176 = sadd.s32 %s175, 1
    %s177 = scalar_select %p174, %s175, %s176
    %p180 = pneg %p174
    %p181 = scmp.eq.s32.totalorder %s13, 1
    %p182 = por %p180, %p181
    %p183 = scmp.ne.s32.totalorder %s175, %s178
    %p184 = scmp.eq.s32.totalorder %s13, 0
    %p185 = por %p183, %p184
    %p186 = scmp.ne.s32.totalorder %s175, %s178
    %p187 = scmp.eq.s32.totalorder %s18, 1
    %p188 = por %p186, %p187
    %p189 = scmp.ne.s32.totalorder %s178, %s179
    %p190 = scmp.eq.s32.totalorder %s18, 0
    %p191 = por %p189, %p190
    %p192 = scmp.ne.s32.totalorder %s178, %s179
    %p193 = scmp.eq.s32.totalorder %s19, 1
    %p194 = por %p192, %p193
    %p196 = scmp.ne.s32.totalorder %s179, %s195
    %p197 = scmp.eq.s32.totalorder %s19, 0
    %p198 = por %p196, %p197
    %p199 = scmp.le.s32.totalorder 1, %s13
    %p200 = scmp.lt.s32.totalorder %s13, 3
    %p201 = pnand %p199, %p200
    %p202 = pneg %p201
    // Predicated region
    $region9: #{image_model_forward.3} parent=5 // pred_check
      _
    $region10: #{image_model_forward.3} parent=5 // pred_check_branch
      %204 = sbr.rel (%p201) target = $region12
    $region11: #{image_model_forward.3} parent=5 // pred_region
      %s205 = ssub.s32 %s13, 1
      // Predicated region
      $region13: #{image_model_forward.3} parent=11 // pred_check
        %p206 = pneg %p60
      $region14: #{image_model_forward.3} parent=11 // pred_check_branch
        %208 = sbr.rel (%p206) target = $region16
      $region15: #{image_model_forward.3} parent=11 // pred_region
        _
      $region16: #{image_model_forward.3} parent=11 // pred_fallthru
        _
      // Predicated region
      $region17: #{image_model_forward.3} parent=11 // pred_check
        %p209 = pneg %p81
      $region18: #{image_model_forward.3} parent=11 // pred_check_branch
        %211 = sbr.rel (%p209) target = $region20
      $region19: #{image_model_forward.3} parent=11 // pred_region
        _
      $region20: #{image_model_forward.3} parent=11 // pred_fallthru
        _
      // Predicated region
      $region21: #{image_model_forward.3} parent=11 // pred_check
        %p212 = pneg %p102
      $region22: #{image_model_forward.3} parent=11 // pred_check_branch
        %214 = sbr.rel (%p212) target = $region24
      $region23: #{image_model_forward.3} parent=11 // pred_region
        _
      $region24: #{image_model_forward.3} parent=11 // pred_fallthru
        _
      // Predicated region
      $region25: #{image_model_forward.3} parent=11 // pred_check
        %p215 = pneg %p123
      $region26: #{image_model_forward.3} parent=11 // pred_check_branch
        %217 = sbr.rel (%p215) target = $region28
      $region27: #{image_model_forward.3} parent=11 // pred_region
        _
      $region28: #{image_model_forward.3} parent=11 // pred_fallthru
        _
      // Predicated region
      $region29: #{image_model_forward.3} parent=11 // pred_check
        %p218 = pneg %p144
      $region30: #{image_model_forward.3} parent=11 // pred_check_branch
        %220 = sbr.rel (%p218) target = $region32
      $region31: #{image_model_forward.3} parent=11 // pred_region
        _
      $region32: #{image_model_forward.3} parent=11 // pred_fallthru
        _
      // Predicated region
      $region33: #{image_model_forward.3} parent=11 // pred_check
        %p221 = pneg %p165
      $region34: #{image_model_forward.3} parent=11 // pred_check_branch
        %223 = sbr.rel (%p221) target = $region36
      $region35: #{image_model_forward.3} parent=11 // pred_region
        _
      $region36: #{image_model_forward.3} parent=11 // pred_fallthru
        _
    $region12: #{image_model_forward.3} parent=5 // pred_fallthru
      _
    %p224 = scmp.lt.s32.totalorder %s13, 2
    // Predicated region
    $region37: #{image_model_forward.3} parent=5 // pred_check
      %p225 = pneg %p224
    $region38: #{image_model_forward.3} parent=5 // pred_check_branch
      %227 = sbr.rel (%p225) target = $region40
    $region39: #{image_model_forward.3} parent=5 // pred_region
      // Predicated region
      $region41: #{image_model_forward.3} parent=39 // pred_check
        %p228 = pneg %p33
      $region42: #{image_model_forward.3} parent=39 // pred_check_branch
        %230 = sbr.rel (%p228) target = $region44
      $region43: #{image_model_forward.3} parent=39 // pred_region
        %p231 = scmp.lt.s32.totalorder %s13, 1
        %s232 = scalar_select %p231, %s13, 1
        %s233 = smul.addr %s232, 20
        %s234 = smul.addr %s233, 4
        %s235 = scalar_lea.vmem %s0, %s234
      $region44: #{image_model_forward.3} parent=39 // pred_fallthru
        _
    $region40: #{image_model_forward.3} parent=5 // pred_fallthru
      _
    %p236 = scmp.le.s32.totalorder 1, %s13
    %p237 = scmp.lt.s32.totalorder %s13, 3
    %p238 = pnand %p236, %p237
    %p239 = pneg %p238
    // Predicated region
    $region45: #{image_model_forward.3} parent=5 // pred_check
      _
    $region46: #{image_model_forward.3} parent=5 // pred_check_branch
      %241 = sbr.rel (%p238) target = $region48
    $region47: #{image_model_forward.3} parent=5 // pred_region
      %s242 = ssub.s32 %s13, 1
      %p243 = scmp.lt.s32.totalorder %s18, 1
      %s244 = scalar_select %p243, %s18, 1
      %s245 = smul.addr %s244, 20
      %s246 = smul.addr %s245, 4
      %s247 = scalar_lea.vmem %s0, %s246
      %p248 = pneg %p39
      %p249 = pneg %p36
      %p250 = pneg %p60
      %p251 = pneg %p57
      %p252 = pneg %p81
      %p253 = pneg %p78
      %p254 = pneg %p102
      %p255 = pneg %p99
      %p256 = pneg %p123
      %p257 = pneg %p120
      %p258 = pneg %p144
      %p259 = pneg %p141
      %p260 = pneg %p165
      %p261 = pneg %p162
      %p262 = pneg %p191
      %p263 = pneg %p188
      %p264 = scmp.lt.s32.totalorder %s18, 1
      %s265 = scalar_select %p264, %s18, 1
      %s266 = smul.addr %s265, 2
      %s267 = smul.addr %s266, 4
      %s268 = scalar_lea.vmem %s7, %s267
      %p269 = scmp.lt.s32.totalorder %s18, 1
      %s270 = scalar_select %p269, %s18, 1
      %s271 = smul.addr %s270, 20
      %s272 = smul.addr %s271, 4
      %s273 = scalar_lea.vmem %s0, %s272
      %p274 = scmp.lt.s32.totalorder %s18, 1
      %s275 = scalar_select %p274, %s18, 1
      %s276 = smul.addr %s275, 2
      %s277 = smul.addr %s276, 4
      %s278 = scalar_lea.vmem %s7, %s277
      %v280 = vld [vmem:[%s273] sm:$0xf]
      %v281 = vld [vmem:[%s273 + $0x4] sm:$0xf]
      %v282 = vld [vmem:[%s273 + $0x8] sm:$0xf]
      %v283 = vld [vmem:[%s273 + $0xc] sm:$0xf]
      %v284 = vld [vmem:[%s1] sm:$0xff]
      %v285 = vld [vmem:[%s1 + $0x8] sm:$0xff]
      %v286 = vld [vmem:[%s1 + $0x10] sm:$0xff]
      %v287 = vld [vmem:[%s1 + $0x18] sm:$0xff]
      %v288 = vld [vmem:[%s1 + $0x20] sm:$0xff]
      %v289 = vld [vmem:[%s1 + $0x28] sm:$0xff]
      %v290 = vld [vmem:[%s1 + $0x30] sm:$0xff]
      %v291 = vld [vmem:[%s1 + $0x38] sm:$0xff]
      %v292 = vld [vmem:[%s1 + $0x40] sm:$0xff]
      %v293 = vld [vmem:[%s1 + $0x48] sm:$0xff]
      %v294 = vld [vmem:[%s1 + $0x50] sm:$0xff]
      %v295 = vld [vmem:[%s1 + $0x58] sm:$0xff]
      %s296 = scalar_lea.vmem %s273, 20
      %v297 = vld [vmem:[%s296] sm:$0xf]
      %v298 = vld [vmem:[%s296 + $0x4] sm:$0xf]
      %v299 = vld [vmem:[%s296 + $0x8] sm:$0xf]
      %v300 = vld [vmem:[%s296 + $0xc] sm:$0xf]
      %s301 = scalar_lea.vmem %s1, 96
      %v302 = vld [vmem:[%s301] sm:$0xff]
      %v303 = vld [vmem:[%s301 + $0x8] sm:$0xff]
      %v304 = vld [vmem:[%s301 + $0x10] sm:$0xff]
      %v305 = vld [vmem:[%s301 + $0x18] sm:$0xff]
      %v306 = vld [vmem:[%s301 + $0x20] sm:$0xff]
      %v307 = vld [vmem:[%s301 + $0x28] sm:$0xff]
      %v308 = vld [vmem:[%s301 + $0x30] sm:$0xff]
      %v309 = vld [vmem:[%s301 + $0x38] sm:$0xff]
      %v310 = vld [vmem:[%s301 + $0x40] sm:$0xff]
      %v311 = vld [vmem:[%s301 + $0x48] sm:$0xff]
      %v312 = vld [vmem:[%s301 + $0x50] sm:$0xff]
      %v313 = vld [vmem:[%s301 + $0x58] sm:$0xff]
      %v318 = vunpack.c.l.b16 %v297
      %v319 = vunpack.c.l.b16 %v298
      %v320 = vunpack.c.l.b16 %v299
      %v321 = vunpack.c.l.b16 %v300
      %v322 = vpack.c.b16 %v319, %v318
      %v323 = vpack.c.b16 %v321, %v320
      %v336 = vunpack.c.l.b16 %v302
      %v337 = vunpack.c.h.b16 %v302
      %v338 = vunpack.c.l.b16 %v303
      %v339 = vunpack.c.h.b16 %v303
      %v340 = vunpack.c.l.b16 %v304
      %v341 = vunpack.c.h.b16 %v304
      %v342 = vunpack.c.l.b16 %v305
      %v343 = vunpack.c.h.b16 %v305
      %v344 = vunpack.c.l.b16 %v306
      %v345 = vunpack.c.h.b16 %v306
      %v346 = vunpack.c.l.b16 %v307
      %v347 = vunpack.c.h.b16 %v307
      %v348 = vunpack.c.l.b16 %v308
      %v349 = vunpack.c.h.b16 %v308
      %v350 = vunpack.c.l.b16 %v309
      %v351 = vunpack.c.h.b16 %v309
      %v352 = vunpack.c.l.b16 %v310
      %v353 = vunpack.c.h.b16 %v310
      %v354 = vunpack.c.l.b16 %v311
      %v355 = vunpack.c.h.b16 %v311
      %v356 = vunpack.c.l.b16 %v312
      %v357 = vunpack.c.h.b16 %v312
      %v358 = vunpack.c.l.b16 %v313
      %v359 = vunpack.c.h.b16 %v313
      %v360 = vpack.c.b16 %v338, %v336
      %v361 = vpack.c.b16 %v339, %v337
      %v362 = vpack.c.b16 %v342, %v340
      %v363 = vpack.c.b16 %v343, %v341
      %v364 = vpack.c.b16 %v346, %v344
      %v365 = vpack.c.b16 %v347, %v345
      %v366 = vpack.c.b16 %v350, %v348
      %v367 = vpack.c.b16 %v351, %v349
      %v368 = vpack.c.b16 %v354, %v352
      %v369 = vpack.c.b16 %v355, %v353
      %v370 = vpack.c.b16 %v358, %v356
      %v371 = vpack.c.b16 %v359, %v357
      %vm384 = vcmask 785408
      %v386 = vsel %vm384, %v322, 0
      %v389 = vsel %vm384, %v323, 0
      %391 = vmatprep.subr.bf16.mxu0 0
      %392 = vmatpush1.bf16.msra.mxu0 0
      %393 = vmatprep.subr.bf16.mxu0 0
      %394 = vmatpush1.bf16.msra.mxu0 0
      %395 = vmatprep.subr.bf16.mxu0 %v371
      %396 = vmatpush1.bf16.msra.mxu0 %v370
      %397 = vmatprep.subr.bf16.mxu0 %v369
      %398 = vmatpush1.bf16.msra.mxu0 %v368
      %399 = vmatprep.subr.bf16.mxu0 %v367
      %400 = vmatpush1.bf16.msra.mxu0 %v366
      %401 = vmatprep.subr.bf16.mxu0 %v365
      %402 = vmatpush1.bf16.msra.mxu0 %v364
      %403 = vmatprep.subr.bf16.mxu0 %v363
      %404 = vmatpush1.bf16.msra.mxu0 %v362
      %405 = vmatprep.subr.bf16.mxu0 %v361
      %406 = vmatpush1.bf16.msra.mxu0 %v360
      %407 = vmatprep.subr.bf16.mxu0 0
      %408 = vmatpush2.bf16.msra.mxu0 0
      %409 = vmatprep.subr.bf16.mxu0 0
      %410 = vmatpush2.bf16.msra.mxu0 0
      %411 = vmatprep.subr.bf16.mxu0 0
      %412 = vmatpush2.bf16.msra.mxu0 0
      %413 = vmatprep.subr.bf16.mxu0 0
      %414 = vmatpush2.bf16.msra.mxu0 0
      %415 = vmatprep.subr.bf16.mxu0 0
      %416 = vmatpush2.bf16.msra.mxu0 0
      %417 = vmatprep.subr.bf16.mxu0 0
      %418 = vmatpush2.bf16.msra.mxu0 0
      %419 = vmatprep.subr.bf16.mxu0 0
      %420 = vmatpush2.bf16.msra.mxu0 0
      %421 = vmatprep.subr.bf16.mxu0 0
      %422 = vmatpush2.bf16.msra.mxu0 0
      %423 = vmatprep.mubr.bf16.mxu0 0
      %424 = vmatmul.mubr.bf16.gmra.mxu0 %v386
      %v425 = vpop.f32.mrf.mxu0
      %v426 = vadd.f32 0.0, %v425
      %v427 = vpop.f32.mrf.mxu0
      %v428 = vadd.f32 0.0, %v427
      %v429 = vpop.f32.mrf.mxu0
      %v430 = vadd.f32 0.0, %v429
      %v431 = vpop.f32.mrf.mxu0
      %v432 = vadd.f32 0.0, %v431
      %433 = vmatprep.mubr.bf16.mxu0 0
      %434 = vmatmul.mubr.bf16.gmra.mxu0 %v389
      %v435 = vpop.f32.mrf.mxu0
      %v436 = vadd.f32 0.0, %v435
      %v437 = vpop.f32.mrf.mxu0
      %v438 = vadd.f32 0.0, %v437
      %v439 = vpop.f32.mrf.mxu0
      %v440 = vadd.f32 0.0, %v439
      %v441 = vpop.f32.mrf.mxu0
      %v442 = vadd.f32 0.0, %v441
      %443 = vdwg.mxu0
      %v448 = vunpack.c.l.b16 %v280
      %v449 = vunpack.c.l.b16 %v281
      %v450 = vunpack.c.l.b16 %v282
      %v451 = vunpack.c.l.b16 %v283
      %v452 = vpack.c.b16 %v449, %v448
      %v453 = vpack.c.b16 %v451, %v450
      %v466 = vunpack.c.l.b16 %v284
      %v467 = vunpack.c.h.b16 %v284
      %v468 = vunpack.c.l.b16 %v285
      %v469 = vunpack.c.h.b16 %v285
      %v470 = vunpack.c.l.b16 %v286
      %v471 = vunpack.c.h.b16 %v286
      %v472 = vunpack.c.l.b16 %v287
      %v473 = vunpack.c.h.b16 %v287
      %v474 = vunpack.c.l.b16 %v288
      %v475 = vunpack.c.h.b16 %v288
      %v476 = vunpack.c.l.b16 %v289
      %v477 = vunpack.c.h.b16 %v289
      %v478 = vunpack.c.l.b16 %v290
      %v479 = vunpack.c.h.b16 %v290
      %v480 = vunpack.c.l.b16 %v291
      %v481 = vunpack.c.h.b16 %v291
      %v482 = vunpack.c.l.b16 %v292
      %v483 = vunpack.c.h.b16 %v292
      %v484 = vunpack.c.l.b16 %v293
      %v485 = vunpack.c.h.b16 %v293
      %v486 = vunpack.c.l.b16 %v294
      %v487 = vunpack.c.h.b16 %v294
      %v488 = vunpack.c.l.b16 %v295
      %v489 = vunpack.c.h.b16 %v295
      %v490 = vpack.c.b16 %v468, %v466
      %v491 = vpack.c.b16 %v469, %v467
      %v492 = vpack.c.b16 %v472, %v470
      %v493 = vpack.c.b16 %v473, %v471
      %v494 = vpack.c.b16 %v476, %v474
      %v495 = vpack.c.b16 %v477, %v475
      %v496 = vpack.c.b16 %v480, %v478
      %v497 = vpack.c.b16 %v481, %v479
      %v498 = vpack.c.b16 %v484, %v482
      %v499 = vpack.c.b16 %v485, %v483
      %v500 = vpack.c.b16 %v488, %v486
      %v501 = vpack.c.b16 %v489, %v487
      %v515 = vsel %vm384, %v452, 0
      %v518 = vsel %vm384, %v453, 0
      %520 = vmatprep.subr.bf16.mxu0 0
      %521 = vmatpush1.bf16.msra.mxu0 0
      %522 = vmatprep.subr.bf16.mxu0 0
      %523 = vmatpush1.bf16.msra.mxu0 0
      %524 = vmatprep.subr.bf16.mxu0 %v501
      %525 = vmatpush1.bf16.msra.mxu0 %v500
      %526 = vmatprep.subr.bf16.mxu0 %v499
      %527 = vmatpush1.bf16.msra.mxu0 %v498
      %528 = vmatprep.subr.bf16.mxu0 %v497
      %529 = vmatpush1.bf16.msra.mxu0 %v496
      %530 = vmatprep.subr.bf16.mxu0 %v495
      %531 = vmatpush1.bf16.msra.mxu0 %v494
      %532 = vmatprep.subr.bf16.mxu0 %v493
      %533 = vmatpush1.bf16.msra.mxu0 %v492
      %534 = vmatprep.subr.bf16.mxu0 %v491
      %535 = vmatpush1.bf16.msra.mxu0 %v490
      %536 = vmatprep.subr.bf16.mxu0 0
      %537 = vmatpush2.bf16.msra.mxu0 0
      %538 = vmatprep.subr.bf16.mxu0 0
      %539 = vmatpush2.bf16.msra.mxu0 0
      %540 = vmatprep.subr.bf16.mxu0 0
      %541 = vmatpush2.bf16.msra.mxu0 0
      %542 = vmatprep.subr.bf16.mxu0 0
      %543 = vmatpush2.bf16.msra.mxu0 0
      %544 = vmatprep.subr.bf16.mxu0 0
      %545 = vmatpush2.bf16.msra.mxu0 0
      %546 = vmatprep.subr.bf16.mxu0 0
      %547 = vmatpush2.bf16.msra.mxu0 0
      %548 = vmatprep.subr.bf16.mxu0 0
      %549 = vmatpush2.bf16.msra.mxu0 0
      %550 = vmatprep.subr.bf16.mxu0 0
      %551 = vmatpush2.bf16.msra.mxu0 0
      %552 = vmatprep.mubr.bf16.mxu0 0
      %553 = vmatmul.mubr.bf16.gmra.mxu0 %v515
      %v554 = vpop.f32.mrf.mxu0
      %v555 = vadd.f32 %v426, %v554
      %v556 = vpop.f32.mrf.mxu0
      %v557 = vadd.f32 %v428, %v556
      %v558 = vpop.f32.mrf.mxu0
      %v559 = vadd.f32 %v430, %v558
      %v560 = vpop.f32.mrf.mxu0
      %v561 = vadd.f32 %v432, %v560
      %562 = vmatprep.mubr.bf16.mxu0 0
      %563 = vmatmul.mubr.bf16.gmra.mxu0 %v518
      %v564 = vpop.f32.mrf.mxu0
      %v565 = vadd.f32 %v436, %v564
      %v566 = vpop.f32.mrf.mxu0
      %v567 = vadd.f32 %v438, %v566
      %v568 = vpop.f32.mrf.mxu0
      %v569 = vadd.f32 %v440, %v568
      %v570 = vpop.f32.mrf.mxu0
      %v571 = vadd.f32 %v442, %v570
      %572 = vdwg.mxu0
      %s573 = scalar_lea.vmem %s1, 192
      %v574 = vld [vmem:[%s573] sm:$0xff]
      %v575 = vld [vmem:[%s573 + $0x8] sm:$0xff]
      %v576 = vld [vmem:[%s573 + $0x10] sm:$0xff]
      %v577 = vld [vmem:[%s573 + $0x18] sm:$0xff]
      %v578 = vld [vmem:[%s573 + $0x20] sm:$0xff]
      %v579 = vld [vmem:[%s573 + $0x28] sm:$0xff]
      %v580 = vld [vmem:[%s573 + $0x30] sm:$0xff]
      %v581 = vld [vmem:[%s573 + $0x38] sm:$0xff]
      %v582 = vld [vmem:[%s573 + $0x40] sm:$0xff]
      %v583 = vld [vmem:[%s573 + $0x48] sm:$0xff]
      %v584 = vld [vmem:[%s573 + $0x50] sm:$0xff]
      %v585 = vld [vmem:[%s573 + $0x58] sm:$0xff]
      %586 = vrot.lane.b32.xlu0 %v452, 125
      %v587 = vpop.permute.xlu0 %586
      %588 = vrot.lane.b32.xlu0 %v453, 125
      %v589 = vpop.permute.xlu0 %588
      %v602 = vunpack.c.l.b16 %v574
      %v603 = vunpack.c.h.b16 %v574
      %v604 = vunpack.c.l.b16 %v575
      %v605 = vunpack.c.h.b16 %v575
      %v606 = vunpack.c.l.b16 %v576
      %v607 = vunpack.c.h.b16 %v576
      %v608 = vunpack.c.l.b16 %v577
      %v609 = vunpack.c.h.b16 %v577
      %v610 = vunpack.c.l.b16 %v578
      %v611 = vunpack.c.h.b16 %v578
      %v612 = vunpack.c.l.b16 %v579
      %v613 = vunpack.c.h.b16 %v579
      %v614 = vunpack.c.l.b16 %v580
      %v615 = vunpack.c.h.b16 %v580
      %v616 = vunpack.c.l.b16 %v581
      %v617 = vunpack.c.h.b16 %v581
      %v618 = vunpack.c.l.b16 %v582
      %v619 = vunpack.c.h.b16 %v582
      %v620 = vunpack.c.l.b16 %v583
      %v621 = vunpack.c.h.b16 %v583
      %v622 = vunpack.c.l.b16 %v584
      %v623 = vunpack.c.h.b16 %v584
      %v624 = vunpack.c.l.b16 %v585
      %v625 = vunpack.c.h.b16 %v585
      %v626 = vpack.c.b16 %v604, %v602
      %v627 = vpack.c.b16 %v605, %v603
      %v628 = vpack.c.b16 %v608, %v606
      %v629 = vpack.c.b16 %v609, %v607
      %v630 = vpack.c.b16 %v612, %v610
      %v631 = vpack.c.b16 %v613, %v611
      %v632 = vpack.c.b16 %v616, %v614
      %v633 = vpack.c.b16 %v617, %v615
      %v634 = vpack.c.b16 %v620, %v618
      %v635 = vpack.c.b16 %v621, %v619
      %v636 = vpack.c.b16 %v624, %v622
      %v637 = vpack.c.b16 %v625, %v623
      %v651 = vsel %vm384, %v587, 0
      %v654 = vsel %vm384, %v589, 0
      %656 = vmatprep.subr.bf16.mxu0 0
      %657 = vmatpush1.bf16.msra.mxu0 0
      %658 = vmatprep.subr.bf16.mxu0 0
      %659 = vmatpush1.bf16.msra.mxu0 0
      %660 = vmatprep.subr.bf16.mxu0 %v637
      %661 = vmatpush1.bf16.msra.mxu0 %v636
      %662 = vmatprep.subr.bf16.mxu0 %v635
      %663 = vmatpush1.bf16.msra.mxu0 %v634
      %664 = vmatprep.subr.bf16.mxu0 %v633
      %665 = vmatpush1.bf16.msra.mxu0 %v632
      %666 = vmatprep.subr.bf16.mxu0 %v631
      %667 = vmatpush1.bf16.msra.mxu0 %v630
      %668 = vmatprep.subr.bf16.mxu0 %v629
      %669 = vmatpush1.bf16.msra.mxu0 %v628
      %670 = vmatprep.subr.bf16.mxu0 %v627
      %671 = vmatpush1.bf16.msra.mxu0 %v626
      %672 = vmatprep.subr.bf16.mxu0 0
      %673 = vmatpush2.bf16.msra.mxu0 0
      %674 = vmatprep.subr.bf16.mxu0 0
      %675 = vmatpush2.bf16.msra.mxu0 0
      %676 = vmatprep.subr.bf16.mxu0 0
      %677 = vmatpush2.bf16.msra.mxu0 0
      %678 = vmatprep.subr.bf16.mxu0 0
      %679 = vmatpush2.bf16.msra.mxu0 0
      %680 = vmatprep.subr.bf16.mxu0 0
      %681 = vmatpush2.bf16.msra.mxu0 0
      %682 = vmatprep.subr.bf16.mxu0 0
      %683 = vmatpush2.bf16.msra.mxu0 0
      %684 = vmatprep.subr.bf16.mxu0 0
      %685 = vmatpush2.bf16.msra.mxu0 0
      %686 = vmatprep.subr.bf16.mxu0 0
      %687 = vmatpush2.bf16.msra.mxu0 0
      %688 = vmatprep.mubr.bf16.mxu0 0
      %689 = vmatmul.mubr.bf16.gmra.mxu0 %v651
      %v690 = vpop.f32.mrf.mxu0
      %v691 = vadd.f32 0.0, %v690
      %v692 = vpop.f32.mrf.mxu0
      %v693 = vadd.f32 0.0, %v692
      %v694 = vpop.f32.mrf.mxu0
      %v695 = vadd.f32 0.0, %v694
      %v696 = vpop.f32.mrf.mxu0
      %v697 = vadd.f32 0.0, %v696
      %698 = vmatprep.mubr.bf16.mxu0 0
      %699 = vmatmul.mubr.bf16.gmra.mxu0 %v654
      %v700 = vpop.f32.mrf.mxu0
      %v701 = vadd.f32 0.0, %v700
      %v702 = vpop.f32.mrf.mxu0
      %v703 = vadd.f32 0.0, %v702
      %v704 = vpop.f32.mrf.mxu0
      %v705 = vadd.f32 0.0, %v704
      %v706 = vpop.f32.mrf.mxu0
      %v707 = vadd.f32 0.0, %v706
      %708 = vdwg.mxu0
      %v709 = vadd.f32 %v555, %v691
      %v710 = vadd.f32 %v557, %v693
      %v711 = vadd.f32 %v559, %v695
      %v712 = vadd.f32 %v561, %v697
      %v713 = vadd.f32 %v565, %v701
      %v714 = vadd.f32 %v567, %v703
      %v715 = vadd.f32 %v569, %v705
      %v716 = vadd.f32 %v571, %v707
      %s717 = scalar_lea.vmem %s273, 40
      %v718 = vld [vmem:[%s717] sm:$0xf]
      %v719 = vld [vmem:[%s717 + $0x4] sm:$0xf]
      %v720 = vld [vmem:[%s717 + $0x8] sm:$0xf]
      %v721 = vld [vmem:[%s717 + $0xc] sm:$0xf]
      %s722 = scalar_lea.vmem %s1, 288
      %v723 = vld [vmem:[%s722] sm:$0xff]
      %v724 = vld [vmem:[%s722 + $0x8] sm:$0xff]
      %v725 = vld [vmem:[%s722 + $0x10] sm:$0xff]
      %v726 = vld [vmem:[%s722 + $0x18] sm:$0xff]
      %v727 = vld [vmem:[%s722 + $0x20] sm:$0xff]
      %v728 = vld [vmem:[%s722 + $0x28] sm:$0xff]
      %v729 = vld [vmem:[%s722 + $0x30] sm:$0xff]
      %v730 = vld [vmem:[%s722 + $0x38] sm:$0xff]
      %v731 = vld [vmem:[%s722 + $0x40] sm:$0xff]
      %v732 = vld [vmem:[%s722 + $0x48] sm:$0xff]
      %v733 = vld [vmem:[%s722 + $0x50] sm:$0xff]
      %v734 = vld [vmem:[%s722 + $0x58] sm:$0xff]
      %v739 = vunpack.c.l.b16 %v718
      %v740 = vunpack.c.l.b16 %v719
      %v741 = vunpack.c.l.b16 %v720
      %v742 = vunpack.c.l.b16 %v721
      %v743 = vpack.c.b16 %v740, %v739
      %v744 = vpack.c.b16 %v742, %v741
      %v757 = vunpack.c.l.b16 %v723
      %v758 = vunpack.c.h.b16 %v723
      %v759 = vunpack.c.l.b16 %v724
      %v760 = vunpack.c.h.b16 %v724
      %v761 = vunpack.c.l.b16 %v725
      %v762 = vunpack.c.h.b16 %v725
      %v763 = vunpack.c.l.b16 %v726
      %v764 = vunpack.c.h.b16 %v726
      %v765 = vunpack.c.l.b16 %v727
      %v766 = vunpack.c.h.b16 %v727
      %v767 = vunpack.c.l.b16 %v728
      %v768 = vunpack.c.h.b16 %v728
      %v769 = vunpack.c.l.b16 %v729
      %v770 = vunpack.c.h.b16 %v729
      %v771 = vunpack.c.l.b16 %v730
      %v772 = vunpack.c.h.b16 %v730
      %v773 = vunpack.c.l.b16 %v731
      %v774 = vunpack.c.h.b16 %v731
      %v775 = vunpack.c.l.b16 %v732
      %v776 = vunpack.c.h.b16 %v732
      %v777 = vunpack.c.l.b16 %v733
      %v778 = vunpack.c.h.b16 %v733
      %v779 = vunpack.c.l.b16 %v734
      %v780 = vunpack.c.h.b16 %v734
      %v781 = vpack.c.b16 %v759, %v757
      %v782 = vpack.c.b16 %v760, %v758
      %v783 = vpack.c.b16 %v763, %v761
      %v784 = vpack.c.b16 %v764, %v762
      %v785 = vpack.c.b16 %v767, %v765
      %v786 = vpack.c.b16 %v768, %v766
      %v787 = vpack.c.b16 %v771, %v769
      %v788 = vpack.c.b16 %v772, %v770
      %v789 = vpack.c.b16 %v775, %v773
      %v790 = vpack.c.b16 %v776, %v774
      %v791 = vpack.c.b16 %v779, %v777
      %v792 = vpack.c.b16 %v780, %v778
      %v806 = vsel %vm384, %v743, 0
      %v809 = vsel %vm384, %v744, 0
      %811 = vmatprep.subr.bf16.mxu0 0
      %812 = vmatpush1.bf16.msra.mxu0 0
      %813 = vmatprep.subr.bf16.mxu0 0
      %814 = vmatpush1.bf16.msra.mxu0 0
      %815 = vmatprep.subr.bf16.mxu0 %v792
      %816 = vmatpush1.bf16.msra.mxu0 %v791
      %817 = vmatprep.subr.bf16.mxu0 %v790
      %818 = vmatpush1.bf16.msra.mxu0 %v789
      %819 = vmatprep.subr.bf16.mxu0 %v788
      %820 = vmatpush1.bf16.msra.mxu0 %v787
      %821 = vmatprep.subr.bf16.mxu0 %v786
      %822 = vmatpush1.bf16.msra.mxu0 %v785
      %823 = vmatprep.subr.bf16.mxu0 %v784
      %824 = vmatpush1.bf16.msra.mxu0 %v783
      %825 = vmatprep.subr.bf16.mxu0 %v782
      %826 = vmatpush1.bf16.msra.mxu0 %v781
      %827 = vmatprep.subr.bf16.mxu0 0
      %828 = vmatpush2.bf16.msra.mxu0 0
      %829 = vmatprep.subr.bf16.mxu0 0
      %830 = vmatpush2.bf16.msra.mxu0 0
      %831 = vmatprep.subr.bf16.mxu0 0
      %832 = vmatpush2.bf16.msra.mxu0 0
      %833 = vmatprep.subr.bf16.mxu0 0
      %834 = vmatpush2.bf16.msra.mxu0 0
      %835 = vmatprep.subr.bf16.mxu0 0
      %836 = vmatpush2.bf16.msra.mxu0 0
      %837 = vmatprep.subr.bf16.mxu0 0
      %838 = vmatpush2.bf16.msra.mxu0 0
      %839 = vmatprep.subr.bf16.mxu0 0
      %840 = vmatpush2.bf16.msra.mxu0 0
      %841 = vmatprep.subr.bf16.mxu0 0
      %842 = vmatpush2.bf16.msra.mxu0 0
      %843 = vmatprep.mubr.bf16.mxu0 0
      %844 = vmatmul.mubr.bf16.gmra.mxu0 %v806
      %v845 = vpop.f32.mrf.mxu0
      %v846 = vadd.f32 0.0, %v845
      %v847 = vpop.f32.mrf.mxu0
      %v848 = vadd.f32 0.0, %v847
      %v849 = vpop.f32.mrf.mxu0
      %v850 = vadd.f32 0.0, %v849
      %v851 = vpop.f32.mrf.mxu0
      %v852 = vadd.f32 0.0, %v851
      %853 = vmatprep.mubr.bf16.mxu0 0
      %854 = vmatmul.mubr.bf16.gmra.mxu0 %v809
      %v855 = vpop.f32.mrf.mxu0
      %v856 = vadd.f32 0.0, %v855
      %v857 = vpop.f32.mrf.mxu0
      %v858 = vadd.f32 0.0, %v857
      %v859 = vpop.f32.mrf.mxu0
      %v860 = vadd.f32 0.0, %v859
      %v861 = vpop.f32.mrf.mxu0
      %v862 = vadd.f32 0.0, %v861
      %863 = vdwg.mxu0
      %v864 = vadd.f32 %v709, %v846
      %v865 = vadd.f32 %v710, %v848
      %v866 = vadd.f32 %v711, %v850
      %v867 = vadd.f32 %v712, %v852
      %v868 = vadd.f32 %v713, %v856
      %v869 = vadd.f32 %v714, %v858
      %v870 = vadd.f32 %v715, %v860
      %v871 = vadd.f32 %v716, %v862
      %s872 = scalar_lea.vmem %s273, 60
      %v873 = vld [vmem:[%s872] sm:$0xf]
      %v874 = vld [vmem:[%s872 + $0x4] sm:$0xf]
      %v875 = vld [vmem:[%s872 + $0x8] sm:$0xf]
      %v876 = vld [vmem:[%s872 + $0xc] sm:$0xf]
      %s877 = scalar_lea.vmem %s1, 384
      %v878 = vld [vmem:[%s877] sm:$0xff]
      %v879 = vld [vmem:[%s877 + $0x8] sm:$0xff]
      %v880 = vld [vmem:[%s877 + $0x10] sm:$0xff]
      %v881 = vld [vmem:[%s877 + $0x18] sm:$0xff]
      %v882 = vld [vmem:[%s877 + $0x20] sm:$0xff]
      %v883 = vld [vmem:[%s877 + $0x28] sm:$0xff]
      %v884 = vld [vmem:[%s877 + $0x30] sm:$0xff]
      %v885 = vld [vmem:[%s877 + $0x38] sm:$0xff]
      %v886 = vld [vmem:[%s877 + $0x40] sm:$0xff]
      %v887 = vld [vmem:[%s877 + $0x48] sm:$0xff]
      %v888 = vld [vmem:[%s877 + $0x50] sm:$0xff]
      %v889 = vld [vmem:[%s877 + $0x58] sm:$0xff]
      %v894 = vunpack.c.l.b16 %v873
      %v895 = vunpack.c.l.b16 %v874
      %v896 = vunpack.c.l.b16 %v875
      %v897 = vunpack.c.l.b16 %v876
      %v898 = vpack.c.b16 %v895, %v894
      %v899 = vpack.c.b16 %v897, %v896
      %v912 = vunpack.c.l.b16 %v878
      %v913 = vunpack.c.h.b16 %v878
      %v914 = vunpack.c.l.b16 %v879
      %v915 = vunpack.c.h.b16 %v879
      %v916 = vunpack.c.l.b16 %v880
      %v917 = vunpack.c.h.b16 %v880
      %v918 = vunpack.c.l.b16 %v881
      %v919 = vunpack.c.h.b16 %v881
      %v920 = vunpack.c.l.b16 %v882
      %v921 = vunpack.c.h.b16 %v882
      %v922 = vunpack.c.l.b16 %v883
      %v923 = vunpack.c.h.b16 %v883
      %v924 = vunpack.c.l.b16 %v884
      %v925 = vunpack.c.h.b16 %v884
      %v926 = vunpack.c.l.b16 %v885
      %v927 = vunpack.c.h.b16 %v885
      %v928 = vunpack.c.l.b16 %v886
      %v929 = vunpack.c.h.b16 %v886
      %v930 = vunpack.c.l.b16 %v887
      %v931 = vunpack.c.h.b16 %v887
      %v932 = vunpack.c.l.b16 %v888
      %v933 = vunpack.c.h.b16 %v888
      %v934 = vunpack.c.l.b16 %v889
      %v935 = vunpack.c.h.b16 %v889
      %v936 = vpack.c.b16 %v914, %v912
      %v937 = vpack.c.b16 %v915, %v913
      %v938 = vpack.c.b16 %v918, %v916
      %v939 = vpack.c.b16 %v919, %v917
      %v940 = vpack.c.b16 %v922, %v920
      %v941 = vpack.c.b16 %v923, %v921
      %v942 = vpack.c.b16 %v926, %v924
      %v943 = vpack.c.b16 %v927, %v925
      %v944 = vpack.c.b16 %v930, %v928
      %v945 = vpack.c.b16 %v931, %v929
      %v946 = vpack.c.b16 %v934, %v932
      %v947 = vpack.c.b16 %v935, %v933
      %v961 = vsel %vm384, %v898, 0
      %v964 = vsel %vm384, %v899, 0
      %966 = vmatprep.subr.bf16.mxu0 0
      %967 = vmatpush1.bf16.msra.mxu0 0
      %968 = vmatprep.subr.bf16.mxu0 0
      %969 = vmatpush1.bf16.msra.mxu0 0
      %970 = vmatprep.subr.bf16.mxu0 %v947
      %971 = vmatpush1.bf16.msra.mxu0 %v946
      %972 = vmatprep.subr.bf16.mxu0 %v945
      %973 = vmatpush1.bf16.msra.mxu0 %v944
      %974 = vmatprep.subr.bf16.mxu0 %v943
      %975 = vmatpush1.bf16.msra.mxu0 %v942
      %976 = vmatprep.subr.bf16.mxu0 %v941
      %977 = vmatpush1.bf16.msra.mxu0 %v940
      %978 = vmatprep.subr.bf16.mxu0 %v939
      %979 = vmatpush1.bf16.msra.mxu0 %v938
      %980 = vmatprep.subr.bf16.mxu0 %v937
      %981 = vmatpush1.bf16.msra.mxu0 %v936
      %982 = vmatprep.subr.bf16.mxu0 0
      %983 = vmatpush2.bf16.msra.mxu0 0
      %984 = vmatprep.subr.bf16.mxu0 0
      %985 = vmatpush2.bf16.msra.mxu0 0
      %986 = vmatprep.subr.bf16.mxu0 0
      %987 = vmatpush2.bf16.msra.mxu0 0
      %988 = vmatprep.subr.bf16.mxu0 0
      %989 = vmatpush2.bf16.msra.mxu0 0
      %990 = vmatprep.subr.bf16.mxu0 0
      %991 = vmatpush2.bf16.msra.mxu0 0
      %992 = vmatprep.subr.bf16.mxu0 0
      %993 = vmatpush2.bf16.msra.mxu0 0
      %994 = vmatprep.subr.bf16.mxu0 0
      %995 = vmatpush2.bf16.msra.mxu0 0
      %996 = vmatprep.subr.bf16.mxu0 0
      %997 = vmatpush2.bf16.msra.mxu0 0
      %998 = vmatprep.mubr.bf16.mxu0 0
      %999 = vmatmul.mubr.bf16.gmra.mxu0 %v961
      %v1000 = vpop.f32.mrf.mxu0
      %v1001 = vadd.f32 0.0, %v1000
      %v1002 = vpop.f32.mrf.mxu0
      %v1003 = vadd.f32 0.0, %v1002
      %v1004 = vpop.f32.mrf.mxu0
      %v1005 = vadd.f32 0.0, %v1004
      %v1006 = vpop.f32.mrf.mxu0
      %v1007 = vadd.f32 0.0, %v1006
      %1008 = vmatprep.mubr.bf16.mxu0 0
      %1009 = vmatmul.mubr.bf16.gmra.mxu0 %v964
      %v1010 = vpop.f32.mrf.mxu0
      %v1011 = vadd.f32 0.0, %v1010
      %v1012 = vpop.f32.mrf.mxu0
      %v1013 = vadd.f32 0.0, %v1012
      %v1014 = vpop.f32.mrf.mxu0
      %v1015 = vadd.f32 0.0, %v1014
      %v1016 = vpop.f32.mrf.mxu0
      %v1017 = vadd.f32 0.0, %v1016
      %1018 = vdwg.mxu0
      %v1019 = vadd.f32 %v864, %v1001
      %v1020 = vadd.f32 %v865, %v1003
      %v1021 = vadd.f32 %v866, %v1005
      %v1022 = vadd.f32 %v867, %v1007
      %v1023 = vadd.f32 %v868, %v1011
      %v1024 = vadd.f32 %v869, %v1013
      %v1025 = vadd.f32 %v870, %v1015
      %v1026 = vadd.f32 %v871, %v1017
      %s1027 = scalar_lea.vmem %s1, 480
      %v1028 = vld [vmem:[%s1027] sm:$0xff]
      %v1029 = vld [vmem:[%s1027 + $0x8] sm:$0xff]
      %v1030 = vld [vmem:[%s1027 + $0x10] sm:$0xff]
      %v1031 = vld [vmem:[%s1027 + $0x18] sm:$0xff]
      %v1032 = vld [vmem:[%s1027 + $0x20] sm:$0xff]
      %v1033 = vld [vmem:[%s1027 + $0x28] sm:$0xff]
      %v1034 = vld [vmem:[%s1027 + $0x30] sm:$0xff]
      %v1035 = vld [vmem:[%s1027 + $0x38] sm:$0xff]
      %v1036 = vld [vmem:[%s1027 + $0x40] sm:$0xff]
      %v1037 = vld [vmem:[%s1027 + $0x48] sm:$0xff]
      %v1038 = vld [vmem:[%s1027 + $0x50] sm:$0xff]
      %v1039 = vld [vmem:[%s1027 + $0x58] sm:$0xff]
      %1040 = vrot.lane.b32.xlu0 %v743, 125
      %v1041 = vpop.permute.xlu0 %1040
      %1042 = vrot.lane.b32.xlu0 %v744, 125
      %v1043 = vpop.permute.xlu0 %1042
      %v1056 = vunpack.c.l.b16 %v1028
      %v1057 = vunpack.c.h.b16 %v1028
      %v1058 = vunpack.c.l.b16 %v1029
      %v1059 = vunpack.c.h.b16 %v1029
      %v1060 = vunpack.c.l.b16 %v1030
      %v1061 = vunpack.c.h.b16 %v1030
      %v1062 = vunpack.c.l.b16 %v1031
      %v1063 = vunpack.c.h.b16 %v1031
      %v1064 = vunpack.c.l.b16 %v1032
      %v1065 = vunpack.c.h.b16 %v1032
      %v1066 = vunpack.c.l.b16 %v1033
      %v1067 = vunpack.c.h.b16 %v1033
      %v1068 = vunpack.c.l.b16 %v1034
      %v1069 = vunpack.c.h.b16 %v1034
      %v1070 = vunpack.c.l.b16 %v1035
      %v1071 = vunpack.c.h.b16 %v1035
      %v1072 = vunpack.c.l.b16 %v1036
      %v1073 = vunpack.c.h.b16 %v1036
      %v1074 = vunpack.c.l.b16 %v1037
      %v1075 = vunpack.c.h.b16 %v1037
      %v1076 = vunpack.c.l.b16 %v1038
      %v1077 = vunpack.c.h.b16 %v1038
      %v1078 = vunpack.c.l.b16 %v1039
      %v1079 = vunpack.c.h.b16 %v1039
      %v1080 = vpack.c.b16 %v1058, %v1056
      %v1081 = vpack.c.b16 %v1059, %v1057
      %v1082 = vpack.c.b16 %v1062, %v1060
      %v1083 = vpack.c.b16 %v1063, %v1061
      %v1084 = vpack.c.b16 %v1066, %v1064
      %v1085 = vpack.c.b16 %v1067, %v1065
      %v1086 = vpack.c.b16 %v1070, %v1068
      %v1087 = vpack.c.b16 %v1071, %v1069
      %v1088 = vpack.c.b16 %v1074, %v1072
      %v1089 = vpack.c.b16 %v1075, %v1073
      %v1090 = vpack.c.b16 %v1078, %v1076
      %v1091 = vpack.c.b16 %v1079, %v1077
      %v1105 = vsel %vm384, %v1041, 0
      %v1108 = vsel %vm384, %v1043, 0
      %1110 = vmatprep.subr.bf16.mxu0 0
      %1111 = vmatpush1.bf16.msra.mxu0 0
      %1112 = vmatprep.subr.bf16.mxu0 0
      %1113 = vmatpush1.bf16.msra.mxu0 0
      %1114 = vmatprep.subr.bf16.mxu0 %v1091
      %1115 = vmatpush1.bf16.msra.mxu0 %v1090
      %1116 = vmatprep.subr.bf16.mxu0 %v1089
      %1117 = vmatpush1.bf16.msra.mxu0 %v1088
      %1118 = vmatprep.subr.bf16.mxu0 %v1087
      %1119 = vmatpush1.bf16.msra.mxu0 %v1086
      %1120 = vmatprep.subr.bf16.mxu0 %v1085
      %1121 = vmatpush1.bf16.msra.mxu0 %v1084
      %1122 = vmatprep.subr.bf16.mxu0 %v1083
      %1123 = vmatpush1.bf16.msra.mxu0 %v1082
      %1124 = vmatprep.subr.bf16.mxu0 %v1081
      %1125 = vmatpush1.bf16.msra.mxu0 %v1080
      %1126 = vmatprep.subr.bf16.mxu0 0
      %1127 = vmatpush2.bf16.msra.mxu0 0
      %1128 = vmatprep.subr.bf16.mxu0 0
      %1129 = vmatpush2.bf16.msra.mxu0 0
      %1130 = vmatprep.subr.bf16.mxu0 0
      %1131 = vmatpush2.bf16.msra.mxu0 0
      %1132 = vmatprep.subr.bf16.mxu0 0
      %1133 = vmatpush2.bf16.msra.mxu0 0
      %1134 = vmatprep.subr.bf16.mxu0 0
      %1135 = vmatpush2.bf16.msra.mxu0 0
      %1136 = vmatprep.subr.bf16.mxu0 0
      %1137 = vmatpush2.bf16.msra.mxu0 0
      %1138 = vmatprep.subr.bf16.mxu0 0
      %1139 = vmatpush2.bf16.msra.mxu0 0
      %1140 = vmatprep.subr.bf16.mxu0 0
      %1141 = vmatpush2.bf16.msra.mxu0 0
      %1142 = vmatprep.mubr.bf16.mxu0 0
      %1143 = vmatmul.mubr.bf16.gmra.mxu0 %v1105
      %v1144 = vpop.f32.mrf.mxu0
      %v1145 = vadd.f32 0.0, %v1144
      %v1146 = vpop.f32.mrf.mxu0
      %v1147 = vadd.f32 0.0, %v1146
      %v1148 = vpop.f32.mrf.mxu0
      %v1149 = vadd.f32 0.0, %v1148
      %v1150 = vpop.f32.mrf.mxu0
      %v1151 = vadd.f32 0.0, %v1150
      %1152 = vmatprep.mubr.bf16.mxu0 0
      %1153 = vmatmul.mubr.bf16.gmra.mxu0 %v1108
      %v1154 = vpop.f32.mrf.mxu0
      %v1155 = vadd.f32 0.0, %v1154
      %v1156 = vpop.f32.mrf.mxu0
      %v1157 = vadd.f32 0.0, %v1156
      %v1158 = vpop.f32.mrf.mxu0
      %v1159 = vadd.f32 0.0, %v1158
      %v1160 = vpop.f32.mrf.mxu0
      %v1161 = vadd.f32 0.0, %v1160
      %1162 = vdwg.mxu0
      %v1163 = vadd.f32 %v1019, %v1145
      %v1164 = vadd.f32 %v1020, %v1147
      %v1165 = vadd.f32 %v1021, %v1149
      %v1166 = vadd.f32 %v1022, %v1151
      %v1167 = vadd.f32 %v1023, %v1155
      %v1168 = vadd.f32 %v1024, %v1157
      %v1169 = vadd.f32 %v1025, %v1159
      %v1170 = vadd.f32 %v1026, %v1161
      %v1171 = vld [vmem:[%s273] sm:$0xf]
      %v1172 = vld [vmem:[%s273 + $0x4] sm:$0xf]
      %v1173 = vld [vmem:[%s273 + $0x8] sm:$0xf]
      %v1174 = vld [vmem:[%s273 + $0xc] sm:$0xf]
      %v1175 = vld [vmem:[%s273 + $0x10] sm:$0x1]
      %s1176 = scalar_lea.vmem %s1, 576
      %v1177 = vld [vmem:[%s1176] sm:$0xff]
      %v1178 = vld [vmem:[%s1176 + $0x8] sm:$0xff]
      %v1179 = vld [vmem:[%s1176 + $0x10] sm:$0xff]
      %v1180 = vld [vmem:[%s1176 + $0x18] sm:$0xff]
      %v1181 = vld [vmem:[%s1176 + $0x20] sm:$0xff]
      %v1182 = vld [vmem:[%s1176 + $0x28] sm:$0xff]
      %v1183 = vld [vmem:[%s1176 + $0x30] sm:$0xff]
      %v1184 = vld [vmem:[%s1176 + $0x38] sm:$0xff]
      %v1185 = vld [vmem:[%s1176 + $0x40] sm:$0xff]
      %v1186 = vld [vmem:[%s1176 + $0x48] sm:$0xff]
      %v1187 = vld [vmem:[%s1176 + $0x50] sm:$0xff]
      %v1188 = vld [vmem:[%s1176 + $0x58] sm:$0xff]
      %v1194 = vunpack.c.l.b16 %v1171
      %v1195 = vunpack.c.l.b16 %v1172
      %v1196 = vunpack.c.l.b16 %v1173
      %v1197 = vunpack.c.l.b16 %v1174
      %v1198 = vunpack.c.l.b16 %v1175
      %v1199 = vpack.c.b16 %v1195, %v1194
      %v1200 = vpack.c.b16 %v1197, %v1196
      %v1201 = vpack.c.b16 %v1198, %v1198
      %vm1202 = vsmask.f32 7424
      %v1204 = vshrl.u32 %v1199, 16
      %v1206 = vshll.u32 %v1199, 16
      %v1208 = vrot.slane %v1206, 1
      %v1209 = vor.u32 %v1204, %v1208
      %v1211 = vshll.u32 %v1200, 16
      %v1213 = vrot.slane %v1211, 1
      %v1214 = vsel %vm1202, %v1209, %v1213
      %v1215 = vshrl.u32 %v1200, 16
      %v1217 = vor.u32 %v1215, %v1213
      %v1219 = vshll.u32 %v1201, 16
      %v1221 = vrot.slane %v1219, 1
      %v1222 = vsel %vm1202, %v1217, %v1221
      %v1235 = vunpack.c.l.b16 %v1177
      %v1236 = vunpack.c.h.b16 %v1177
      %v1237 = vunpack.c.l.b16 %v1178
      %v1238 = vunpack.c.h.b16 %v1178
      %v1239 = vunpack.c.l.b16 %v1179
      %v1240 = vunpack.c.h.b16 %v1179
      %v1241 = vunpack.c.l.b16 %v1180
      %v1242 = vunpack.c.h.b16 %v1180
      %v1243 = vunpack.c.l.b16 %v1181
      %v1244 = vunpack.c.h.b16 %v1181
      %v1245 = vunpack.c.l.b16 %v1182
      %v1246 = vunpack.c.h.b16 %v1182
      %v1247 = vunpack.c.l.b16 %v1183
      %v1248 = vunpack.c.h.b16 %v1183
      %v1249 = vunpack.c.l.b16 %v1184
      %v1250 = vunpack.c.h.b16 %v1184
      %v1251 = vunpack.c.l.b16 %v1185
      %v1252 = vunpack.c.h.b16 %v1185
      %v1253 = vunpack.c.l.b16 %v1186
      %v1254 = vunpack.c.h.b16 %v1186
      %v1255 = vunpack.c.l.b16 %v1187
      %v1256 = vunpack.c.h.b16 %v1187
      %v1257 = vunpack.c.l.b16 %v1188
      %v1258 = vunpack.c.h.b16 %v1188
      %v1259 = vpack.c.b16 %v1237, %v1235
      %v1260 = vpack.c.b16 %v1238, %v1236
      %v1261 = vpack.c.b16 %v1241, %v1239
      %v1262 = vpack.c.b16 %v1242, %v1240
      %v1263 = vpack.c.b16 %v1245, %v1243
      %v1264 = vpack.c.b16 %v1246, %v1244
      %v1265 = vpack.c.b16 %v1249, %v1247
      %v1266 = vpack.c.b16 %v1250, %v1248
      %v1267 = vpack.c.b16 %v1253, %v1251
      %v1268 = vpack.c.b16 %v1254, %v1252
      %v1269 = vpack.c.b16 %v1257, %v1255
      %v1270 = vpack.c.b16 %v1258, %v1256
      %v1284 = vsel %vm384, %v1214, 0
      %v1287 = vsel %vm384, %v1222, 0
      %1289 = vmatprep.subr.bf16.mxu0 0
      %1290 = vmatpush1.bf16.msra.mxu0 0
      %1291 = vmatprep.subr.bf16.mxu0 0
      %1292 = vmatpush1.bf16.msra.mxu0 0
      %1293 = vmatprep.subr.bf16.mxu0 %v1270
      %1294 = vmatpush1.bf16.msra.mxu0 %v1269
      %1295 = vmatprep.subr.bf16.mxu0 %v1268
      %1296 = vmatpush1.bf16.msra.mxu0 %v1267
      %1297 = vmatprep.subr.bf16.mxu0 %v1266
      %1298 = vmatpush1.bf16.msra.mxu0 %v1265
      %1299 = vmatprep.subr.bf16.mxu0 %v1264
      %1300 = vmatpush1.bf16.msra.mxu0 %v1263
      %1301 = vmatprep.subr.bf16.mxu0 %v1262
      %1302 = vmatpush1.bf16.msra.mxu0 %v1261
      %1303 = vmatprep.subr.bf16.mxu0 %v1260
      %1304 = vmatpush1.bf16.msra.mxu0 %v1259
      %1305 = vmatprep.subr.bf16.mxu0 0
      %1306 = vmatpush2.bf16.msra.mxu0 0
      %1307 = vmatprep.subr.bf16.mxu0 0
      %1308 = vmatpush2.bf16.msra.mxu0 0
      %1309 = vmatprep.subr.bf16.mxu0 0
      %1310 = vmatpush2.bf16.msra.mxu0 0
      %1311 = vmatprep.subr.bf16.mxu0 0
      %1312 = vmatpush2.bf16.msra.mxu0 0
      %1313 = vmatprep.subr.bf16.mxu0 0
      %1314 = vmatpush2.bf16.msra.mxu0 0
      %1315 = vmatprep.subr.bf16.mxu0 0
      %1316 = vmatpush2.bf16.msra.mxu0 0
      %1317 = vmatprep.subr.bf16.mxu0 0
      %1318 = vmatpush2.bf16.msra.mxu0 0
      %1319 = vmatprep.subr.bf16.mxu0 0
      %1320 = vmatpush2.bf16.msra.mxu0 0
      %1321 = vmatprep.mubr.bf16.mxu0 0
      %1322 = vmatmul.mubr.bf16.gmra.mxu0 %v1284
      %v1323 = vpop.f32.mrf.mxu0
      %v1324 = vadd.f32 0.0, %v1323
      %v1325 = vpop.f32.mrf.mxu0
      %v1326 = vadd.f32 0.0, %v1325
      %v1327 = vpop.f32.mrf.mxu0
      %v1328 = vadd.f32 0.0, %v1327
      %v1329 = vpop.f32.mrf.mxu0
      %v1330 = vadd.f32 0.0, %v1329
      %1331 = vmatprep.mubr.bf16.mxu0 0
      %1332 = vmatmul.mubr.bf16.gmra.mxu0 %v1287
      %v1333 = vpop.f32.mrf.mxu0
      %v1334 = vadd.f32 0.0, %v1333
      %v1335 = vpop.f32.mrf.mxu0
      %v1336 = vadd.f32 0.0, %v1335
      %v1337 = vpop.f32.mrf.mxu0
      %v1338 = vadd.f32 0.0, %v1337
      %v1339 = vpop.f32.mrf.mxu0
      %v1340 = vadd.f32 0.0, %v1339
      %1341 = vdwg.mxu0
      %v1342 = vadd.f32 %v1163, %v1324
      %v1343 = vadd.f32 %v1164, %v1326
      %v1344 = vadd.f32 %v1165, %v1328
      %v1345 = vadd.f32 %v1166, %v1330
      %v1346 = vadd.f32 %v1167, %v1334
      %v1347 = vadd.f32 %v1168, %v1336
      %v1348 = vadd.f32 %v1169, %v1338
      %v1349 = vadd.f32 %v1170, %v1340
      %v1350 = vld [vmem:[%s296] sm:$0xf]
      %v1351 = vld [vmem:[%s296 + $0x4] sm:$0xf]
      %v1352 = vld [vmem:[%s296 + $0x8] sm:$0xf]
      %v1353 = vld [vmem:[%s296 + $0xc] sm:$0xf]
      %v1354 = vld [vmem:[%s296 + $0x10] sm:$0x1]
      %s1355 = scalar_lea.vmem %s1, 672
      %v1356 = vld [vmem:[%s1355] sm:$0xff]
      %v1357 = vld [vmem:[%s1355 + $0x8] sm:$0xff]
      %v1358 = vld [vmem:[%s1355 + $0x10] sm:$0xff]
      %v1359 = vld [vmem:[%s1355 + $0x18] sm:$0xff]
      %v1360 = vld [vmem:[%s1355 + $0x20] sm:$0xff]
      %v1361 = vld [vmem:[%s1355 + $0x28] sm:$0xff]
      %v1362 = vld [vmem:[%s1355 + $0x30] sm:$0xff]
      %v1363 = vld [vmem:[%s1355 + $0x38] sm:$0xff]
      %v1364 = vld [vmem:[%s1355 + $0x40] sm:$0xff]
      %v1365 = vld [vmem:[%s1355 + $0x48] sm:$0xff]
      %v1366 = vld [vmem:[%s1355 + $0x50] sm:$0xff]
      %v1367 = vld [vmem:[%s1355 + $0x58] sm:$0xff]
      %v1373 = vunpack.c.l.b16 %v1350
      %v1374 = vunpack.c.l.b16 %v1351
      %v1375 = vunpack.c.l.b16 %v1352
      %v1376 = vunpack.c.l.b16 %v1353
      %v1377 = vunpack.c.l.b16 %v1354
      %v1378 = vpack.c.b16 %v1374, %v1373
      %v1379 = vpack.c.b16 %v1376, %v1375
      %v1380 = vpack.c.b16 %v1377, %v1377
      %v1382 = vshrl.u32 %v1378, 16
      %v1384 = vshll.u32 %v1378, 16
      %v1386 = vrot.slane %v1384, 1
      %v1387 = vor.u32 %v1382, %v1386
      %v1389 = vshll.u32 %v1379, 16
      %v1391 = vrot.slane %v1389, 1
      %v1392 = vsel %vm1202, %v1387, %v1391
      %v1393 = vshrl.u32 %v1379, 16
      %v1395 = vor.u32 %v1393, %v1391
      %v1397 = vshll.u32 %v1380, 16
      %v1399 = vrot.slane %v1397, 1
      %v1400 = vsel %vm1202, %v1395, %v1399
      %v1413 = vunpack.c.l.b16 %v1356
      %v1414 = vunpack.c.h.b16 %v1356
      %v1415 = vunpack.c.l.b16 %v1357
      %v1416 = vunpack.c.h.b16 %v1357
      %v1417 = vunpack.c.l.b16 %v1358
      %v1418 = vunpack.c.h.b16 %v1358
      %v1419 = vunpack.c.l.b16 %v1359
      %v1420 = vunpack.c.h.b16 %v1359
      %v1421 = vunpack.c.l.b16 %v1360
      %v1422 = vunpack.c.h.b16 %v1360
      %v1423 = vunpack.c.l.b16 %v1361
      %v1424 = vunpack.c.h.b16 %v1361
      %v1425 = vunpack.c.l.b16 %v1362
      %v1426 = vunpack.c.h.b16 %v1362
      %v1427 = vunpack.c.l.b16 %v1363
      %v1428 = vunpack.c.h.b16 %v1363
      %v1429 = vunpack.c.l.b16 %v1364
      %v1430 = vunpack.c.h.b16 %v1364
      %v1431 = vunpack.c.l.b16 %v1365
      %v1432 = vunpack.c.h.b16 %v1365
      %v1433 = vunpack.c.l.b16 %v1366
      %v1434 = vunpack.c.h.b16 %v1366
      %v1435 = vunpack.c.l.b16 %v1367
      %v1436 = vunpack.c.h.b16 %v1367
      %v1437 = vpack.c.b16 %v1415, %v1413
      %v1438 = vpack.c.b16 %v1416, %v1414
      %v1439 = vpack.c.b16 %v1419, %v1417
      %v1440 = vpack.c.b16 %v1420, %v1418
      %v1441 = vpack.c.b16 %v1423, %v1421
      %v1442 = vpack.c.b16 %v1424, %v1422
      %v1443 = vpack.c.b16 %v1427, %v1425
      %v1444 = vpack.c.b16 %v1428, %v1426
      %v1445 = vpack.c.b16 %v1431, %v1429
      %v1446 = vpack.c.b16 %v1432, %v1430
      %v1447 = vpack.c.b16 %v1435, %v1433
      %v1448 = vpack.c.b16 %v1436, %v1434
      %v1462 = vsel %vm384, %v1392, 0
      %v1465 = vsel %vm384, %v1400, 0
      %1467 = vmatprep.subr.bf16.mxu0 0
      %1468 = vmatpush1.bf16.msra.mxu0 0
      %1469 = vmatprep.subr.bf16.mxu0 0
      %1470 = vmatpush1.bf16.msra.mxu0 0
      %1471 = vmatprep.subr.bf16.mxu0 %v1448
      %1472 = vmatpush1.bf16.msra.mxu0 %v1447
      %1473 = vmatprep.subr.bf16.mxu0 %v1446
      %1474 = vmatpush1.bf16.msra.mxu0 %v1445
      %1475 = vmatprep.subr.bf16.mxu0 %v1444
      %1476 = vmatpush1.bf16.msra.mxu0 %v1443
      %1477 = vmatprep.subr.bf16.mxu0 %v1442
      %1478 = vmatpush1.bf16.msra.mxu0 %v1441
      %1479 = vmatprep.subr.bf16.mxu0 %v1440
      %1480 = vmatpush1.bf16.msra.mxu0 %v1439
      %1481 = vmatprep.subr.bf16.mxu0 %v1438
      %1482 = vmatpush1.bf16.msra.mxu0 %v1437
      %1483 = vmatprep.subr.bf16.mxu0 0
      %1484 = vmatpush2.bf16.msra.mxu0 0
      %1485 = vmatprep.subr.bf16.mxu0 0
      %1486 = vmatpush2.bf16.msra.mxu0 0
      %1487 = vmatprep.subr.bf16.mxu0 0
      %1488 = vmatpush2.bf16.msra.mxu0 0
      %1489 = vmatprep.subr.bf16.mxu0 0
      %1490 = vmatpush2.bf16.msra.mxu0 0
      %1491 = vmatprep.subr.bf16.mxu0 0
      %1492 = vmatpush2.bf16.msra.mxu0 0
      %1493 = vmatprep.subr.bf16.mxu0 0
      %1494 = vmatpush2.bf16.msra.mxu0 0
      %1495 = vmatprep.subr.bf16.mxu0 0
      %1496 = vmatpush2.bf16.msra.mxu0 0
      %1497 = vmatprep.subr.bf16.mxu0 0
      %1498 = vmatpush2.bf16.msra.mxu0 0
      %1499 = vmatprep.mubr.bf16.mxu0 0
      %1500 = vmatmul.mubr.bf16.gmra.mxu0 %v1462
      %v1501 = vpop.f32.mrf.mxu0
      %v1502 = vadd.f32 0.0, %v1501
      %v1503 = vpop.f32.mrf.mxu0
      %v1504 = vadd.f32 0.0, %v1503
      %v1505 = vpop.f32.mrf.mxu0
      %v1506 = vadd.f32 0.0, %v1505
      %v1507 = vpop.f32.mrf.mxu0
      %v1508 = vadd.f32 0.0, %v1507
      %1509 = vmatprep.mubr.bf16.mxu0 0
      %1510 = vmatmul.mubr.bf16.gmra.mxu0 %v1465
      %v1511 = vpop.f32.mrf.mxu0
      %v1512 = vadd.f32 0.0, %v1511
      %v1513 = vpop.f32.mrf.mxu0
      %v1514 = vadd.f32 0.0, %v1513
      %v1515 = vpop.f32.mrf.mxu0
      %v1516 = vadd.f32 0.0, %v1515
      %v1517 = vpop.f32.mrf.mxu0
      %v1518 = vadd.f32 0.0, %v1517
      %1519 = vdwg.mxu0
      %v1520 = vadd.f32 %v1342, %v1502
      %v1521 = vadd.f32 %v1343, %v1504
      %v1522 = vadd.f32 %v1344, %v1506
      %v1523 = vadd.f32 %v1345, %v1508
      %v1524 = vadd.f32 %v1346, %v1512
      %v1525 = vadd.f32 %v1347, %v1514
      %v1526 = vadd.f32 %v1348, %v1516
      %v1527 = vadd.f32 %v1349, %v1518
      %s1528 = scalar_lea.vmem %s1, 768
      %v1529 = vld [vmem:[%s1528] sm:$0xff]
      %v1530 = vld [vmem:[%s1528 + $0x8] sm:$0xff]
      %v1531 = vld [vmem:[%s1528 + $0x10] sm:$0xff]
      %v1532 = vld [vmem:[%s1528 + $0x18] sm:$0xff]
      %v1533 = vld [vmem:[%s1528 + $0x20] sm:$0xff]
      %v1534 = vld [vmem:[%s1528 + $0x28] sm:$0xff]
      %v1535 = vld [vmem:[%s1528 + $0x30] sm:$0xff]
      %v1536 = vld [vmem:[%s1528 + $0x38] sm:$0xff]
      %v1537 = vld [vmem:[%s1528 + $0x40] sm:$0xff]
      %v1538 = vld [vmem:[%s1528 + $0x48] sm:$0xff]
      %v1539 = vld [vmem:[%s1528 + $0x50] sm:$0xff]
      %v1540 = vld [vmem:[%s1528 + $0x58] sm:$0xff]
      %1541 = vrot.lane.b32.xlu0 %v1214, 125
      %v1542 = vpop.permute.xlu0 %1541
      %1543 = vrot.lane.b32.xlu0 %v1222, 125
      %v1544 = vpop.permute.xlu0 %1543
      %v1557 = vunpack.c.l.b16 %v1529
      %v1558 = vunpack.c.h.b16 %v1529
      %v1559 = vunpack.c.l.b16 %v1530
      %v1560 = vunpack.c.h.b16 %v1530
      %v1561 = vunpack.c.l.b16 %v1531
      %v1562 = vunpack.c.h.b16 %v1531
      %v1563 = vunpack.c.l.b16 %v1532
      %v1564 = vunpack.c.h.b16 %v1532
      %v1565 = vunpack.c.l.b16 %v1533
      %v1566 = vunpack.c.h.b16 %v1533
      %v1567 = vunpack.c.l.b16 %v1534
      %v1568 = vunpack.c.h.b16 %v1534
      %v1569 = vunpack.c.l.b16 %v1535
      %v1570 = vunpack.c.h.b16 %v1535
      %v1571 = vunpack.c.l.b16 %v1536
      %v1572 = vunpack.c.h.b16 %v1536
      %v1573 = vunpack.c.l.b16 %v1537
      %v1574 = vunpack.c.h.b16 %v1537
      %v1575 = vunpack.c.l.b16 %v1538
      %v1576 = vunpack.c.h.b16 %v1538
      %v1577 = vunpack.c.l.b16 %v1539
      %v1578 = vunpack.c.h.b16 %v1539
      %v1579 = vunpack.c.l.b16 %v1540
      %v1580 = vunpack.c.h.b16 %v1540
      %v1581 = vpack.c.b16 %v1559, %v1557
      %v1582 = vpack.c.b16 %v1560, %v1558
      %v1583 = vpack.c.b16 %v1563, %v1561
      %v1584 = vpack.c.b16 %v1564, %v1562
      %v1585 = vpack.c.b16 %v1567, %v1565
      %v1586 = vpack.c.b16 %v1568, %v1566
      %v1587 = vpack.c.b16 %v1571, %v1569
      %v1588 = vpack.c.b16 %v1572, %v1570
      %v1589 = vpack.c.b16 %v1575, %v1573
      %v1590 = vpack.c.b16 %v1576, %v1574
      %v1591 = vpack.c.b16 %v1579, %v1577
      %v1592 = vpack.c.b16 %v1580, %v1578
      %v1606 = vsel %vm384, %v1542, 0
      %v1609 = vsel %vm384, %v1544, 0
      %1611 = vmatprep.subr.bf16.mxu0 0
      %1612 = vmatpush1.bf16.msra.mxu0 0
      %1613 = vmatprep.subr.bf16.mxu0 0
      %1614 = vmatpush1.bf16.msra.mxu0 0
      %1615 = vmatprep.subr.bf16.mxu0 %v1592
      %1616 = vmatpush1.bf16.msra.mxu0 %v1591
      %1617 = vmatprep.subr.bf16.mxu0 %v1590
      %1618 = vmatpush1.bf16.msra.mxu0 %v1589
      %1619 = vmatprep.subr.bf16.mxu0 %v1588
      %1620 = vmatpush1.bf16.msra.mxu0 %v1587
      %1621 = vmatprep.subr.bf16.mxu0 %v1586
      %1622 = vmatpush1.bf16.msra.mxu0 %v1585
      %1623 = vmatprep.subr.bf16.mxu0 %v1584
      %1624 = vmatpush1.bf16.msra.mxu0 %v1583
      %1625 = vmatprep.subr.bf16.mxu0 %v1582
      %1626 = vmatpush1.bf16.msra.mxu0 %v1581
      %1627 = vmatprep.subr.bf16.mxu0 0
      %1628 = vmatpush2.bf16.msra.mxu0 0
      %1629 = vmatprep.subr.bf16.mxu0 0
      %1630 = vmatpush2.bf16.msra.mxu0 0
      %1631 = vmatprep.subr.bf16.mxu0 0
      %1632 = vmatpush2.bf16.msra.mxu0 0
      %1633 = vmatprep.subr.bf16.mxu0 0
      %1634 = vmatpush2.bf16.msra.mxu0 0
      %1635 = vmatprep.subr.bf16.mxu0 0
      %1636 = vmatpush2.bf16.msra.mxu0 0
      %1637 = vmatprep.subr.bf16.mxu0 0
      %1638 = vmatpush2.bf16.msra.mxu0 0
      %1639 = vmatprep.subr.bf16.mxu0 0
      %1640 = vmatpush2.bf16.msra.mxu0 0
      %1641 = vmatprep.subr.bf16.mxu0 0
      %1642 = vmatpush2.bf16.msra.mxu0 0
      %1643 = vmatprep.mubr.bf16.mxu0 0
      %1644 = vmatmul.mubr.bf16.gmra.mxu0 %v1606
      %v1645 = vpop.f32.mrf.mxu0
      %v1646 = vadd.f32 0.0, %v1645
      %v1647 = vpop.f32.mrf.mxu0
      %v1648 = vadd.f32 0.0, %v1647
      %v1649 = vpop.f32.mrf.mxu0
      %v1650 = vadd.f32 0.0, %v1649
      %v1651 = vpop.f32.mrf.mxu0
      %v1652 = vadd.f32 0.0, %v1651
      %1653 = vmatprep.mubr.bf16.mxu0 0
      %1654 = vmatmul.mubr.bf16.gmra.mxu0 %v1609
      %v1655 = vpop.f32.mrf.mxu0
      %v1656 = vadd.f32 0.0, %v1655
      %v1657 = vpop.f32.mrf.mxu0
      %v1658 = vadd.f32 0.0, %v1657
      %v1659 = vpop.f32.mrf.mxu0
      %v1660 = vadd.f32 0.0, %v1659
      %v1661 = vpop.f32.mrf.mxu0
      %v1662 = vadd.f32 0.0, %v1661
      %1663 = vdwg.mxu0
      %v1664 = vadd.f32 %v1520, %v1646
      %v1665 = vadd.f32 %v1521, %v1648
      %v1666 = vadd.f32 %v1522, %v1650
      %v1667 = vadd.f32 %v1523, %v1652
      %v1668 = vadd.f32 %v1524, %v1656
      %v1669 = vadd.f32 %v1525, %v1658
      %v1670 = vadd.f32 %v1526, %v1660
      %v1671 = vadd.f32 %v1527, %v1662
      %v1672 = vld [vmem:[%s2] sm:$0x3]
      %v1674 = vlaneseq
      %v1675 = vshrl.u32 %v1674, 7
      %v1676 = vsub.s32 0, %v1675
      %v1677 = vrot.slane %v1672, %v1676
      %v1678 = vlaneseq
      %v1679 = vshrl.u32 %v1678, 7
      %v1680 = vsub.s32 1, %v1679
      %v1681 = vrot.slane %v1672, %v1680
      %v1684 = vadd.f32 %v1664, %v1677
      %v1685 = vadd.f32 %v1665, %v1681
      %v1686 = vadd.f32 %v1666, %v1677
      %v1687 = vadd.f32 %v1667, %v1681
      %v1688 = vadd.f32 %v1668, %v1677
      %v1689 = vadd.f32 %v1669, %v1681
      %v1690 = vadd.f32 %v1670, %v1677
      %v1691 = vadd.f32 %v1671, %v1681
      %v1692 = vmax.f32 %v1684, 0.0
      %v1693 = vmax.f32 %v1685, 0.0
      %v1694 = vmax.f32 %v1686, 0.0
      %v1695 = vmax.f32 %v1687, 0.0
      %v1696 = vmax.f32 %v1688, 0.0
      %v1697 = vmax.f32 %v1689, 0.0
      %v1698 = vmax.f32 %v1690, 0.0
      %v1699 = vmax.f32 %v1691, 0.0
      %v1700 = vpack.c.bf16 %v1694, %v1692
      %v1701 = vpack.c.bf16 %v1695, %v1693
      %v1702 = vpack.c.bf16 %v1698, %v1696
      %v1703 = vpack.c.bf16 %v1699, %v1697
      %v1704 = vld [vmem:[%s3] sm:$0xf]
      %v1705 = vld [vmem:[%s3 + $0x4] sm:$0xf]
      %v1708 = vunpack.c.l.b16 %v1704
      %v1709 = vunpack.c.l.b16 %v1705
      %v1710 = vpack.c.b16 %v1709, %v1708
      %vm1711 = vcmask 261120
      %v1713 = vsel %vm1711, %v1710, 0
      %1715 = vmatprep.subr.bf16.mxu0 0
      %1716 = vmatpush1.bf16.msra.mxu0 0
      %1717 = vmatprep.subr.bf16.mxu0 0
      %1718 = vmatpush1.bf16.msra.mxu0 0
      %1719 = vmatprep.subr.bf16.mxu0 0
      %1720 = vmatpush1.bf16.msra.mxu0 0
      %1721 = vmatprep.subr.bf16.mxu0 0
      %1722 = vmatpush1.bf16.msra.mxu0 0
      %1723 = vmatprep.subr.bf16.mxu0 0
      %1724 = vmatpush1.bf16.msra.mxu0 0
      %1725 = vmatprep.subr.bf16.mxu0 0
      %1726 = vmatpush1.bf16.msra.mxu0 0
      %1727 = vmatprep.subr.bf16.mxu0 %v1703
      %1728 = vmatpush1.bf16.msra.mxu0 %v1702
      %1729 = vmatprep.subr.bf16.mxu0 %v1701
      %1730 = vmatpush1.bf16.msra.mxu0 %v1700
      %1731 = vmatprep.subr.bf16.mxu0 0
      %1732 = vmatpush2.bf16.msra.mxu0 0
      %1733 = vmatprep.subr.bf16.mxu0 0
      %1734 = vmatpush2.bf16.msra.mxu0 0
      %1735 = vmatprep.subr.bf16.mxu0 0
      %1736 = vmatpush2.bf16.msra.mxu0 0
      %1737 = vmatprep.subr.bf16.mxu0 0
      %1738 = vmatpush2.bf16.msra.mxu0 0
      %1739 = vmatprep.subr.bf16.mxu0 0
      %1740 = vmatpush2.bf16.msra.mxu0 0
      %1741 = vmatprep.subr.bf16.mxu0 0
      %1742 = vmatpush2.bf16.msra.mxu0 0
      %1743 = vmatprep.subr.bf16.mxu0 0
      %1744 = vmatpush2.bf16.msra.mxu0 0
      %1745 = vmatprep.subr.bf16.mxu0 0
      %1746 = vmatpush2.bf16.msra.mxu0 0
      %1747 = vmatprep.mubr.bf16.mxu0 0
      %1748 = vmatmul.mubr.bf16.gmra.mxu0 %v1713
      %v1749 = vpop.f32.mrf.mxu0
      %v1750 = vadd.f32 0.0, %v1749
      %v1751 = vpop.f32.mrf.mxu0
      %v1752 = vadd.f32 0.0, %v1751
      %v1753 = vpop.f32.mrf.mxu0
      %v1754 = vadd.f32 0.0, %v1753
      %v1755 = vpop.f32.mrf.mxu0
      %v1756 = vadd.f32 0.0, %v1755
      %1757 = vdwg.mxu0
      %v1758 = vld [vmem:[%s4] sm:$0xf]
      %v1759 = vld [vmem:[%s4 + $0x4] sm:$0xf]
      %v1762 = vunpack.c.l.b16 %v1758
      %v1763 = vunpack.c.l.b16 %v1759
      %v1764 = vpack.c.b16 %v1763, %v1762
      %v1766 = vsel %vm1711, %v1764, 0
      %1768 = vmatprep.subr.bf16.mxu0 0
      %1769 = vmatpush1.bf16.msra.mxu0 0
      %1770 = vmatprep.subr.bf16.mxu0 0
      %1771 = vmatpush1.bf16.msra.mxu0 0
      %1772 = vmatprep.subr.bf16.mxu0 0
      %1773 = vmatpush1.bf16.msra.mxu0 0
      %1774 = vmatprep.subr.bf16.mxu0 0
      %1775 = vmatpush1.bf16.msra.mxu0 0
      %1776 = vmatprep.subr.bf16.mxu0 0
      %1777 = vmatpush1.bf16.msra.mxu0 0
      %1778 = vmatprep.subr.bf16.mxu0 0
      %1779 = vmatpush1.bf16.msra.mxu0 0
      %1780 = vmatprep.subr.bf16.mxu0 %v1703
      %1781 = vmatpush1.bf16.msra.mxu0 %v1702
      %1782 = vmatprep.subr.bf16.mxu0 %v1701
      %1783 = vmatpush1.bf16.msra.mxu0 %v1700
      %1784 = vmatprep.subr.bf16.mxu0 0
      %1785 = vmatpush2.bf16.msra.mxu0 0
      %1786 = vmatprep.subr.bf16.mxu0 0
      %1787 = vmatpush2.bf16.msra.mxu0 0
      %1788 = vmatprep.subr.bf16.mxu0 0
      %1789 = vmatpush2.bf16.msra.mxu0 0
      %1790 = vmatprep.subr.bf16.mxu0 0
      %1791 = vmatpush2.bf16.msra.mxu0 0
      %1792 = vmatprep.subr.bf16.mxu0 0
      %1793 = vmatpush2.bf16.msra.mxu0 0
      %1794 = vmatprep.subr.bf16.mxu0 0
      %1795 = vmatpush2.bf16.msra.mxu0 0
      %1796 = vmatprep.subr.bf16.mxu0 0
      %1797 = vmatpush2.bf16.msra.mxu0 0
      %1798 = vmatprep.subr.bf16.mxu0 0
      %1799 = vmatpush2.bf16.msra.mxu0 0
      %1800 = vmatprep.mubr.bf16.mxu0 0
      %1801 = vmatmul.mubr.bf16.gmra.mxu0 %v1766
      %v1802 = vpop.f32.mrf.mxu0
      %v1803 = vadd.f32 0.0, %v1802
      %v1804 = vpop.f32.mrf.mxu0
      %v1805 = vadd.f32 0.0, %v1804
      %v1806 = vpop.f32.mrf.mxu0
      %v1807 = vadd.f32 0.0, %v1806
      %v1808 = vpop.f32.mrf.mxu0
      %v1809 = vadd.f32 0.0, %v1808
      %1810 = vdwg.mxu0
      %v1811 = vmax.f32 %v1750, %v1803
      %v1812 = vmax.f32 %v1752, %v1805
      %v1813 = vmax.f32 %v1754, %v1807
      %v1814 = vmax.f32 %v1756, %v1809
      %v1815 = vpack.c.bf16 %v1813, %v1811
      %v1816 = vpack.c.bf16 %v1814, %v1812
      %v1817 = vld [vmem:[%s5] sm:$0xf]
      %v1818 = vld [vmem:[%s5 + $0x4] sm:$0xf]
      %v1819 = vld [vmem:[%s5 + $0x8] sm:$0xf]
      %v1820 = vld [vmem:[%s5 + $0xc] sm:$0xf]
      %v1821 = vld [vmem:[%s5 + $0x10] sm:$0xf]
      %v1822 = vld [vmem:[%s5 + $0x14] sm:$0xf]
      %v1823 = vld [vmem:[%s5 + $0x18] sm:$0xf]
      %v1824 = vld [vmem:[%s5 + $0x1c] sm:$0xf]
      %v1825 = vld [vmem:[%s5 + $0x20] sm:$0xf]
      %v1826 = vld [vmem:[%s5 + $0x24] sm:$0xf]
      %v1827 = vld [vmem:[%s5 + $0x28] sm:$0xf]
      %v1828 = vld [vmem:[%s5 + $0x2c] sm:$0xf]
      %v1829 = vld [vmem:[%s5 + $0x30] sm:$0xf]
      %v1830 = vld [vmem:[%s5 + $0x34] sm:$0xf]
      %v1831 = vld [vmem:[%s5 + $0x38] sm:$0xf]
      %v1832 = vld [vmem:[%s5 + $0x3c] sm:$0xf]
      %v1833 = vld [vmem:[%s5 + $0x40] sm:$0xf]
      %v1834 = vld [vmem:[%s5 + $0x44] sm:$0xf]
      %v1835 = vld [vmem:[%s5 + $0x48] sm:$0xf]
      %v1836 = vld [vmem:[%s5 + $0x4c] sm:$0xf]
      %v1837 = vld [vmem:[%s5 + $0x50] sm:$0xf]
      %v1838 = vld [vmem:[%s5 + $0x54] sm:$0xf]
      %v1839 = vld [vmem:[%s5 + $0x58] sm:$0xf]
      %v1840 = vld [vmem:[%s5 + $0x5c] sm:$0xf]
      %v1841 = vld [vmem:[%s5 + $0x60] sm:$0xf]
      %v1842 = vld [vmem:[%s5 + $0x64] sm:$0xf]
      %v1843 = vld [vmem:[%s5 + $0x68] sm:$0xf]
      %v1844 = vld [vmem:[%s5 + $0x6c] sm:$0xf]
      %v1845 = vld [vmem:[%s5 + $0x70] sm:$0xf]
      %v1846 = vld [vmem:[%s5 + $0x74] sm:$0xf]
      %v1847 = vld [vmem:[%s5 + $0x78] sm:$0xf]
      %v1848 = vld [vmem:[%s5 + $0x7c] sm:$0xf]
      %v1881 = vunpack.c.l.b16 %v1817
      %v1882 = vunpack.c.l.b16 %v1818
      %v1883 = vunpack.c.l.b16 %v1819
      %v1884 = vunpack.c.l.b16 %v1820
      %v1885 = vunpack.c.l.b16 %v1821
      %v1886 = vunpack.c.l.b16 %v1822
      %v1887 = vunpack.c.l.b16 %v1823
      %v1888 = vunpack.c.l.b16 %v1824
      %v1889 = vunpack.c.l.b16 %v1825
      %v1890 = vunpack.c.l.b16 %v1826
      %v1891 = vunpack.c.l.b16 %v1827
      %v1892 = vunpack.c.l.b16 %v1828
      %v1893 = vunpack.c.l.b16 %v1829
      %v1894 = vunpack.c.l.b16 %v1830
      %v1895 = vunpack.c.l.b16 %v1831
      %v1896 = vunpack.c.l.b16 %v1832
      %v1897 = vunpack.c.l.b16 %v1833
      %v1898 = vunpack.c.l.b16 %v1834
      %v1899 = vunpack.c.l.b16 %v1835
      %v1900 = vunpack.c.l.b16 %v1836
      %v1901 = vunpack.c.l.b16 %v1837
      %v1902 = vunpack.c.l.b16 %v1838
      %v1903 = vunpack.c.l.b16 %v1839
      %v1904 = vunpack.c.l.b16 %v1840
      %v1905 = vunpack.c.l.b16 %v1841
      %v1906 = vunpack.c.l.b16 %v1842
      %v1907 = vunpack.c.l.b16 %v1843
      %v1908 = vunpack.c.l.b16 %v1844
      %v1909 = vunpack.c.l.b16 %v1845
      %v1910 = vunpack.c.l.b16 %v1846
      %v1911 = vunpack.c.l.b16 %v1847
      %v1912 = vunpack.c.l.b16 %v1848
      %v1913 = vpack.c.b16 %v1882, %v1881
      %v1914 = vpack.c.b16 %v1884, %v1883
      %v1915 = vpack.c.b16 %v1886, %v1885
      %v1916 = vpack.c.b16 %v1888, %v1887
      %v1917 = vpack.c.b16 %v1890, %v1889
      %v1918 = vpack.c.b16 %v1892, %v1891
      %v1919 = vpack.c.b16 %v1894, %v1893
      %v1920 = vpack.c.b16 %v1896, %v1895
      %v1921 = vpack.c.b16 %v1898, %v1897
      %v1922 = vpack.c.b16 %v1900, %v1899
      %v1923 = vpack.c.b16 %v1902, %v1901
      %v1924 = vpack.c.b16 %v1904, %v1903
      %v1925 = vpack.c.b16 %v1906, %v1905
      %v1926 = vpack.c.b16 %v1908, %v1907
      %v1927 = vpack.c.b16 %v1910, %v1909
      %v1928 = vpack.c.b16 %v1912, %v1911
      %1945 = vmatprep.subr.bf16.mxu0 0
      %1946 = vmatpush1.bf16.msra.mxu0 %v1920
      %1947 = vmatprep.subr.bf16.mxu0 0
      %1948 = vmatpush1.bf16.msra.mxu0 %v1919
      %1949 = vmatprep.subr.bf16.mxu0 0
      %1950 = vmatpush1.bf16.msra.mxu0 %v1918
      %1951 = vmatprep.subr.bf16.mxu0 0
      %1952 = vmatpush1.bf16.msra.mxu0 %v1917
      %1953 = vmatprep.subr.bf16.mxu0 0
      %1954 = vmatpush1.bf16.msra.mxu0 %v1916
      %1955 = vmatprep.subr.bf16.mxu0 0
      %1956 = vmatpush1.bf16.msra.mxu0 %v1915
      %1957 = vmatprep.subr.bf16.mxu0 0
      %1958 = vmatpush1.bf16.msra.mxu0 %v1914
      %1959 = vmatprep.subr.bf16.mxu0 0
      %1960 = vmatpush1.bf16.msra.mxu0 %v1913
      %1961 = vmatprep.subr.bf16.mxu0 0
      %1962 = vmatpush2.bf16.msra.mxu0 %v1928
      %1963 = vmatprep.subr.bf16.mxu0 0
      %1964 = vmatpush2.bf16.msra.mxu0 %v1927
      %1965 = vmatprep.subr.bf16.mxu0 0
      %1966 = vmatpush2.bf16.msra.mxu0 %v1926
      %1967 = vmatprep.subr.bf16.mxu0 0
      %1968 = vmatpush2.bf16.msra.mxu0 %v1925
      %1969 = vmatprep.subr.bf16.mxu0 0
      %1970 = vmatpush2.bf16.msra.mxu0 %v1924
      %1971 = vmatprep.subr.bf16.mxu0 0
      %1972 = vmatpush2.bf16.msra.mxu0 %v1923
      %1973 = vmatprep.subr.bf16.mxu0 0
      %1974 = vmatpush2.bf16.msra.mxu0 %v1922
      %1975 = vmatprep.subr.bf16.mxu0 0
      %1976 = vmatpush2.bf16.msra.mxu0 %v1921
      %1977 = vmatprep.mubr.bf16.mxu0 %v1816
      %1978 = vmatmul.mubr.bf16.gmra.mxu0 %v1815
      %v1979 = vpop.f32.mrf.mxu0
      %v1980 = vadd.f32 0.0, %v1979
      %v1981 = vpop.f32.mrf.mxu0
      %v1982 = vpop.f32.mrf.mxu0
      %v1983 = vadd.f32 0.0, %v1982
      %v1984 = vpop.f32.mrf.mxu0
      %1985 = vdwg.mxu0
      %v1986 = vld [vmem:[%s6] sm:$0xf]
      %v1987 = vld [vmem:[%s6 + $0x4] sm:$0xf]
      %v1988 = vld [vmem:[%s6 + $0x8] sm:$0xf]
      %v1989 = vld [vmem:[%s6 + $0xc] sm:$0xf]
      %v1990 = vld [vmem:[%s6 + $0x10] sm:$0xf]
      %v1991 = vld [vmem:[%s6 + $0x14] sm:$0xf]
      %v1992 = vld [vmem:[%s6 + $0x18] sm:$0xf]
      %v1993 = vld [vmem:[%s6 + $0x1c] sm:$0xf]
      %v1994 = vld [vmem:[%s6 + $0x20] sm:$0xf]
      %v1995 = vld [vmem:[%s6 + $0x24] sm:$0xf]
      %v1996 = vld [vmem:[%s6 + $0x28] sm:$0xf]
      %v1997 = vld [vmem:[%s6 + $0x2c] sm:$0xf]
      %v1998 = vld [vmem:[%s6 + $0x30] sm:$0xf]
      %v1999 = vld [vmem:[%s6 + $0x34] sm:$0xf]
      %v2000 = vld [vmem:[%s6 + $0x38] sm:$0xf]
      %v2001 = vld [vmem:[%s6 + $0x3c] sm:$0xf]
      %v2002 = vld [vmem:[%s6 + $0x40] sm:$0xf]
      %v2003 = vld [vmem:[%s6 + $0x44] sm:$0xf]
      %v2004 = vld [vmem:[%s6 + $0x48] sm:$0xf]
      %v2005 = vld [vmem:[%s6 + $0x4c] sm:$0xf]
      %v2006 = vld [vmem:[%s6 + $0x50] sm:$0xf]
      %v2007 = vld [vmem:[%s6 + $0x54] sm:$0xf]
      %v2008 = vld [vmem:[%s6 + $0x58] sm:$0xf]
      %v2009 = vld [vmem:[%s6 + $0x5c] sm:$0xf]
      %v2010 = vld [vmem:[%s6 + $0x60] sm:$0xf]
      %v2011 = vld [vmem:[%s6 + $0x64] sm:$0xf]
      %v2012 = vld [vmem:[%s6 + $0x68] sm:$0xf]
      %v2013 = vld [vmem:[%s6 + $0x6c] sm:$0xf]
      %v2014 = vld [vmem:[%s6 + $0x70] sm:$0xf]
      %v2015 = vld [vmem:[%s6 + $0x74] sm:$0xf]
      %v2016 = vld [vmem:[%s6 + $0x78] sm:$0xf]
      %v2017 = vld [vmem:[%s6 + $0x7c] sm:$0xf]
      %v2050 = vunpack.c.l.b16 %v1986
      %v2051 = vunpack.c.l.b16 %v1987
      %v2052 = vunpack.c.l.b16 %v1988
      %v2053 = vunpack.c.l.b16 %v1989
      %v2054 = vunpack.c.l.b16 %v1990
      %v2055 = vunpack.c.l.b16 %v1991
      %v2056 = vunpack.c.l.b16 %v1992
      %v2057 = vunpack.c.l.b16 %v1993
      %v2058 = vunpack.c.l.b16 %v1994
      %v2059 = vunpack.c.l.b16 %v1995
      %v2060 = vunpack.c.l.b16 %v1996
      %v2061 = vunpack.c.l.b16 %v1997
      %v2062 = vunpack.c.l.b16 %v1998
      %v2063 = vunpack.c.l.b16 %v1999
      %v2064 = vunpack.c.l.b16 %v2000
      %v2065 = vunpack.c.l.b16 %v2001
      %v2066 = vunpack.c.l.b16 %v2002
      %v2067 = vunpack.c.l.b16 %v2003
      %v2068 = vunpack.c.l.b16 %v2004
      %v2069 = vunpack.c.l.b16 %v2005
      %v2070 = vunpack.c.l.b16 %v2006
      %v2071 = vunpack.c.l.b16 %v2007
      %v2072 = vunpack.c.l.b16 %v2008
      %v2073 = vunpack.c.l.b16 %v2009
      %v2074 = vunpack.c.l.b16 %v2010
      %v2075 = vunpack.c.l.b16 %v2011
      %v2076 = vunpack.c.l.b16 %v2012
      %v2077 = vunpack.c.l.b16 %v2013
      %v2078 = vunpack.c.l.b16 %v2014
      %v2079 = vunpack.c.l.b16 %v2015
      %v2080 = vunpack.c.l.b16 %v2016
      %v2081 = vunpack.c.l.b16 %v2017
      %v2082 = vpack.c.b16 %v2051, %v2050
      %v2083 = vpack.c.b16 %v2053, %v2052
      %v2084 = vpack.c.b16 %v2055, %v2054
      %v2085 = vpack.c.b16 %v2057, %v2056
      %v2086 = vpack.c.b16 %v2059, %v2058
      %v2087 = vpack.c.b16 %v2061, %v2060
      %v2088 = vpack.c.b16 %v2063, %v2062
      %v2089 = vpack.c.b16 %v2065, %v2064
      %v2090 = vpack.c.b16 %v2067, %v2066
      %v2091 = vpack.c.b16 %v2069, %v2068
      %v2092 = vpack.c.b16 %v2071, %v2070
      %v2093 = vpack.c.b16 %v2073, %v2072
      %v2094 = vpack.c.b16 %v2075, %v2074
      %v2095 = vpack.c.b16 %v2077, %v2076
      %v2096 = vpack.c.b16 %v2079, %v2078
      %v2097 = vpack.c.b16 %v2081, %v2080
      %2114 = vmatprep.subr.bf16.mxu0 0
      %2115 = vmatpush1.bf16.msra.mxu0 %v2089
      %2116 = vmatprep.subr.bf16.mxu0 0
      %2117 = vmatpush1.bf16.msra.mxu0 %v2088
      %2118 = vmatprep.subr.bf16.mxu0 0
      %2119 = vmatpush1.bf16.msra.mxu0 %v2087
      %2120 = vmatprep.subr.bf16.mxu0 0
      %2121 = vmatpush1.bf16.msra.mxu0 %v2086
      %2122 = vmatprep.subr.bf16.mxu0 0
      %2123 = vmatpush1.bf16.msra.mxu0 %v2085
      %2124 = vmatprep.subr.bf16.mxu0 0
      %2125 = vmatpush1.bf16.msra.mxu0 %v2084
      %2126 = vmatprep.subr.bf16.mxu0 0
      %2127 = vmatpush1.bf16.msra.mxu0 %v2083
      %2128 = vmatprep.subr.bf16.mxu0 0
      %2129 = vmatpush1.bf16.msra.mxu0 %v2082
      %2130 = vmatprep.subr.bf16.mxu0 0
      %2131 = vmatpush2.bf16.msra.mxu0 %v2097
      %2132 = vmatprep.subr.bf16.mxu0 0
      %2133 = vmatpush2.bf16.msra.mxu0 %v2096
      %2134 = vmatprep.subr.bf16.mxu0 0
      %2135 = vmatpush2.bf16.msra.mxu0 %v2095
      %2136 = vmatprep.subr.bf16.mxu0 0
      %2137 = vmatpush2.bf16.msra.mxu0 %v2094
      %2138 = vmatprep.subr.bf16.mxu0 0
      %2139 = vmatpush2.bf16.msra.mxu0 %v2093
      %2140 = vmatprep.subr.bf16.mxu0 0
      %2141 = vmatpush2.bf16.msra.mxu0 %v2092
      %2142 = vmatprep.subr.bf16.mxu0 0
      %2143 = vmatpush2.bf16.msra.mxu0 %v2091
      %2144 = vmatprep.subr.bf16.mxu0 0
      %2145 = vmatpush2.bf16.msra.mxu0 %v2090
      %2146 = vmatprep.mubr.bf16.mxu0 %v1816
      %2147 = vmatmul.mubr.bf16.gmra.mxu0 %v1815
      %v2148 = vpop.f32.mrf.mxu0
      %v2149 = vadd.f32 0.0, %v2148
      %v2150 = vpop.f32.mrf.mxu0
      %v2151 = vpop.f32.mrf.mxu0
      %v2152 = vadd.f32 0.0, %v2151
      %v2153 = vpop.f32.mrf.mxu0
      %2154 = vdwg.mxu0
      %v2155 = vmax.f32 %v1980, %v2149
      %v2156 = vmax.f32 %v1983, %v2152
      %v2157 = vpack.c.bf16 %v2156, %v2155
      %v2159 = vunpack.c.l.b16 %v2157
      %v2160 = vunpack.c.h.b16 %v2157
      %v2161 = vpack.c.b16 %v2159, %v2159
      %v2162 = vpack.c.b16 %v2160, %v2160
      %2165 = vst [vmem:[%s278] sm:$0xf] %v2161
      %2166 = vst [vmem:[%s278 + $0x4] sm:$0xf] %v2162
      %p2167 = scmp.lt.s32.totalorder %s18, 1
      %s2168 = scalar_select %p2167, %s18, 1
      %s2169 = smul.addr %s2168, 2
      %s2170 = smul.addr %s2169, 4
      %s2171 = scalar_lea.vmem %s7, %s2170
      // Predicated region
      $region49: #{image_model_forward.3} parent=47 // pred_check
        %p2172 = pneg %p188
      $region50: #{image_model_forward.3} parent=47 // pred_check_branch
        %2174 = sbr.rel (%p2172) target = $region52
      $region51: #{image_model_forward.3} parent=47 // pred_region
        _
      $region52: #{image_model_forward.3} parent=47 // pred_fallthru
        _
    $region48: #{image_model_forward.3} parent=5 // pred_fallthru
      _
    %p2175 = scmp.le.s32.totalorder 2, %s13
    // Predicated region
    $region53: #{image_model_forward.3} parent=5 // pred_check
      %p2176 = pneg %p2175
    $region54: #{image_model_forward.3} parent=5 // pred_check_branch
      %2178 = sbr.rel (%p2176) target = $region56
    $region55: #{image_model_forward.3} parent=5 // pred_region
      %s2179 = ssub.s32 %s13, 2
      // Predicated region
      $region57: #{image_model_forward.3} parent=55 // pred_check
        %p2180 = pneg %p194
      $region58: #{image_model_forward.3} parent=55 // pred_check_branch
        %2182 = sbr.rel (%p2180) target = $region60
      $region59: #{image_model_forward.3} parent=55 // pred_region
        %p2183 = scmp.lt.s32.totalorder %s19, 1
        %s2184 = scalar_select %p2183, %s19, 1
        %s2185 = smul.addr %s2184, 2
        %s2186 = smul.addr %s2185, 4
        %s2187 = scalar_lea.vmem %s7, %s2186
      $region60: #{image_model_forward.3} parent=55 // pred_fallthru
        _
    $region56: #{image_model_forward.3} parent=5 // pred_fallthru
      _
  $region6: #{image_model_forward.3} parent=0 // loop_footer
    %s17 = sadd.s32 1, %s13
  $region7: #{image_model_forward.3} parent=0 // loop_footer_branch
    %12 = sbr.rel target = $region3
  $region8: #{image_model_forward.3} parent=0 // loop_exit
    _

// kernel: tile.23
$region0: #{tile.23}
  #allocation0 [shape = 's32[1]{0}', space=sflag, size = 0x4, scoped, tag = 'scoped memory for tile.23']
  %s0 = inlined_call_operand.vmem [shape: f32[16], index: 0, kind: input, shape index: {}]
  %s1 = inlined_call_operand.vmem [shape: f32[8,16], index: 1, kind: output, shape index: {}]
  // Predicated region
  $region2: #{tile.23} parent=0 // pred_check
    _
  $region3: #{tile.23} parent=0 // pred_check_branch
    %3 = sbr.rel (0) target = $region5
  $region4: #{tile.23} parent=0 // pred_region
    _
  $region5: #{tile.23} parent=0 // pred_fallthru
    _
  %v4 = vld [vmem:[%s0] ss:$0 sm:$0xff]
  %5 = vst [vmem:[%s1] sm:$0xff] %v4

// kernel: tile.24
$region0: #{tile.24}
  %s0 = inlined_call_operand.vmem [shape: f32[8,16], index: 0, kind: input, shape index: {}]
  %s1 = inlined_call_operand.vmem [shape: f32[1,128], index: 1, kind: output, shape index: {}]
  $region1: #{tile.24} parent=0
    #allocation0 [shape = 'u8[4096]{0}', space=vmem, size = 0x1000, scoped, tag = 'scoped mem for output reshape']
    %v2 = vld [vmem:[%s0] sm:$0x1]
    %vm3 = vcmask 130048
    %4 = vst.msk [vmem:[#allocation0] sm:$0x1] %vm3, %v2
    %s5 = scalar_lea.vmem %s0, 7
    %v6 = vld [vmem:[%s5] sm:$0x1]
    %7 = vrot.lane.b32.xlu0 %v6, 112
    %v8 = vpop.permute.xlu0 %7
    %vm9 = vcmask 1048448
    %10 = vst.msk [vmem:[#allocation0] sm:$0x1] %vm9, %v8
    %s11 = scalar_lea.vmem %s0, 6
    %v12 = vld [vmem:[%s11] sm:$0x1]
    %13 = vrot.lane.b32.xlu0 %v12, 96
    %v14 = vpop.permute.xlu0 %13
    %vm15 = vcmask 917248
    %16 = vst.msk [vmem:[#allocation0] sm:$0x1] %vm15, %v14
    %s17 = scalar_lea.vmem %s0, 5
    %v18 = vld [vmem:[%s17] sm:$0x1]
    %19 = vrot.lane.b32.xlu0 %v18, 80
    %v20 = vpop.permute.xlu0 %19
    %vm21 = vcmask 786048
    %22 = vst.msk [vmem:[#allocation0] sm:$0x1] %vm21, %v20
    %s23 = scalar_lea.vmem %s0, 4
    %v24 = vld [vmem:[%s23] sm:$0x1]
    %25 = vrot.lane.b32.xlu0 %v24, 64
    %v26 = vpop.permute.xlu0 %25
    %vm27 = vcmask 654848
    %28 = vst.msk [vmem:[#allocation0] sm:$0x1] %vm27, %v26
    %s29 = scalar_lea.vmem %s0, 3
    %v30 = vld [vmem:[%s29] sm:$0x1]
    %31 = vrot.lane.b32.xlu0 %v30, 48
    %v32 = vpop.permute.xlu0 %31
    %vm33 = vcmask 523648
    %34 = vst.msk [vmem:[#allocation0] sm:$0x1] %vm33, %v32
    %s35 = scalar_lea.vmem %s0, 2
    %v36 = vld [vmem:[%s35] sm:$0x1]
    %37 = vrot.lane.b32.xlu0 %v36, 32
    %v38 = vpop.permute.xlu0 %37
    %vm39 = vcmask 392448
    %40 = vst.msk [vmem:[#allocation0] sm:$0x1] %vm39, %v38
    %s41 = scalar_lea.vmem %s0, 1
    %v42 = vld [vmem:[%s41] sm:$0x1]
    %43 = vrot.lane.b32.xlu0 %v42, 16
    %v44 = vpop.permute.xlu0 %43
    %vm45 = vcmask 261248
    %46 = vst.msk [vmem:[#allocation0] sm:$0x1] %vm45, %v44
    %s48 = sshll.u32 1, 1
    %s49 = ssub.s32 %s48, 1
    %v51 = vld [vmem:[#allocation0] sm:%s49]
    %s52 = sshll.u32 1, 1
    %s53 = ssub.s32 %s52, 1
    %54 = vst [vmem:[%s1] sm:%s53] %v51

// kernel: image_model_forward.4
$region0: #{image_model_forward.4}
  #allocation0 [shape = 'u32[]', space=smem, size = 0x4, offset = 0x4, fixed_abs, tag = 'smem constant byte address 0x4 - core index']
  #allocation1 [shape = 'u32[144,128]{1,0:T(1,128)}', space=vmem, size = 0x12000, scoped, tag = 'internal scratch']
  %s0 = inlined_call_operand.vmem [shape: bf16[2,2,2,9,72], index: 0, kind: input, shape index: {}]
  %s1 = inlined_call_operand.vmem [shape: bf16[9,64,128], index: 1, kind: input, shape index: {}]
  %s2 = inlined_call_operand.vmem [shape: f32[1,128], index: 2, kind: input, shape index: {}]
  %s3 = inlined_call_operand.vmem [shape: bf16[4,8], index: 3, kind: input, shape index: {}]
  %s4 = inlined_call_operand.vmem [shape: bf16[4,8], index: 4, kind: input, shape index: {}]
  %s5 = inlined_call_operand.vmem [shape: bf16[128,64], index: 5, kind: input, shape index: {}]
  %s6 = inlined_call_operand.vmem [shape: bf16[128,64], index: 6, kind: input, shape index: {}]
  %s7 = inlined_call_operand.vmem [shape: bf16[2,4,64], index: 7, kind: output, shape index: {}]
  %s8 = sld [smem:[#allocation0]]
  $region61: #{image_model_forward.4} parent=0
    _
  %s10 = ssub.s32 1, %s8
  %s11 = scalar_select 0, %s10, %s8
  loop: start=0, step=1, limit=4
  $region2: #{image_model_forward.4} parent=0 // loop_pre_header
    _
  $region3: #{image_model_forward.4} parent=0 // loop_header
    %s13 = sphi 0, %s17
    %p14 = scmp.ge.s32.totalorder %s13, 4
    %s23 = sphi 0, %s25
    %s26 = sphi 0, %s23
    %s27 = sphi 0, %s26
    %s43 = sphi 0, %s27
    %s47 = sphi 0, %s47
    %s49 = sphi 0, %s47
    %s50 = sphi 0, %s49
    %s64 = sphi 0, %s50
    %s68 = sphi 0, %s68
    %s70 = sphi 0, %s68
    %s71 = sphi 0, %s70
    %s85 = sphi 0, %s71
    %s89 = sphi 0, %s89
    %s91 = sphi 0, %s89
    %s92 = sphi 0, %s91
    %s106 = sphi 0, %s92
    %s110 = sphi 0, %s110
    %s112 = sphi 0, %s110
    %s113 = sphi 0, %s112
    %s127 = sphi 0, %s113
    %s131 = sphi 0, %s131
    %s133 = sphi 0, %s131
    %s134 = sphi 0, %s133
    %s148 = sphi 0, %s134
    %s152 = sphi 0, %s152
    %s154 = sphi 0, %s152
    %s155 = sphi 0, %s154
    %s169 = sphi 0, %s155
    %s175 = sphi 0, %s177
    %s178 = sphi 0, %s175
    %s179 = sphi 0, %s178
    %s195 = sphi 0, %s179
  $region4: #{image_model_forward.4} parent=0 // loop_header_branch
    %16 = sbr.rel (%p14) target = $region8
  $region5: #{image_model_forward.4} parent=0 // loop_body
    %s18 = ssub.s32 %s13, 1
    %s19 = ssub.s32 %s13, 2
    %s20 = sadd.s32 %s13, 1
    %s21 = ssub.s32 %s13, %s20
    %p22 = scmp.eq.s32.totalorder %s21, 0
    %s24 = sadd.s32 %s23, 1
    %s25 = scalar_select %p22, %s23, %s24
    %p28 = pneg %p22
    %p29 = scmp.eq.s32.totalorder %s13, 1
    %p30 = por %p28, %p29
    %p31 = scmp.ne.s32.totalorder %s23, %s26
    %p32 = scmp.eq.s32.totalorder %s13, 0
    %p33 = por %p31, %p32
    %p34 = scmp.ne.s32.totalorder %s23, %s26
    %p35 = scmp.eq.s32.totalorder %s18, 1
    %p36 = por %p34, %p35
    %p37 = scmp.ne.s32.totalorder %s26, %s27
    %p38 = scmp.eq.s32.totalorder %s18, 0
    %p39 = por %p37, %p38
    %p40 = scmp.ne.s32.totalorder %s26, %s27
    %p41 = scmp.eq.s32.totalorder %s19, 1
    %p42 = por %p40, %p41
    %p44 = scmp.ne.s32.totalorder %s27, %s43
    %p45 = scmp.eq.s32.totalorder %s19, 0
    %p46 = por %p44, %p45
    %s48 = sadd.s32 %s47, 1
    %p51 = scmp.eq.s32.totalorder %s13, 1
    %p52 = scmp.ne.s32.totalorder %s47, %s49
    %p53 = scmp.eq.s32.totalorder %s13, 0
    %p54 = por %p52, %p53
    %p55 = scmp.ne.s32.totalorder %s47, %s49
    %p56 = scmp.eq.s32.totalorder %s18, 1
    %p57 = por %p55, %p56
    %p58 = scmp.ne.s32.totalorder %s49, %s50
    %p59 = scmp.eq.s32.totalorder %s18, 0
    %p60 = por %p58, %p59
    %p61 = scmp.ne.s32.totalorder %s49, %s50
    %p62 = scmp.eq.s32.totalorder %s19, 1
    %p63 = por %p61, %p62
    %p65 = scmp.ne.s32.totalorder %s50, %s64
    %p66 = scmp.eq.s32.totalorder %s19, 0
    %p67 = por %p65, %p66
    %s69 = sadd.s32 %s68, 1
    %p72 = scmp.eq.s32.totalorder %s13, 1
    %p73 = scmp.ne.s32.totalorder %s68, %s70
    %p74 = scmp.eq.s32.totalorder %s13, 0
    %p75 = por %p73, %p74
    %p76 = scmp.ne.s32.totalorder %s68, %s70
    %p77 = scmp.eq.s32.totalorder %s18, 1
    %p78 = por %p76, %p77
    %p79 = scmp.ne.s32.totalorder %s70, %s71
    %p80 = scmp.eq.s32.totalorder %s18, 0
    %p81 = por %p79, %p80
    %p82 = scmp.ne.s32.totalorder %s70, %s71
    %p83 = scmp.eq.s32.totalorder %s19, 1
    %p84 = por %p82, %p83
    %p86 = scmp.ne.s32.totalorder %s71, %s85
    %p87 = scmp.eq.s32.totalorder %s19, 0
    %p88 = por %p86, %p87
    %s90 = sadd.s32 %s89, 1
    %p93 = scmp.eq.s32.totalorder %s13, 1
    %p94 = scmp.ne.s32.totalorder %s89, %s91
    %p95 = scmp.eq.s32.totalorder %s13, 0
    %p96 = por %p94, %p95
    %p97 = scmp.ne.s32.totalorder %s89, %s91
    %p98 = scmp.eq.s32.totalorder %s18, 1
    %p99 = por %p97, %p98
    %p100 = scmp.ne.s32.totalorder %s91, %s92
    %p101 = scmp.eq.s32.totalorder %s18, 0
    %p102 = por %p100, %p101
    %p103 = scmp.ne.s32.totalorder %s91, %s92
    %p104 = scmp.eq.s32.totalorder %s19, 1
    %p105 = por %p103, %p104
    %p107 = scmp.ne.s32.totalorder %s92, %s106
    %p108 = scmp.eq.s32.totalorder %s19, 0
    %p109 = por %p107, %p108
    %s111 = sadd.s32 %s110, 1
    %p114 = scmp.eq.s32.totalorder %s13, 1
    %p115 = scmp.ne.s32.totalorder %s110, %s112
    %p116 = scmp.eq.s32.totalorder %s13, 0
    %p117 = por %p115, %p116
    %p118 = scmp.ne.s32.totalorder %s110, %s112
    %p119 = scmp.eq.s32.totalorder %s18, 1
    %p120 = por %p118, %p119
    %p121 = scmp.ne.s32.totalorder %s112, %s113
    %p122 = scmp.eq.s32.totalorder %s18, 0
    %p123 = por %p121, %p122
    %p124 = scmp.ne.s32.totalorder %s112, %s113
    %p125 = scmp.eq.s32.totalorder %s19, 1
    %p126 = por %p124, %p125
    %p128 = scmp.ne.s32.totalorder %s113, %s127
    %p129 = scmp.eq.s32.totalorder %s19, 0
    %p130 = por %p128, %p129
    %s132 = sadd.s32 %s131, 1
    %p135 = scmp.eq.s32.totalorder %s13, 1
    %p136 = scmp.ne.s32.totalorder %s131, %s133
    %p137 = scmp.eq.s32.totalorder %s13, 0
    %p138 = por %p136, %p137
    %p139 = scmp.ne.s32.totalorder %s131, %s133
    %p140 = scmp.eq.s32.totalorder %s18, 1
    %p141 = por %p139, %p140
    %p142 = scmp.ne.s32.totalorder %s133, %s134
    %p143 = scmp.eq.s32.totalorder %s18, 0
    %p144 = por %p142, %p143
    %p145 = scmp.ne.s32.totalorder %s133, %s134
    %p146 = scmp.eq.s32.totalorder %s19, 1
    %p147 = por %p145, %p146
    %p149 = scmp.ne.s32.totalorder %s134, %s148
    %p150 = scmp.eq.s32.totalorder %s19, 0
    %p151 = por %p149, %p150
    %s153 = sadd.s32 %s152, 1
    %p156 = scmp.eq.s32.totalorder %s13, 1
    %p157 = scmp.ne.s32.totalorder %s152, %s154
    %p158 = scmp.eq.s32.totalorder %s13, 0
    %p159 = por %p157, %p158
    %p160 = scmp.ne.s32.totalorder %s152, %s154
    %p161 = scmp.eq.s32.totalorder %s18, 1
    %p162 = por %p160, %p161
    %p163 = scmp.ne.s32.totalorder %s154, %s155
    %p164 = scmp.eq.s32.totalorder %s18, 0
    %p165 = por %p163, %p164
    %p166 = scmp.ne.s32.totalorder %s154, %s155
    %p167 = scmp.eq.s32.totalorder %s19, 1
    %p168 = por %p166, %p167
    %p170 = scmp.ne.s32.totalorder %s155, %s169
    %p171 = scmp.eq.s32.totalorder %s19, 0
    %p172 = por %p170, %p171
    %s173 = ssub.s32 %s13, %s20
    %p174 = scmp.eq.s32.totalorder %s173, 0
    %s176 = sadd.s32 %s175, 1
    %s177 = scalar_select %p174, %s175, %s176
    %p180 = pneg %p174
    %p181 = scmp.eq.s32.totalorder %s13, 1
    %p182 = por %p180, %p181
    %p183 = scmp.ne.s32.totalorder %s175, %s178
    %p184 = scmp.eq.s32.totalorder %s13, 0
    %p185 = por %p183, %p184
    %p186 = scmp.ne.s32.totalorder %s175, %s178
    %p187 = scmp.eq.s32.totalorder %s18, 1
    %p188 = por %p186, %p187
    %p189 = scmp.ne.s32.totalorder %s178, %s179
    %p190 = scmp.eq.s32.totalorder %s18, 0
    %p191 = por %p189, %p190
    %p192 = scmp.ne.s32.totalorder %s178, %s179
    %p193 = scmp.eq.s32.totalorder %s19, 1
    %p194 = por %p192, %p193
    %p196 = scmp.ne.s32.totalorder %s179, %s195
    %p197 = scmp.eq.s32.totalorder %s19, 0
    %p198 = por %p196, %p197
    %p199 = scmp.le.s32.totalorder 1, %s13
    %p200 = scmp.lt.s32.totalorder %s13, 3
    %p201 = pnand %p199, %p200
    %p202 = pneg %p201
    // Predicated region
    $region9: #{image_model_forward.4} parent=5 // pred_check
      _
    $region10: #{image_model_forward.4} parent=5 // pred_check_branch
      %204 = sbr.rel (%p201) target = $region12
    $region11: #{image_model_forward.4} parent=5 // pred_region
      %s205 = ssub.s32 %s13, 1
      // Predicated region
      $region13: #{image_model_forward.4} parent=11 // pred_check
        %p206 = pneg %p60
      $region14: #{image_model_forward.4} parent=11 // pred_check_branch
        %208 = sbr.rel (%p206) target = $region16
      $region15: #{image_model_forward.4} parent=11 // pred_region
        _
      $region16: #{image_model_forward.4} parent=11 // pred_fallthru
        _
      // Predicated region
      $region17: #{image_model_forward.4} parent=11 // pred_check
        %p209 = pneg %p81
      $region18: #{image_model_forward.4} parent=11 // pred_check_branch
        %211 = sbr.rel (%p209) target = $region20
      $region19: #{image_model_forward.4} parent=11 // pred_region
        _
      $region20: #{image_model_forward.4} parent=11 // pred_fallthru
        _
      // Predicated region
      $region21: #{image_model_forward.4} parent=11 // pred_check
        %p212 = pneg %p102
      $region22: #{image_model_forward.4} parent=11 // pred_check_branch
        %214 = sbr.rel (%p212) target = $region24
      $region23: #{image_model_forward.4} parent=11 // pred_region
        _
      $region24: #{image_model_forward.4} parent=11 // pred_fallthru
        _
      // Predicated region
      $region25: #{image_model_forward.4} parent=11 // pred_check
        %p215 = pneg %p123
      $region26: #{image_model_forward.4} parent=11 // pred_check_branch
        %217 = sbr.rel (%p215) target = $region28
      $region27: #{image_model_forward.4} parent=11 // pred_region
        _
      $region28: #{image_model_forward.4} parent=11 // pred_fallthru
        _
      // Predicated region
      $region29: #{image_model_forward.4} parent=11 // pred_check
        %p218 = pneg %p144
      $region30: #{image_model_forward.4} parent=11 // pred_check_branch
        %220 = sbr.rel (%p218) target = $region32
      $region31: #{image_model_forward.4} parent=11 // pred_region
        _
      $region32: #{image_model_forward.4} parent=11 // pred_fallthru
        _
      // Predicated region
      $region33: #{image_model_forward.4} parent=11 // pred_check
        %p221 = pneg %p165
      $region34: #{image_model_forward.4} parent=11 // pred_check_branch
        %223 = sbr.rel (%p221) target = $region36
      $region35: #{image_model_forward.4} parent=11 // pred_region
        _
      $region36: #{image_model_forward.4} parent=11 // pred_fallthru
        _
    $region12: #{image_model_forward.4} parent=5 // pred_fallthru
      _
    %p224 = scmp.lt.s32.totalorder %s13, 2
    // Predicated region
    $region37: #{image_model_forward.4} parent=5 // pred_check
      %p225 = pneg %p224
    $region38: #{image_model_forward.4} parent=5 // pred_check_branch
      %227 = sbr.rel (%p225) target = $region40
    $region39: #{image_model_forward.4} parent=5 // pred_region
      // Predicated region
      $region41: #{image_model_forward.4} parent=39 // pred_check
        %p228 = pneg %p33
      $region42: #{image_model_forward.4} parent=39 // pred_check_branch
        %230 = sbr.rel (%p228) target = $region44
      $region43: #{image_model_forward.4} parent=39 // pred_region
        %p231 = scmp.lt.s32.totalorder %s13, 1
        %s232 = scalar_select %p231, %s13, 1
        %s233 = smul.addr %s232, 8
        %s234 = smul.addr %s233, 4
        %s235 = scalar_lea.vmem %s0, %s234
      $region44: #{image_model_forward.4} parent=39 // pred_fallthru
        _
    $region40: #{image_model_forward.4} parent=5 // pred_fallthru
      _
    %p236 = scmp.le.s32.totalorder 1, %s13
    %p237 = scmp.lt.s32.totalorder %s13, 3
    %p238 = pnand %p236, %p237
    %p239 = pneg %p238
    // Predicated region
    $region45: #{image_model_forward.4} parent=5 // pred_check
      _
    $region46: #{image_model_forward.4} parent=5 // pred_check_branch
      %241 = sbr.rel (%p238) target = $region48
    $region47: #{image_model_forward.4} parent=5 // pred_region
      %s242 = ssub.s32 %s13, 1
      %p243 = scmp.lt.s32.totalorder %s18, 1
      %s244 = scalar_select %p243, %s18, 1
      %s245 = smul.addr %s244, 8
      %s246 = smul.addr %s245, 4
      %s247 = scalar_lea.vmem %s0, %s246
      %p248 = pneg %p39
      %p249 = pneg %p36
      %p250 = pneg %p60
      %p251 = pneg %p57
      %p252 = pneg %p81
      %p253 = pneg %p78
      %p254 = pneg %p102
      %p255 = pneg %p99
      %p256 = pneg %p123
      %p257 = pneg %p120
      %p258 = pneg %p144
      %p259 = pneg %p141
      %p260 = pneg %p165
      %p261 = pneg %p162
      %p262 = pneg %p191
      %p263 = pneg %p188
      %p264 = scmp.lt.s32.totalorder %s18, 1
      %s265 = scalar_select %p264, %s18, 1
      %s266 = smul.addr %s265, 2
      %s267 = scalar_lea.vmem %s7, %s266
      %p268 = scmp.lt.s32.totalorder %s18, 1
      %s269 = scalar_select %p268, %s18, 1
      %s270 = smul.addr %s269, 8
      %s271 = smul.addr %s270, 4
      %s272 = scalar_lea.vmem %s0, %s271
      %p273 = scmp.lt.s32.totalorder %s18, 1
      %s274 = scalar_select %p273, %s18, 1
      %s275 = smul.addr %s274, 2
      %s276 = scalar_lea.vmem %s7, %s275
      %v278 = vld [vmem:[%s272] sm:$0xf]
      %v279 = vld [vmem:[%s1] sm:$0xf]
      %v280 = vld [vmem:[%s1 + $0x4] sm:$0xf]
      %v281 = vld [vmem:[%s1 + $0x8] sm:$0xf]
      %v282 = vld [vmem:[%s1 + $0xc] sm:$0xf]
      %v283 = vld [vmem:[%s1 + $0x10] sm:$0xf]
      %v284 = vld [vmem:[%s1 + $0x14] sm:$0xf]
      %v285 = vld [vmem:[%s1 + $0x18] sm:$0xf]
      %v286 = vld [vmem:[%s1 + $0x1c] sm:$0xf]
      %s287 = scalar_lea.vmem %s272, 8
      %v288 = vld [vmem:[%s287] sm:$0xf]
      %s289 = scalar_lea.vmem %s1, 32
      %v290 = vld [vmem:[%s289] sm:$0xf]
      %v291 = vld [vmem:[%s289 + $0x4] sm:$0xf]
      %v292 = vld [vmem:[%s289 + $0x8] sm:$0xf]
      %v293 = vld [vmem:[%s289 + $0xc] sm:$0xf]
      %v294 = vld [vmem:[%s289 + $0x10] sm:$0xf]
      %v295 = vld [vmem:[%s289 + $0x14] sm:$0xf]
      %v296 = vld [vmem:[%s289 + $0x18] sm:$0xf]
      %v297 = vld [vmem:[%s289 + $0x1c] sm:$0xf]
      %v306 = vunpack.c.l.b16 %v290
      %v307 = vunpack.c.l.b16 %v291
      %v308 = vunpack.c.l.b16 %v292
      %v309 = vunpack.c.l.b16 %v293
      %v310 = vunpack.c.l.b16 %v294
      %v311 = vunpack.c.l.b16 %v295
      %v312 = vunpack.c.l.b16 %v296
      %v313 = vunpack.c.l.b16 %v297
      %v314 = vpack.c.b16 %v307, %v306
      %v315 = vpack.c.b16 %v309, %v308
      %v316 = vpack.c.b16 %v311, %v310
      %v317 = vpack.c.b16 %v313, %v312
      %vm322 = vcmask 523264
      %v324 = vsel %vm322, %v288, 0
      %326 = vmatprep.subr.bf16.mxu0 0
      %327 = vmatpush1.bf16.msra.mxu0 0
      %328 = vmatprep.subr.bf16.mxu0 0
      %329 = vmatpush1.bf16.msra.mxu0 0
      %330 = vmatprep.subr.bf16.mxu0 0
      %331 = vmatpush1.bf16.msra.mxu0 0
      %332 = vmatprep.subr.bf16.mxu0 0
      %333 = vmatpush1.bf16.msra.mxu0 0
      %334 = vmatprep.subr.bf16.mxu0 0
      %335 = vmatpush1.bf16.msra.mxu0 %v317
      %336 = vmatprep.subr.bf16.mxu0 0
      %337 = vmatpush1.bf16.msra.mxu0 %v316
      %338 = vmatprep.subr.bf16.mxu0 0
      %339 = vmatpush1.bf16.msra.mxu0 %v315
      %340 = vmatprep.subr.bf16.mxu0 0
      %341 = vmatpush1.bf16.msra.mxu0 %v314
      %342 = vmatprep.subr.bf16.mxu0 0
      %343 = vmatpush2.bf16.msra.mxu0 0
      %344 = vmatprep.subr.bf16.mxu0 0
      %345 = vmatpush2.bf16.msra.mxu0 0
      %346 = vmatprep.subr.bf16.mxu0 0
      %347 = vmatpush2.bf16.msra.mxu0 0
      %348 = vmatprep.subr.bf16.mxu0 0
      %349 = vmatpush2.bf16.msra.mxu0 0
      %350 = vmatprep.subr.bf16.mxu0 0
      %351 = vmatpush2.bf16.msra.mxu0 0
      %352 = vmatprep.subr.bf16.mxu0 0
      %353 = vmatpush2.bf16.msra.mxu0 0
      %354 = vmatprep.subr.bf16.mxu0 0
      %355 = vmatpush2.bf16.msra.mxu0 0
      %356 = vmatprep.subr.bf16.mxu0 0
      %357 = vmatpush2.bf16.msra.mxu0 0
      %358 = vmatprep.mubr.bf16.mxu0 0
      %359 = vmatmul.mubr.bf16.gmra.mxu0 %v324
      %v360 = vpop.f32.mrf.mxu0
      %v361 = vadd.f32 0.0, %v360
      %v362 = vpop.f32.mrf.mxu0
      %v363 = vpop.f32.mrf.mxu0
      %v364 = vpop.f32.mrf.mxu0
      %365 = vdwg.mxu0
      %v374 = vunpack.c.l.b16 %v279
      %v375 = vunpack.c.l.b16 %v280
      %v376 = vunpack.c.l.b16 %v281
      %v377 = vunpack.c.l.b16 %v282
      %v378 = vunpack.c.l.b16 %v283
      %v379 = vunpack.c.l.b16 %v284
      %v380 = vunpack.c.l.b16 %v285
      %v381 = vunpack.c.l.b16 %v286
      %v382 = vpack.c.b16 %v375, %v374
      %v383 = vpack.c.b16 %v377, %v376
      %v384 = vpack.c.b16 %v379, %v378
      %v385 = vpack.c.b16 %v381, %v380
      %v391 = vsel %vm322, %v278, 0
      %393 = vmatprep.subr.bf16.mxu0 0
      %394 = vmatpush1.bf16.msra.mxu0 0
      %395 = vmatprep.subr.bf16.mxu0 0
      %396 = vmatpush1.bf16.msra.mxu0 0
      %397 = vmatprep.subr.bf16.mxu0 0
      %398 = vmatpush1.bf16.msra.mxu0 0
      %399 = vmatprep.subr.bf16.mxu0 0
      %400 = vmatpush1.bf16.msra.mxu0 0
      %401 = vmatprep.subr.bf16.mxu0 0
      %402 = vmatpush1.bf16.msra.mxu0 %v385
      %403 = vmatprep.subr.bf16.mxu0 0
      %404 = vmatpush1.bf16.msra.mxu0 %v384
      %405 = vmatprep.subr.bf16.mxu0 0
      %406 = vmatpush1.bf16.msra.mxu0 %v383
      %407 = vmatprep.subr.bf16.mxu0 0
      %408 = vmatpush1.bf16.msra.mxu0 %v382
      %409 = vmatprep.subr.bf16.mxu0 0
      %410 = vmatpush2.bf16.msra.mxu0 0
      %411 = vmatprep.subr.bf16.mxu0 0
      %412 = vmatpush2.bf16.msra.mxu0 0
      %413 = vmatprep.subr.bf16.mxu0 0
      %414 = vmatpush2.bf16.msra.mxu0 0
      %415 = vmatprep.subr.bf16.mxu0 0
      %416 = vmatpush2.bf16.msra.mxu0 0
      %417 = vmatprep.subr.bf16.mxu0 0
      %418 = vmatpush2.bf16.msra.mxu0 0
      %419 = vmatprep.subr.bf16.mxu0 0
      %420 = vmatpush2.bf16.msra.mxu0 0
      %421 = vmatprep.subr.bf16.mxu0 0
      %422 = vmatpush2.bf16.msra.mxu0 0
      %423 = vmatprep.subr.bf16.mxu0 0
      %424 = vmatpush2.bf16.msra.mxu0 0
      %425 = vmatprep.mubr.bf16.mxu0 0
      %426 = vmatmul.mubr.bf16.gmra.mxu0 %v391
      %v427 = vpop.f32.mrf.mxu0
      %v428 = vadd.f32 %v361, %v427
      %v429 = vpop.f32.mrf.mxu0
      %v430 = vpop.f32.mrf.mxu0
      %v431 = vpop.f32.mrf.mxu0
      %432 = vdwg.mxu0
      %s433 = scalar_lea.vmem %s1, 64
      %v434 = vld [vmem:[%s433] sm:$0xf]
      %v435 = vld [vmem:[%s433 + $0x4] sm:$0xf]
      %v436 = vld [vmem:[%s433 + $0x8] sm:$0xf]
      %v437 = vld [vmem:[%s433 + $0xc] sm:$0xf]
      %v438 = vld [vmem:[%s433 + $0x10] sm:$0xf]
      %v439 = vld [vmem:[%s433 + $0x14] sm:$0xf]
      %v440 = vld [vmem:[%s433 + $0x18] sm:$0xf]
      %v441 = vld [vmem:[%s433 + $0x1c] sm:$0xf]
      %v443 = vunpack.c.l.b16 %v278
      %v444 = vpack.c.b16 %v443, %v443
      %445 = vrot.lane.b32.xlu0 %v444, 120
      %v446 = vpop.permute.xlu0 %445
      %v455 = vunpack.c.l.b16 %v434
      %v456 = vunpack.c.l.b16 %v435
      %v457 = vunpack.c.l.b16 %v436
      %v458 = vunpack.c.l.b16 %v437
      %v459 = vunpack.c.l.b16 %v438
      %v460 = vunpack.c.l.b16 %v439
      %v461 = vunpack.c.l.b16 %v440
      %v462 = vunpack.c.l.b16 %v441
      %v463 = vpack.c.b16 %v456, %v455
      %v464 = vpack.c.b16 %v458, %v457
      %v465 = vpack.c.b16 %v460, %v459
      %v466 = vpack.c.b16 %v462, %v461
      %v472 = vsel %vm322, %v446, 0
      %474 = vmatprep.subr.bf16.mxu0 0
      %475 = vmatpush1.bf16.msra.mxu0 0
      %476 = vmatprep.subr.bf16.mxu0 0
      %477 = vmatpush1.bf16.msra.mxu0 0
      %478 = vmatprep.subr.bf16.mxu0 0
      %479 = vmatpush1.bf16.msra.mxu0 0
      %480 = vmatprep.subr.bf16.mxu0 0
      %481 = vmatpush1.bf16.msra.mxu0 0
      %482 = vmatprep.subr.bf16.mxu0 0
      %483 = vmatpush1.bf16.msra.mxu0 %v466
      %484 = vmatprep.subr.bf16.mxu0 0
      %485 = vmatpush1.bf16.msra.mxu0 %v465
      %486 = vmatprep.subr.bf16.mxu0 0
      %487 = vmatpush1.bf16.msra.mxu0 %v464
      %488 = vmatprep.subr.bf16.mxu0 0
      %489 = vmatpush1.bf16.msra.mxu0 %v463
      %490 = vmatprep.subr.bf16.mxu0 0
      %491 = vmatpush2.bf16.msra.mxu0 0
      %492 = vmatprep.subr.bf16.mxu0 0
      %493 = vmatpush2.bf16.msra.mxu0 0
      %494 = vmatprep.subr.bf16.mxu0 0
      %495 = vmatpush2.bf16.msra.mxu0 0
      %496 = vmatprep.subr.bf16.mxu0 0
      %497 = vmatpush2.bf16.msra.mxu0 0
      %498 = vmatprep.subr.bf16.mxu0 0
      %499 = vmatpush2.bf16.msra.mxu0 0
      %500 = vmatprep.subr.bf16.mxu0 0
      %501 = vmatpush2.bf16.msra.mxu0 0
      %502 = vmatprep.subr.bf16.mxu0 0
      %503 = vmatpush2.bf16.msra.mxu0 0
      %504 = vmatprep.subr.bf16.mxu0 0
      %505 = vmatpush2.bf16.msra.mxu0 0
      %506 = vmatprep.mubr.bf16.mxu0 0
      %507 = vmatmul.mubr.bf16.gmra.mxu0 %v472
      %v508 = vpop.f32.mrf.mxu0
      %v509 = vadd.f32 0.0, %v508
      %v510 = vpop.f32.mrf.mxu0
      %v511 = vpop.f32.mrf.mxu0
      %v512 = vpop.f32.mrf.mxu0
      %513 = vdwg.mxu0
      %v514 = vadd.f32 %v428, %v509
      %s515 = scalar_lea.vmem %s272, 16
      %v516 = vld [vmem:[%s515] sm:$0xf]
      %s517 = scalar_lea.vmem %s1, 96
      %v518 = vld [vmem:[%s517] sm:$0xf]
      %v519 = vld [vmem:[%s517 + $0x4] sm:$0xf]
      %v520 = vld [vmem:[%s517 + $0x8] sm:$0xf]
      %v521 = vld [vmem:[%s517 + $0xc] sm:$0xf]
      %v522 = vld [vmem:[%s517 + $0x10] sm:$0xf]
      %v523 = vld [vmem:[%s517 + $0x14] sm:$0xf]
      %v524 = vld [vmem:[%s517 + $0x18] sm:$0xf]
      %v525 = vld [vmem:[%s517 + $0x1c] sm:$0xf]
      %v534 = vunpack.c.l.b16 %v518
      %v535 = vunpack.c.l.b16 %v519
      %v536 = vunpack.c.l.b16 %v520
      %v537 = vunpack.c.l.b16 %v521
      %v538 = vunpack.c.l.b16 %v522
      %v539 = vunpack.c.l.b16 %v523
      %v540 = vunpack.c.l.b16 %v524
      %v541 = vunpack.c.l.b16 %v525
      %v542 = vpack.c.b16 %v535, %v534
      %v543 = vpack.c.b16 %v537, %v536
      %v544 = vpack.c.b16 %v539, %v538
      %v545 = vpack.c.b16 %v541, %v540
      %v551 = vsel %vm322, %v516, 0
      %553 = vmatprep.subr.bf16.mxu0 0
      %554 = vmatpush1.bf16.msra.mxu0 0
      %555 = vmatprep.subr.bf16.mxu0 0
      %556 = vmatpush1.bf16.msra.mxu0 0
      %557 = vmatprep.subr.bf16.mxu0 0
      %558 = vmatpush1.bf16.msra.mxu0 0
      %559 = vmatprep.subr.bf16.mxu0 0
      %560 = vmatpush1.bf16.msra.mxu0 0
      %561 = vmatprep.subr.bf16.mxu0 0
      %562 = vmatpush1.bf16.msra.mxu0 %v545
      %563 = vmatprep.subr.bf16.mxu0 0
      %564 = vmatpush1.bf16.msra.mxu0 %v544
      %565 = vmatprep.subr.bf16.mxu0 0
      %566 = vmatpush1.bf16.msra.mxu0 %v543
      %567 = vmatprep.subr.bf16.mxu0 0
      %568 = vmatpush1.bf16.msra.mxu0 %v542
      %569 = vmatprep.subr.bf16.mxu0 0
      %570 = vmatpush2.bf16.msra.mxu0 0
      %571 = vmatprep.subr.bf16.mxu0 0
      %572 = vmatpush2.bf16.msra.mxu0 0
      %573 = vmatprep.subr.bf16.mxu0 0
      %574 = vmatpush2.bf16.msra.mxu0 0
      %575 = vmatprep.subr.bf16.mxu0 0
      %576 = vmatpush2.bf16.msra.mxu0 0
      %577 = vmatprep.subr.bf16.mxu0 0
      %578 = vmatpush2.bf16.msra.mxu0 0
      %579 = vmatprep.subr.bf16.mxu0 0
      %580 = vmatpush2.bf16.msra.mxu0 0
      %581 = vmatprep.subr.bf16.mxu0 0
      %582 = vmatpush2.bf16.msra.mxu0 0
      %583 = vmatprep.subr.bf16.mxu0 0
      %584 = vmatpush2.bf16.msra.mxu0 0
      %585 = vmatprep.mubr.bf16.mxu0 0
      %586 = vmatmul.mubr.bf16.gmra.mxu0 %v551
      %v587 = vpop.f32.mrf.mxu0
      %v588 = vadd.f32 0.0, %v587
      %v589 = vpop.f32.mrf.mxu0
      %v590 = vpop.f32.mrf.mxu0
      %v591 = vpop.f32.mrf.mxu0
      %592 = vdwg.mxu0
      %v593 = vadd.f32 %v514, %v588
      %s594 = scalar_lea.vmem %s272, 24
      %v595 = vld [vmem:[%s594] sm:$0xf]
      %s596 = scalar_lea.vmem %s1, 128
      %v597 = vld [vmem:[%s596] sm:$0xf]
      %v598 = vld [vmem:[%s596 + $0x4] sm:$0xf]
      %v599 = vld [vmem:[%s596 + $0x8] sm:$0xf]
      %v600 = vld [vmem:[%s596 + $0xc] sm:$0xf]
      %v601 = vld [vmem:[%s596 + $0x10] sm:$0xf]
      %v602 = vld [vmem:[%s596 + $0x14] sm:$0xf]
      %v603 = vld [vmem:[%s596 + $0x18] sm:$0xf]
      %v604 = vld [vmem:[%s596 + $0x1c] sm:$0xf]
      %v613 = vunpack.c.l.b16 %v597
      %v614 = vunpack.c.l.b16 %v598
      %v615 = vunpack.c.l.b16 %v599
      %v616 = vunpack.c.l.b16 %v600
      %v617 = vunpack.c.l.b16 %v601
      %v618 = vunpack.c.l.b16 %v602
      %v619 = vunpack.c.l.b16 %v603
      %v620 = vunpack.c.l.b16 %v604
      %v621 = vpack.c.b16 %v614, %v613
      %v622 = vpack.c.b16 %v616, %v615
      %v623 = vpack.c.b16 %v618, %v617
      %v624 = vpack.c.b16 %v620, %v619
      %v630 = vsel %vm322, %v595, 0
      %632 = vmatprep.subr.bf16.mxu0 0
      %633 = vmatpush1.bf16.msra.mxu0 0
      %634 = vmatprep.subr.bf16.mxu0 0
      %635 = vmatpush1.bf16.msra.mxu0 0
      %636 = vmatprep.subr.bf16.mxu0 0
      %637 = vmatpush1.bf16.msra.mxu0 0
      %638 = vmatprep.subr.bf16.mxu0 0
      %639 = vmatpush1.bf16.msra.mxu0 0
      %640 = vmatprep.subr.bf16.mxu0 0
      %641 = vmatpush1.bf16.msra.mxu0 %v624
      %642 = vmatprep.subr.bf16.mxu0 0
      %643 = vmatpush1.bf16.msra.mxu0 %v623
      %644 = vmatprep.subr.bf16.mxu0 0
      %645 = vmatpush1.bf16.msra.mxu0 %v622
      %646 = vmatprep.subr.bf16.mxu0 0
      %647 = vmatpush1.bf16.msra.mxu0 %v621
      %648 = vmatprep.subr.bf16.mxu0 0
      %649 = vmatpush2.bf16.msra.mxu0 0
      %650 = vmatprep.subr.bf16.mxu0 0
      %651 = vmatpush2.bf16.msra.mxu0 0
      %652 = vmatprep.subr.bf16.mxu0 0
      %653 = vmatpush2.bf16.msra.mxu0 0
      %654 = vmatprep.subr.bf16.mxu0 0
      %655 = vmatpush2.bf16.msra.mxu0 0
      %656 = vmatprep.subr.bf16.mxu0 0
      %657 = vmatpush2.bf16.msra.mxu0 0
      %658 = vmatprep.subr.bf16.mxu0 0
      %659 = vmatpush2.bf16.msra.mxu0 0
      %660 = vmatprep.subr.bf16.mxu0 0
      %661 = vmatpush2.bf16.msra.mxu0 0
      %662 = vmatprep.subr.bf16.mxu0 0
      %663 = vmatpush2.bf16.msra.mxu0 0
      %664 = vmatprep.mubr.bf16.mxu0 0
      %665 = vmatmul.mubr.bf16.gmra.mxu0 %v630
      %v666 = vpop.f32.mrf.mxu0
      %v667 = vadd.f32 0.0, %v666
      %v668 = vpop.f32.mrf.mxu0
      %v669 = vpop.f32.mrf.mxu0
      %v670 = vpop.f32.mrf.mxu0
      %671 = vdwg.mxu0
      %v672 = vadd.f32 %v593, %v667
      %s673 = scalar_lea.vmem %s1, 160
      %v674 = vld [vmem:[%s673] sm:$0xf]
      %v675 = vld [vmem:[%s673 + $0x4] sm:$0xf]
      %v676 = vld [vmem:[%s673 + $0x8] sm:$0xf]
      %v677 = vld [vmem:[%s673 + $0xc] sm:$0xf]
      %v678 = vld [vmem:[%s673 + $0x10] sm:$0xf]
      %v679 = vld [vmem:[%s673 + $0x14] sm:$0xf]
      %v680 = vld [vmem:[%s673 + $0x18] sm:$0xf]
      %v681 = vld [vmem:[%s673 + $0x1c] sm:$0xf]
      %v683 = vunpack.c.l.b16 %v516
      %v684 = vpack.c.b16 %v683, %v683
      %685 = vrot.lane.b32.xlu0 %v684, 120
      %v686 = vpop.permute.xlu0 %685
      %v695 = vunpack.c.l.b16 %v674
      %v696 = vunpack.c.l.b16 %v675
      %v697 = vunpack.c.l.b16 %v676
      %v698 = vunpack.c.l.b16 %v677
      %v699 = vunpack.c.l.b16 %v678
      %v700 = vunpack.c.l.b16 %v679
      %v701 = vunpack.c.l.b16 %v680
      %v702 = vunpack.c.l.b16 %v681
      %v703 = vpack.c.b16 %v696, %v695
      %v704 = vpack.c.b16 %v698, %v697
      %v705 = vpack.c.b16 %v700, %v699
      %v706 = vpack.c.b16 %v702, %v701
      %v712 = vsel %vm322, %v686, 0
      %714 = vmatprep.subr.bf16.mxu0 0
      %715 = vmatpush1.bf16.msra.mxu0 0
      %716 = vmatprep.subr.bf16.mxu0 0
      %717 = vmatpush1.bf16.msra.mxu0 0
      %718 = vmatprep.subr.bf16.mxu0 0
      %719 = vmatpush1.bf16.msra.mxu0 0
      %720 = vmatprep.subr.bf16.mxu0 0
      %721 = vmatpush1.bf16.msra.mxu0 0
      %722 = vmatprep.subr.bf16.mxu0 0
      %723 = vmatpush1.bf16.msra.mxu0 %v706
      %724 = vmatprep.subr.bf16.mxu0 0
      %725 = vmatpush1.bf16.msra.mxu0 %v705
      %726 = vmatprep.subr.bf16.mxu0 0
      %727 = vmatpush1.bf16.msra.mxu0 %v704
      %728 = vmatprep.subr.bf16.mxu0 0
      %729 = vmatpush1.bf16.msra.mxu0 %v703
      %730 = vmatprep.subr.bf16.mxu0 0
      %731 = vmatpush2.bf16.msra.mxu0 0
      %732 = vmatprep.subr.bf16.mxu0 0
      %733 = vmatpush2.bf16.msra.mxu0 0
      %734 = vmatprep.subr.bf16.mxu0 0
      %735 = vmatpush2.bf16.msra.mxu0 0
      %736 = vmatprep.subr.bf16.mxu0 0
      %737 = vmatpush2.bf16.msra.mxu0 0
      %738 = vmatprep.subr.bf16.mxu0 0
      %739 = vmatpush2.bf16.msra.mxu0 0
      %740 = vmatprep.subr.bf16.mxu0 0
      %741 = vmatpush2.bf16.msra.mxu0 0
      %742 = vmatprep.subr.bf16.mxu0 0
      %743 = vmatpush2.bf16.msra.mxu0 0
      %744 = vmatprep.subr.bf16.mxu0 0
      %745 = vmatpush2.bf16.msra.mxu0 0
      %746 = vmatprep.mubr.bf16.mxu0 0
      %747 = vmatmul.mubr.bf16.gmra.mxu0 %v712
      %v748 = vpop.f32.mrf.mxu0
      %v749 = vadd.f32 0.0, %v748
      %v750 = vpop.f32.mrf.mxu0
      %v751 = vpop.f32.mrf.mxu0
      %v752 = vpop.f32.mrf.mxu0
      %753 = vdwg.mxu0
      %v754 = vadd.f32 %v672, %v749
      %v755 = vld [vmem:[%s272] sm:$0xf]
      %v756 = vld [vmem:[%s272 + $0x4] sm:$0x1]
      %s757 = scalar_lea.vmem %s1, 192
      %v758 = vld [vmem:[%s757] sm:$0xf]
      %v759 = vld [vmem:[%s757 + $0x4] sm:$0xf]
      %v760 = vld [vmem:[%s757 + $0x8] sm:$0xf]
      %v761 = vld [vmem:[%s757 + $0xc] sm:$0xf]
      %v762 = vld [vmem:[%s757 + $0x10] sm:$0xf]
      %v763 = vld [vmem:[%s757 + $0x14] sm:$0xf]
      %v764 = vld [vmem:[%s757 + $0x18] sm:$0xf]
      %v765 = vld [vmem:[%s757 + $0x1c] sm:$0xf]
      %v768 = vunpack.c.l.b16 %v755
      %v769 = vunpack.c.l.b16 %v756
      %v770 = vpack.c.b16 %v769, %v768
      %v772 = vshrl.u32 %v770, 16
      %v774 = vshll.u32 %v770, 16
      %v776 = vrot.slane %v774, 1
      %v777 = vor.u32 %v772, %v776
      %v786 = vunpack.c.l.b16 %v758
      %v787 = vunpack.c.l.b16 %v759
      %v788 = vunpack.c.l.b16 %v760
      %v789 = vunpack.c.l.b16 %v761
      %v790 = vunpack.c.l.b16 %v762
      %v791 = vunpack.c.l.b16 %v763
      %v792 = vunpack.c.l.b16 %v764
      %v793 = vunpack.c.l.b16 %v765
      %v794 = vpack.c.b16 %v787, %v786
      %v795 = vpack.c.b16 %v789, %v788
      %v796 = vpack.c.b16 %v791, %v790
      %v797 = vpack.c.b16 %v793, %v792
      %v803 = vsel %vm322, %v777, 0
      %805 = vmatprep.subr.bf16.mxu0 0
      %806 = vmatpush1.bf16.msra.mxu0 0
      %807 = vmatprep.subr.bf16.mxu0 0
      %808 = vmatpush1.bf16.msra.mxu0 0
      %809 = vmatprep.subr.bf16.mxu0 0
      %810 = vmatpush1.bf16.msra.mxu0 0
      %811 = vmatprep.subr.bf16.mxu0 0
      %812 = vmatpush1.bf16.msra.mxu0 0
      %813 = vmatprep.subr.bf16.mxu0 0
      %814 = vmatpush1.bf16.msra.mxu0 %v797
      %815 = vmatprep.subr.bf16.mxu0 0
      %816 = vmatpush1.bf16.msra.mxu0 %v796
      %817 = vmatprep.subr.bf16.mxu0 0
      %818 = vmatpush1.bf16.msra.mxu0 %v795
      %819 = vmatprep.subr.bf16.mxu0 0
      %820 = vmatpush1.bf16.msra.mxu0 %v794
      %821 = vmatprep.subr.bf16.mxu0 0
      %822 = vmatpush2.bf16.msra.mxu0 0
      %823 = vmatprep.subr.bf16.mxu0 0
      %824 = vmatpush2.bf16.msra.mxu0 0
      %825 = vmatprep.subr.bf16.mxu0 0
      %826 = vmatpush2.bf16.msra.mxu0 0
      %827 = vmatprep.subr.bf16.mxu0 0
      %828 = vmatpush2.bf16.msra.mxu0 0
      %829 = vmatprep.subr.bf16.mxu0 0
      %830 = vmatpush2.bf16.msra.mxu0 0
      %831 = vmatprep.subr.bf16.mxu0 0
      %832 = vmatpush2.bf16.msra.mxu0 0
      %833 = vmatprep.subr.bf16.mxu0 0
      %834 = vmatpush2.bf16.msra.mxu0 0
      %835 = vmatprep.subr.bf16.mxu0 0
      %836 = vmatpush2.bf16.msra.mxu0 0
      %837 = vmatprep.mubr.bf16.mxu0 0
      %838 = vmatmul.mubr.bf16.gmra.mxu0 %v803
      %v839 = vpop.f32.mrf.mxu0
      %v840 = vadd.f32 0.0, %v839
      %v841 = vpop.f32.mrf.mxu0
      %v842 = vpop.f32.mrf.mxu0
      %v843 = vpop.f32.mrf.mxu0
      %844 = vdwg.mxu0
      %v845 = vadd.f32 %v754, %v840
      %v846 = vld [vmem:[%s287] sm:$0xf]
      %v847 = vld [vmem:[%s287 + $0x4] sm:$0x1]
      %s848 = scalar_lea.vmem %s1, 224
      %v849 = vld [vmem:[%s848] sm:$0xf]
      %v850 = vld [vmem:[%s848 + $0x4] sm:$0xf]
      %v851 = vld [vmem:[%s848 + $0x8] sm:$0xf]
      %v852 = vld [vmem:[%s848 + $0xc] sm:$0xf]
      %v853 = vld [vmem:[%s848 + $0x10] sm:$0xf]
      %v854 = vld [vmem:[%s848 + $0x14] sm:$0xf]
      %v855 = vld [vmem:[%s848 + $0x18] sm:$0xf]
      %v856 = vld [vmem:[%s848 + $0x1c] sm:$0xf]
      %v859 = vunpack.c.l.b16 %v846
      %v860 = vunpack.c.l.b16 %v847
      %v861 = vpack.c.b16 %v860, %v859
      %v863 = vshrl.u32 %v861, 16
      %v865 = vshll.u32 %v861, 16
      %v867 = vrot.slane %v865, 1
      %v868 = vor.u32 %v863, %v867
      %v877 = vunpack.c.l.b16 %v849
      %v878 = vunpack.c.l.b16 %v850
      %v879 = vunpack.c.l.b16 %v851
      %v880 = vunpack.c.l.b16 %v852
      %v881 = vunpack.c.l.b16 %v853
      %v882 = vunpack.c.l.b16 %v854
      %v883 = vunpack.c.l.b16 %v855
      %v884 = vunpack.c.l.b16 %v856
      %v885 = vpack.c.b16 %v878, %v877
      %v886 = vpack.c.b16 %v880, %v879
      %v887 = vpack.c.b16 %v882, %v881
      %v888 = vpack.c.b16 %v884, %v883
      %v894 = vsel %vm322, %v868, 0
      %896 = vmatprep.subr.bf16.mxu0 0
      %897 = vmatpush1.bf16.msra.mxu0 0
      %898 = vmatprep.subr.bf16.mxu0 0
      %899 = vmatpush1.bf16.msra.mxu0 0
      %900 = vmatprep.subr.bf16.mxu0 0
      %901 = vmatpush1.bf16.msra.mxu0 0
      %902 = vmatprep.subr.bf16.mxu0 0
      %903 = vmatpush1.bf16.msra.mxu0 0
      %904 = vmatprep.subr.bf16.mxu0 0
      %905 = vmatpush1.bf16.msra.mxu0 %v888
      %906 = vmatprep.subr.bf16.mxu0 0
      %907 = vmatpush1.bf16.msra.mxu0 %v887
      %908 = vmatprep.subr.bf16.mxu0 0
      %909 = vmatpush1.bf16.msra.mxu0 %v886
      %910 = vmatprep.subr.bf16.mxu0 0
      %911 = vmatpush1.bf16.msra.mxu0 %v885
      %912 = vmatprep.subr.bf16.mxu0 0
      %913 = vmatpush2.bf16.msra.mxu0 0
      %914 = vmatprep.subr.bf16.mxu0 0
      %915 = vmatpush2.bf16.msra.mxu0 0
      %916 = vmatprep.subr.bf16.mxu0 0
      %917 = vmatpush2.bf16.msra.mxu0 0
      %918 = vmatprep.subr.bf16.mxu0 0
      %919 = vmatpush2.bf16.msra.mxu0 0
      %920 = vmatprep.subr.bf16.mxu0 0
      %921 = vmatpush2.bf16.msra.mxu0 0
      %922 = vmatprep.subr.bf16.mxu0 0
      %923 = vmatpush2.bf16.msra.mxu0 0
      %924 = vmatprep.subr.bf16.mxu0 0
      %925 = vmatpush2.bf16.msra.mxu0 0
      %926 = vmatprep.subr.bf16.mxu0 0
      %927 = vmatpush2.bf16.msra.mxu0 0
      %928 = vmatprep.mubr.bf16.mxu0 0
      %929 = vmatmul.mubr.bf16.gmra.mxu0 %v894
      %v930 = vpop.f32.mrf.mxu0
      %v931 = vadd.f32 0.0, %v930
      %v932 = vpop.f32.mrf.mxu0
      %v933 = vpop.f32.mrf.mxu0
      %v934 = vpop.f32.mrf.mxu0
      %935 = vdwg.mxu0
      %v936 = vadd.f32 %v845, %v931
      %s937 = scalar_lea.vmem %s1, 256
      %v938 = vld [vmem:[%s937] sm:$0xf]
      %v939 = vld [vmem:[%s937 + $0x4] sm:$0xf]
      %v940 = vld [vmem:[%s937 + $0x8] sm:$0xf]
      %v941 = vld [vmem:[%s937 + $0xc] sm:$0xf]
      %v942 = vld [vmem:[%s937 + $0x10] sm:$0xf]
      %v943 = vld [vmem:[%s937 + $0x14] sm:$0xf]
      %v944 = vld [vmem:[%s937 + $0x18] sm:$0xf]
      %v945 = vld [vmem:[%s937 + $0x1c] sm:$0xf]
      %946 = vrot.lane.b32.xlu0 %v777, 120
      %v947 = vpop.permute.xlu0 %946
      %v956 = vunpack.c.l.b16 %v938
      %v957 = vunpack.c.l.b16 %v939
      %v958 = vunpack.c.l.b16 %v940
      %v959 = vunpack.c.l.b16 %v941
      %v960 = vunpack.c.l.b16 %v942
      %v961 = vunpack.c.l.b16 %v943
      %v962 = vunpack.c.l.b16 %v944
      %v963 = vunpack.c.l.b16 %v945
      %v964 = vpack.c.b16 %v957, %v956
      %v965 = vpack.c.b16 %v959, %v958
      %v966 = vpack.c.b16 %v961, %v960
      %v967 = vpack.c.b16 %v963, %v962
      %v973 = vsel %vm322, %v947, 0
      %975 = vmatprep.subr.bf16.mxu0 0
      %976 = vmatpush1.bf16.msra.mxu0 0
      %977 = vmatprep.subr.bf16.mxu0 0
      %978 = vmatpush1.bf16.msra.mxu0 0
      %979 = vmatprep.subr.bf16.mxu0 0
      %980 = vmatpush1.bf16.msra.mxu0 0
      %981 = vmatprep.subr.bf16.mxu0 0
      %982 = vmatpush1.bf16.msra.mxu0 0
      %983 = vmatprep.subr.bf16.mxu0 0
      %984 = vmatpush1.bf16.msra.mxu0 %v967
      %985 = vmatprep.subr.bf16.mxu0 0
      %986 = vmatpush1.bf16.msra.mxu0 %v966
      %987 = vmatprep.subr.bf16.mxu0 0
      %988 = vmatpush1.bf16.msra.mxu0 %v965
      %989 = vmatprep.subr.bf16.mxu0 0
      %990 = vmatpush1.bf16.msra.mxu0 %v964
      %991 = vmatprep.subr.bf16.mxu0 0
      %992 = vmatpush2.bf16.msra.mxu0 0
      %993 = vmatprep.subr.bf16.mxu0 0
      %994 = vmatpush2.bf16.msra.mxu0 0
      %995 = vmatprep.subr.bf16.mxu0 0
      %996 = vmatpush2.bf16.msra.mxu0 0
      %997 = vmatprep.subr.bf16.mxu0 0
      %998 = vmatpush2.bf16.msra.mxu0 0
      %999 = vmatprep.subr.bf16.mxu0 0
      %1000 = vmatpush2.bf16.msra.mxu0 0
      %1001 = vmatprep.subr.bf16.mxu0 0
      %1002 = vmatpush2.bf16.msra.mxu0 0
      %1003 = vmatprep.subr.bf16.mxu0 0
      %1004 = vmatpush2.bf16.msra.mxu0 0
      %1005 = vmatprep.subr.bf16.mxu0 0
      %1006 = vmatpush2.bf16.msra.mxu0 0
      %1007 = vmatprep.mubr.bf16.mxu0 0
      %1008 = vmatmul.mubr.bf16.gmra.mxu0 %v973
      %v1009 = vpop.f32.mrf.mxu0
      %v1010 = vadd.f32 0.0, %v1009
      %v1011 = vpop.f32.mrf.mxu0
      %v1012 = vpop.f32.mrf.mxu0
      %v1013 = vpop.f32.mrf.mxu0
      %1014 = vdwg.mxu0
      %v1015 = vadd.f32 %v936, %v1010
      %v1016 = vld [vmem:[%s2] sm:$0x1]
      %v1018 = vlaneseq
      %v1019 = vshrl.u32 %v1018, 7
      %v1020 = vsub.s32 0, %v1019
      %v1021 = vrot.slane %v1016, %v1020
      %v1023 = vadd.f32 %v1015, %v1021
      %v1024 = vmax.f32 %v1023, 0.0
      %v1025 = vpack.c.bf16 %v1024, %v1024
      %v1026 = vld [vmem:[%s3] sm:$0x3]
      %vm1027 = vcmask 64512
      %v1029 = vsel %vm1027, %v1026, 0
      %vm1031 = vcmask 1043456
      %v1033 = vsel %vm1031, %v1025, 0
      %1035 = vmatprep.subr.bf16.mxu0 0
      %1036 = vmatpush1.bf16.msra.mxu0 0
      %1037 = vmatprep.subr.bf16.mxu0 0
      %1038 = vmatpush1.bf16.msra.mxu0 0
      %1039 = vmatprep.subr.bf16.mxu0 0
      %1040 = vmatpush1.bf16.msra.mxu0 0
      %1041 = vmatprep.subr.bf16.mxu0 0
      %1042 = vmatpush1.bf16.msra.mxu0 0
      %1043 = vmatprep.subr.bf16.mxu0 0
      %1044 = vmatpush1.bf16.msra.mxu0 0
      %1045 = vmatprep.subr.bf16.mxu0 0
      %1046 = vmatpush1.bf16.msra.mxu0 0
      %1047 = vmatprep.subr.bf16.mxu0 0
      %1048 = vmatpush1.bf16.msra.mxu0 0
      %1049 = vmatprep.subr.bf16.mxu0 0
      %1050 = vmatpush1.bf16.msra.mxu0 %v1033
      %1051 = vmatprep.subr.bf16.mxu0 0
      %1052 = vmatpush2.bf16.msra.mxu0 0
      %1053 = vmatprep.subr.bf16.mxu0 0
      %1054 = vmatpush2.bf16.msra.mxu0 0
      %1055 = vmatprep.subr.bf16.mxu0 0
      %1056 = vmatpush2.bf16.msra.mxu0 0
      %1057 = vmatprep.subr.bf16.mxu0 0
      %1058 = vmatpush2.bf16.msra.mxu0 0
      %1059 = vmatprep.subr.bf16.mxu0 0
      %1060 = vmatpush2.bf16.msra.mxu0 0
      %1061 = vmatprep.subr.bf16.mxu0 0
      %1062 = vmatpush2.bf16.msra.mxu0 0
      %1063 = vmatprep.subr.bf16.mxu0 0
      %1064 = vmatpush2.bf16.msra.mxu0 0
      %1065 = vmatprep.subr.bf16.mxu0 0
      %1066 = vmatpush2.bf16.msra.mxu0 0
      %1067 = vmatprep.mubr.bf16.mxu0 0
      %1068 = vmatmul.mubr.bf16.gmra.mxu0 %v1029
      %v1069 = vpop.f32.mrf.mxu0
      %v1070 = vadd.f32 0.0, %v1069
      %v1071 = vpop.f32.mrf.mxu0
      %v1072 = vpop.f32.mrf.mxu0
      %v1073 = vpop.f32.mrf.mxu0
      %1074 = vdwg.mxu0
      %v1075 = vld [vmem:[%s4] sm:$0x3]
      %v1077 = vsel %vm1027, %v1075, 0
      %1079 = vmatprep.subr.bf16.mxu0 0
      %1080 = vmatpush1.bf16.msra.mxu0 0
      %1081 = vmatprep.subr.bf16.mxu0 0
      %1082 = vmatpush1.bf16.msra.mxu0 0
      %1083 = vmatprep.subr.bf16.mxu0 0
      %1084 = vmatpush1.bf16.msra.mxu0 0
      %1085 = vmatprep.subr.bf16.mxu0 0
      %1086 = vmatpush1.bf16.msra.mxu0 0
      %1087 = vmatprep.subr.bf16.mxu0 0
      %1088 = vmatpush1.bf16.msra.mxu0 0
      %1089 = vmatprep.subr.bf16.mxu0 0
      %1090 = vmatpush1.bf16.msra.mxu0 0
      %1091 = vmatprep.subr.bf16.mxu0 0
      %1092 = vmatpush1.bf16.msra.mxu0 0
      %1093 = vmatprep.subr.bf16.mxu0 0
      %1094 = vmatpush1.bf16.msra.mxu0 %v1033
      %1095 = vmatprep.subr.bf16.mxu0 0
      %1096 = vmatpush2.bf16.msra.mxu0 0
      %1097 = vmatprep.subr.bf16.mxu0 0
      %1098 = vmatpush2.bf16.msra.mxu0 0
      %1099 = vmatprep.subr.bf16.mxu0 0
      %1100 = vmatpush2.bf16.msra.mxu0 0
      %1101 = vmatprep.subr.bf16.mxu0 0
      %1102 = vmatpush2.bf16.msra.mxu0 0
      %1103 = vmatprep.subr.bf16.mxu0 0
      %1104 = vmatpush2.bf16.msra.mxu0 0
      %1105 = vmatprep.subr.bf16.mxu0 0
      %1106 = vmatpush2.bf16.msra.mxu0 0
      %1107 = vmatprep.subr.bf16.mxu0 0
      %1108 = vmatpush2.bf16.msra.mxu0 0
      %1109 = vmatprep.subr.bf16.mxu0 0
      %1110 = vmatpush2.bf16.msra.mxu0 0
      %1111 = vmatprep.mubr.bf16.mxu0 0
      %1112 = vmatmul.mubr.bf16.gmra.mxu0 %v1077
      %v1113 = vpop.f32.mrf.mxu0
      %v1114 = vadd.f32 0.0, %v1113
      %v1115 = vpop.f32.mrf.mxu0
      %v1116 = vpop.f32.mrf.mxu0
      %v1117 = vpop.f32.mrf.mxu0
      %1118 = vdwg.mxu0
      %v1119 = vmax.f32 %v1070, %v1114
      %v1120 = vpack.c.bf16 %v1119, %v1119
      %v1121 = vld [vmem:[%s5] sm:$0xf]
      %v1122 = vld [vmem:[%s5 + $0x4] sm:$0xf]
      %v1123 = vld [vmem:[%s5 + $0x8] sm:$0xf]
      %v1124 = vld [vmem:[%s5 + $0xc] sm:$0xf]
      %v1125 = vld [vmem:[%s5 + $0x10] sm:$0xf]
      %v1126 = vld [vmem:[%s5 + $0x14] sm:$0xf]
      %v1127 = vld [vmem:[%s5 + $0x18] sm:$0xf]
      %v1128 = vld [vmem:[%s5 + $0x1c] sm:$0xf]
      %v1129 = vld [vmem:[%s5 + $0x20] sm:$0xf]
      %v1130 = vld [vmem:[%s5 + $0x24] sm:$0xf]
      %v1131 = vld [vmem:[%s5 + $0x28] sm:$0xf]
      %v1132 = vld [vmem:[%s5 + $0x2c] sm:$0xf]
      %v1133 = vld [vmem:[%s5 + $0x30] sm:$0xf]
      %v1134 = vld [vmem:[%s5 + $0x34] sm:$0xf]
      %v1135 = vld [vmem:[%s5 + $0x38] sm:$0xf]
      %v1136 = vld [vmem:[%s5 + $0x3c] sm:$0xf]
      %v1153 = vunpack.c.l.b16 %v1121
      %v1154 = vunpack.c.l.b16 %v1122
      %v1155 = vunpack.c.l.b16 %v1123
      %v1156 = vunpack.c.l.b16 %v1124
      %v1157 = vunpack.c.l.b16 %v1125
      %v1158 = vunpack.c.l.b16 %v1126
      %v1159 = vunpack.c.l.b16 %v1127
      %v1160 = vunpack.c.l.b16 %v1128
      %v1161 = vunpack.c.l.b16 %v1129
      %v1162 = vunpack.c.l.b16 %v1130
      %v1163 = vunpack.c.l.b16 %v1131
      %v1164 = vunpack.c.l.b16 %v1132
      %v1165 = vunpack.c.l.b16 %v1133
      %v1166 = vunpack.c.l.b16 %v1134
      %v1167 = vunpack.c.l.b16 %v1135
      %v1168 = vunpack.c.l.b16 %v1136
      %v1169 = vpack.c.b16 %v1154, %v1153
      %v1170 = vpack.c.b16 %v1156, %v1155
      %v1171 = vpack.c.b16 %v1158, %v1157
      %v1172 = vpack.c.b16 %v1160, %v1159
      %v1173 = vpack.c.b16 %v1162, %v1161
      %v1174 = vpack.c.b16 %v1164, %v1163
      %v1175 = vpack.c.b16 %v1166, %v1165
      %v1176 = vpack.c.b16 %v1168, %v1167
      %1185 = vmatprep.subr.bf16.mxu0 0
      %1186 = vmatpush1.bf16.msra.mxu0 %v1176
      %1187 = vmatprep.subr.bf16.mxu0 0
      %1188 = vmatpush1.bf16.msra.mxu0 %v1175
      %1189 = vmatprep.subr.bf16.mxu0 0
      %1190 = vmatpush1.bf16.msra.mxu0 %v1174
      %1191 = vmatprep.subr.bf16.mxu0 0
      %1192 = vmatpush1.bf16.msra.mxu0 %v1173
      %1193 = vmatprep.subr.bf16.mxu0 0
      %1194 = vmatpush1.bf16.msra.mxu0 %v1172
      %1195 = vmatprep.subr.bf16.mxu0 0
      %1196 = vmatpush1.bf16.msra.mxu0 %v1171
      %1197 = vmatprep.subr.bf16.mxu0 0
      %1198 = vmatpush1.bf16.msra.mxu0 %v1170
      %1199 = vmatprep.subr.bf16.mxu0 0
      %1200 = vmatpush1.bf16.msra.mxu0 %v1169
      %1201 = vmatprep.subr.bf16.mxu0 0
      %1202 = vmatpush2.bf16.msra.mxu0 0
      %1203 = vmatprep.subr.bf16.mxu0 0
      %1204 = vmatpush2.bf16.msra.mxu0 0
      %1205 = vmatprep.subr.bf16.mxu0 0
      %1206 = vmatpush2.bf16.msra.mxu0 0
      %1207 = vmatprep.subr.bf16.mxu0 0
      %1208 = vmatpush2.bf16.msra.mxu0 0
      %1209 = vmatprep.subr.bf16.mxu0 0
      %1210 = vmatpush2.bf16.msra.mxu0 0
      %1211 = vmatprep.subr.bf16.mxu0 0
      %1212 = vmatpush2.bf16.msra.mxu0 0
      %1213 = vmatprep.subr.bf16.mxu0 0
      %1214 = vmatpush2.bf16.msra.mxu0 0
      %1215 = vmatprep.subr.bf16.mxu0 0
      %1216 = vmatpush2.bf16.msra.mxu0 0
      %1217 = vmatprep.mubr.bf16.mxu0 0
      %1218 = vmatmul.mubr.bf16.gmra.mxu0 %v1120
      %v1219 = vpop.f32.mrf.mxu0
      %v1220 = vadd.f32 0.0, %v1219
      %v1221 = vpop.f32.mrf.mxu0
      %v1222 = vpop.f32.mrf.mxu0
      %v1223 = vpop.f32.mrf.mxu0
      %1224 = vdwg.mxu0
      %v1225 = vld [vmem:[%s6] sm:$0xf]
      %v1226 = vld [vmem:[%s6 + $0x4] sm:$0xf]
      %v1227 = vld [vmem:[%s6 + $0x8] sm:$0xf]
      %v1228 = vld [vmem:[%s6 + $0xc] sm:$0xf]
      %v1229 = vld [vmem:[%s6 + $0x10] sm:$0xf]
      %v1230 = vld [vmem:[%s6 + $0x14] sm:$0xf]
      %v1231 = vld [vmem:[%s6 + $0x18] sm:$0xf]
      %v1232 = vld [vmem:[%s6 + $0x1c] sm:$0xf]
      %v1233 = vld [vmem:[%s6 + $0x20] sm:$0xf]
      %v1234 = vld [vmem:[%s6 + $0x24] sm:$0xf]
      %v1235 = vld [vmem:[%s6 + $0x28] sm:$0xf]
      %v1236 = vld [vmem:[%s6 + $0x2c] sm:$0xf]
      %v1237 = vld [vmem:[%s6 + $0x30] sm:$0xf]
      %v1238 = vld [vmem:[%s6 + $0x34] sm:$0xf]
      %v1239 = vld [vmem:[%s6 + $0x38] sm:$0xf]
      %v1240 = vld [vmem:[%s6 + $0x3c] sm:$0xf]
      %v1257 = vunpack.c.l.b16 %v1225
      %v1258 = vunpack.c.l.b16 %v1226
      %v1259 = vunpack.c.l.b16 %v1227
      %v1260 = vunpack.c.l.b16 %v1228
      %v1261 = vunpack.c.l.b16 %v1229
      %v1262 = vunpack.c.l.b16 %v1230
      %v1263 = vunpack.c.l.b16 %v1231
      %v1264 = vunpack.c.l.b16 %v1232
      %v1265 = vunpack.c.l.b16 %v1233
      %v1266 = vunpack.c.l.b16 %v1234
      %v1267 = vunpack.c.l.b16 %v1235
      %v1268 = vunpack.c.l.b16 %v1236
      %v1269 = vunpack.c.l.b16 %v1237
      %v1270 = vunpack.c.l.b16 %v1238
      %v1271 = vunpack.c.l.b16 %v1239
      %v1272 = vunpack.c.l.b16 %v1240
      %v1273 = vpack.c.b16 %v1258, %v1257
      %v1274 = vpack.c.b16 %v1260, %v1259
      %v1275 = vpack.c.b16 %v1262, %v1261
      %v1276 = vpack.c.b16 %v1264, %v1263
      %v1277 = vpack.c.b16 %v1266, %v1265
      %v1278 = vpack.c.b16 %v1268, %v1267
      %v1279 = vpack.c.b16 %v1270, %v1269
      %v1280 = vpack.c.b16 %v1272, %v1271
      %1289 = vmatprep.subr.bf16.mxu0 0
      %1290 = vmatpush1.bf16.msra.mxu0 %v1280
      %1291 = vmatprep.subr.bf16.mxu0 0
      %1292 = vmatpush1.bf16.msra.mxu0 %v1279
      %1293 = vmatprep.subr.bf16.mxu0 0
      %1294 = vmatpush1.bf16.msra.mxu0 %v1278
      %1295 = vmatprep.subr.bf16.mxu0 0
      %1296 = vmatpush1.bf16.msra.mxu0 %v1277
      %1297 = vmatprep.subr.bf16.mxu0 0
      %1298 = vmatpush1.bf16.msra.mxu0 %v1276
      %1299 = vmatprep.subr.bf16.mxu0 0
      %1300 = vmatpush1.bf16.msra.mxu0 %v1275
      %1301 = vmatprep.subr.bf16.mxu0 0
      %1302 = vmatpush1.bf16.msra.mxu0 %v1274
      %1303 = vmatprep.subr.bf16.mxu0 0
      %1304 = vmatpush1.bf16.msra.mxu0 %v1273
      %1305 = vmatprep.subr.bf16.mxu0 0
      %1306 = vmatpush2.bf16.msra.mxu0 0
      %1307 = vmatprep.subr.bf16.mxu0 0
      %1308 = vmatpush2.bf16.msra.mxu0 0
      %1309 = vmatprep.subr.bf16.mxu0 0
      %1310 = vmatpush2.bf16.msra.mxu0 0
      %1311 = vmatprep.subr.bf16.mxu0 0
      %1312 = vmatpush2.bf16.msra.mxu0 0
      %1313 = vmatprep.subr.bf16.mxu0 0
      %1314 = vmatpush2.bf16.msra.mxu0 0
      %1315 = vmatprep.subr.bf16.mxu0 0
      %1316 = vmatpush2.bf16.msra.mxu0 0
      %1317 = vmatprep.subr.bf16.mxu0 0
      %1318 = vmatpush2.bf16.msra.mxu0 0
      %1319 = vmatprep.subr.bf16.mxu0 0
      %1320 = vmatpush2.bf16.msra.mxu0 0
      %1321 = vmatprep.mubr.bf16.mxu0 0
      %1322 = vmatmul.mubr.bf16.gmra.mxu0 %v1120
      %v1323 = vpop.f32.mrf.mxu0
      %v1324 = vadd.f32 0.0, %v1323
      %v1325 = vpop.f32.mrf.mxu0
      %v1326 = vpop.f32.mrf.mxu0
      %v1327 = vpop.f32.mrf.mxu0
      %1328 = vdwg.mxu0
      %v1329 = vmax.f32 %v1220, %v1324
      %v1330 = vpack.c.bf16 %v1329, %v1329
      %vm1331 = vcmask 517120
      %1332 = vst.msk [vmem:[%s276] sm:$0x3] %vm1331, %v1330
      %p1333 = scmp.lt.s32.totalorder %s18, 1
      %s1334 = scalar_select %p1333, %s18, 1
      %s1335 = smul.addr %s1334, 2
      %s1336 = scalar_lea.vmem %s7, %s1335
      // Predicated region
      $region49: #{image_model_forward.4} parent=47 // pred_check
        %p1337 = pneg %p188
      $region50: #{image_model_forward.4} parent=47 // pred_check_branch
        %1339 = sbr.rel (%p1337) target = $region52
      $region51: #{image_model_forward.4} parent=47 // pred_region
        _
      $region52: #{image_model_forward.4} parent=47 // pred_fallthru
        _
    $region48: #{image_model_forward.4} parent=5 // pred_fallthru
      _
    %p1340 = scmp.le.s32.totalorder 2, %s13
    // Predicated region
    $region53: #{image_model_forward.4} parent=5 // pred_check
      %p1341 = pneg %p1340
    $region54: #{image_model_forward.4} parent=5 // pred_check_branch
      %1343 = sbr.rel (%p1341) target = $region56
    $region55: #{image_model_forward.4} parent=5 // pred_region
      %s1344 = ssub.s32 %s13, 2
      // Predicated region
      $region57: #{image_model_forward.4} parent=55 // pred_check
        %p1345 = pneg %p194
      $region58: #{image_model_forward.4} parent=55 // pred_check_branch
        %1347 = sbr.rel (%p1345) target = $region60
      $region59: #{image_model_forward.4} parent=55 // pred_region
        %p1348 = scmp.lt.s32.totalorder %s19, 1
        %s1349 = scalar_select %p1348, %s19, 1
        %s1350 = smul.addr %s1349, 2
        %s1351 = scalar_lea.vmem %s7, %s1350
      $region60: #{image_model_forward.4} parent=55 // pred_fallthru
        _
    $region56: #{image_model_forward.4} parent=5 // pred_fallthru
      _
  $region6: #{image_model_forward.4} parent=0 // loop_footer
    %s17 = sadd.s32 1, %s13
  $region7: #{image_model_forward.4} parent=0 // loop_footer_branch
    %12 = sbr.rel target = $region3
  $region8: #{image_model_forward.4} parent=0 // loop_exit
    _

// kernel: tile.28
$region0: #{tile.28}
  #allocation0 [shape = 's32[1]{0}', space=sflag, size = 0x4, scoped, tag = 'scoped memory for tile.28']
  %s0 = inlined_call_operand.vmem [shape: f32[32], index: 0, kind: input, shape index: {}]
  %s1 = inlined_call_operand.vmem [shape: f32[2,32], index: 1, kind: output, shape index: {}]
  // Predicated region
  $region2: #{tile.28} parent=0 // pred_check
    _
  $region3: #{tile.28} parent=0 // pred_check_branch
    %3 = sbr.rel (0) target = $region5
  $region4: #{tile.28} parent=0 // pred_region
    _
  $region5: #{tile.28} parent=0 // pred_fallthru
    _
  %v4 = vld [vmem:[%s0] ss:$0 sm:$0xff]
  %5 = vst [vmem:[%s1] sm:$0x3] %v4

// kernel: tile.29
$region0: #{tile.29}
  %s0 = inlined_call_operand.vmem [shape: f32[2,32], index: 0, kind: input, shape index: {}]
  %s1 = inlined_call_operand.vmem [shape: f32[1,64], index: 1, kind: output, shape index: {}]
  $region1: #{tile.29} parent=0
    #allocation0 [shape = 'u8[4096]{0}', space=vmem, size = 0x1000, scoped, tag = 'scoped mem for output reshape']
    #allocation1 [shape = 'u8[4096]{0}', space=vmem, size = 0x1000, scoped, tag = 'scoped mem for input reshape']
    %s3 = sshll.u32 1, 2
    %s4 = ssub.s32 %s3, 1
    %v5 = vld [vmem:[%s0] sm:%s4]
    %6 = vst [vmem:[#allocation1] sm:%s4] %v5
    %v7 = vld [vmem:[#allocation1] sm:$0x1]
    %vm8 = vcmask 261120
    %9 = vst.msk [vmem:[#allocation0] sm:$0x1] %vm8, %v7
    %s10 = scalar_lea.vmem [#allocation1], 1
    %v11 = vld [vmem:[%s10] sm:$0x1]
    %12 = vrot.lane.b32.xlu0 %v11, 32
    %v13 = vpop.permute.xlu0 %12
    %vm14 = vcmask 523520
    %15 = vst.msk [vmem:[#allocation0] sm:$0x1] %vm14, %v13
    %s17 = sshll.u32 1, 1
    %s18 = ssub.s32 %s17, 1
    %v20 = vld [vmem:[#allocation0] sm:%s18]
    %s21 = sshll.u32 1, 1
    %s22 = ssub.s32 %s21, 1
    %23 = vst [vmem:[%s1] sm:%s22] %v20

// kernel: image_model_forward.5
$region0: #{image_model_forward.5}
  #allocation0 [shape = 'u32[]', space=smem, size = 0x4, offset = 0x4, fixed_abs, tag = 'smem constant byte address 0x4 - core index']
  #allocation1 [shape = 'u32[144,128]{1,0:T(1,128)}', space=vmem, size = 0x12000, scoped, tag = 'internal scratch']
  %s0 = inlined_call_operand.vmem [shape: bf16[2,2,2,3,48], index: 0, kind: input, shape index: {}]
  %s1 = inlined_call_operand.vmem [shape: bf16[9,32,64], index: 1, kind: input, shape index: {}]
  %s2 = inlined_call_operand.vmem [shape: f32[1,64], index: 2, kind: input, shape index: {}]
  %s3 = inlined_call_operand.vmem [shape: bf16[1,2], index: 3, kind: input, shape index: {}]
  %s4 = inlined_call_operand.vmem [shape: bf16[1,2], index: 4, kind: input, shape index: {}]
  %s5 = inlined_call_operand.vmem [shape: bf16[64,32], index: 5, kind: input, shape index: {}]
  %s6 = inlined_call_operand.vmem [shape: bf16[64,32], index: 6, kind: input, shape index: {}]
  %s7 = inlined_call_operand.hbm [shape: f32[2,1,32], index: 7, kind: output, shape index: {}]
  %s8 = sld [smem:[#allocation0]]
  $region61: #{image_model_forward.5} parent=0
    _
  %s10 = ssub.s32 1, %s8
  %s11 = scalar_select 0, %s10, %s8
  $region1: #{image_model_forward.5} parent=0
    #allocation2 [shape = 'u8[1024]{0}', space=vmem, size = 0x400, scoped, tag = 'output window, operand 0']
    #allocation3 [shape = 's32[2]{0}', space=sflag, size = 0x8, scoped, tag = 'scoped memory for image_model_forward.5']
    %12 = vsyncpa [#allocation3], 0
    %s13 = scalar_lea.sflag [#allocation3], 1
    %14 = vsyncpa %s13, 0
    loop: start=0, step=1, limit=4
    $region2: #{image_model_forward.5} parent=1 // loop_pre_header
      _
    $region3: #{image_model_forward.5} parent=1 // loop_header
      %s16 = sphi 0, %s20
      %p17 = scmp.ge.s32.totalorder %s16, 4
      %s26 = sphi 0, %s28
      %s29 = sphi 0, %s26
      %s30 = sphi 0, %s29
      %s46 = sphi 0, %s30
      %s50 = sphi 0, %s50
      %s52 = sphi 0, %s50
      %s53 = sphi 0, %s52
      %s67 = sphi 0, %s53
      %s71 = sphi 0, %s71
      %s73 = sphi 0, %s71
      %s74 = sphi 0, %s73
      %s88 = sphi 0, %s74
      %s92 = sphi 0, %s92
      %s94 = sphi 0, %s92
      %s95 = sphi 0, %s94
      %s109 = sphi 0, %s95
      %s113 = sphi 0, %s113
      %s115 = sphi 0, %s113
      %s116 = sphi 0, %s115
      %s130 = sphi 0, %s116
      %s134 = sphi 0, %s134
      %s136 = sphi 0, %s134
      %s137 = sphi 0, %s136
      %s151 = sphi 0, %s137
      %s155 = sphi 0, %s155
      %s157 = sphi 0, %s155
      %s158 = sphi 0, %s157
      %s172 = sphi 0, %s158
      %s178 = sphi 0, %s180
      %s181 = sphi 0, %s178
      %s182 = sphi 0, %s181
      %s198 = sphi 0, %s182
    $region4: #{image_model_forward.5} parent=1 // loop_header_branch
      %19 = sbr.rel (%p17) target = $region8
    $region5: #{image_model_forward.5} parent=1 // loop_body
      %s21 = ssub.s32 %s16, 1
      %s22 = ssub.s32 %s16, 2
      %s23 = sadd.s32 %s16, 1
      %s24 = ssub.s32 %s16, %s23
      %p25 = scmp.eq.s32.totalorder %s24, 0
      %s27 = sadd.s32 %s26, 1
      %s28 = scalar_select %p25, %s26, %s27
      %p31 = pneg %p25
      %p32 = scmp.eq.s32.totalorder %s16, 1
      %p33 = por %p31, %p32
      %p34 = scmp.ne.s32.totalorder %s26, %s29
      %p35 = scmp.eq.s32.totalorder %s16, 0
      %p36 = por %p34, %p35
      %p37 = scmp.ne.s32.totalorder %s26, %s29
      %p38 = scmp.eq.s32.totalorder %s21, 1
      %p39 = por %p37, %p38
      %p40 = scmp.ne.s32.totalorder %s29, %s30
      %p41 = scmp.eq.s32.totalorder %s21, 0
      %p42 = por %p40, %p41
      %p43 = scmp.ne.s32.totalorder %s29, %s30
      %p44 = scmp.eq.s32.totalorder %s22, 1
      %p45 = por %p43, %p44
      %p47 = scmp.ne.s32.totalorder %s30, %s46
      %p48 = scmp.eq.s32.totalorder %s22, 0
      %p49 = por %p47, %p48
      %s51 = sadd.s32 %s50, 1
      %p54 = scmp.eq.s32.totalorder %s16, 1
      %p55 = scmp.ne.s32.totalorder %s50, %s52
      %p56 = scmp.eq.s32.totalorder %s16, 0
      %p57 = por %p55, %p56
      %p58 = scmp.ne.s32.totalorder %s50, %s52
      %p59 = scmp.eq.s32.totalorder %s21, 1
      %p60 = por %p58, %p59
      %p61 = scmp.ne.s32.totalorder %s52, %s53
      %p62 = scmp.eq.s32.totalorder %s21, 0
      %p63 = por %p61, %p62
      %p64 = scmp.ne.s32.totalorder %s52, %s53
      %p65 = scmp.eq.s32.totalorder %s22, 1
      %p66 = por %p64, %p65
      %p68 = scmp.ne.s32.totalorder %s53, %s67
      %p69 = scmp.eq.s32.totalorder %s22, 0
      %p70 = por %p68, %p69
      %s72 = sadd.s32 %s71, 1
      %p75 = scmp.eq.s32.totalorder %s16, 1
      %p76 = scmp.ne.s32.totalorder %s71, %s73
      %p77 = scmp.eq.s32.totalorder %s16, 0
      %p78 = por %p76, %p77
      %p79 = scmp.ne.s32.totalorder %s71, %s73
      %p80 = scmp.eq.s32.totalorder %s21, 1
      %p81 = por %p79, %p80
      %p82 = scmp.ne.s32.totalorder %s73, %s74
      %p83 = scmp.eq.s32.totalorder %s21, 0
      %p84 = por %p82, %p83
      %p85 = scmp.ne.s32.totalorder %s73, %s74
      %p86 = scmp.eq.s32.totalorder %s22, 1
      %p87 = por %p85, %p86
      %p89 = scmp.ne.s32.totalorder %s74, %s88
      %p90 = scmp.eq.s32.totalorder %s22, 0
      %p91 = por %p89, %p90
      %s93 = sadd.s32 %s92, 1
      %p96 = scmp.eq.s32.totalorder %s16, 1
      %p97 = scmp.ne.s32.totalorder %s92, %s94
      %p98 = scmp.eq.s32.totalorder %s16, 0
      %p99 = por %p97, %p98
      %p100 = scmp.ne.s32.totalorder %s92, %s94
      %p101 = scmp.eq.s32.totalorder %s21, 1
      %p102 = por %p100, %p101
      %p103 = scmp.ne.s32.totalorder %s94, %s95
      %p104 = scmp.eq.s32.totalorder %s21, 0
      %p105 = por %p103, %p104
      %p106 = scmp.ne.s32.totalorder %s94, %s95
      %p107 = scmp.eq.s32.totalorder %s22, 1
      %p108 = por %p106, %p107
      %p110 = scmp.ne.s32.totalorder %s95, %s109
      %p111 = scmp.eq.s32.totalorder %s22, 0
      %p112 = por %p110, %p111
      %s114 = sadd.s32 %s113, 1
      %p117 = scmp.eq.s32.totalorder %s16, 1
      %p118 = scmp.ne.s32.totalorder %s113, %s115
      %p119 = scmp.eq.s32.totalorder %s16, 0
      %p120 = por %p118, %p119
      %p121 = scmp.ne.s32.totalorder %s113, %s115
      %p122 = scmp.eq.s32.totalorder %s21, 1
      %p123 = por %p121, %p122
      %p124 = scmp.ne.s32.totalorder %s115, %s116
      %p125 = scmp.eq.s32.totalorder %s21, 0
      %p126 = por %p124, %p125
      %p127 = scmp.ne.s32.totalorder %s115, %s116
      %p128 = scmp.eq.s32.totalorder %s22, 1
      %p129 = por %p127, %p128
      %p131 = scmp.ne.s32.totalorder %s116, %s130
      %p132 = scmp.eq.s32.totalorder %s22, 0
      %p133 = por %p131, %p132
      %s135 = sadd.s32 %s134, 1
      %p138 = scmp.eq.s32.totalorder %s16, 1
      %p139 = scmp.ne.s32.totalorder %s134, %s136
      %p140 = scmp.eq.s32.totalorder %s16, 0
      %p141 = por %p139, %p140
      %p142 = scmp.ne.s32.totalorder %s134, %s136
      %p143 = scmp.eq.s32.totalorder %s21, 1
      %p144 = por %p142, %p143
      %p145 = scmp.ne.s32.totalorder %s136, %s137
      %p146 = scmp.eq.s32.totalorder %s21, 0
      %p147 = por %p145, %p146
      %p148 = scmp.ne.s32.totalorder %s136, %s137
      %p149 = scmp.eq.s32.totalorder %s22, 1
      %p150 = por %p148, %p149
      %p152 = scmp.ne.s32.totalorder %s137, %s151
      %p153 = scmp.eq.s32.totalorder %s22, 0
      %p154 = por %p152, %p153
      %s156 = sadd.s32 %s155, 1
      %p159 = scmp.eq.s32.totalorder %s16, 1
      %p160 = scmp.ne.s32.totalorder %s155, %s157
      %p161 = scmp.eq.s32.totalorder %s16, 0
      %p162 = por %p160, %p161
      %p163 = scmp.ne.s32.totalorder %s155, %s157
      %p164 = scmp.eq.s32.totalorder %s21, 1
      %p165 = por %p163, %p164
      %p166 = scmp.ne.s32.totalorder %s157, %s158
      %p167 = scmp.eq.s32.totalorder %s21, 0
      %p168 = por %p166, %p167
      %p169 = scmp.ne.s32.totalorder %s157, %s158
      %p170 = scmp.eq.s32.totalorder %s22, 1
      %p171 = por %p169, %p170
      %p173 = scmp.ne.s32.totalorder %s158, %s172
      %p174 = scmp.eq.s32.totalorder %s22, 0
      %p175 = por %p173, %p174
      %s176 = ssub.s32 %s16, %s23
      %p177 = scmp.eq.s32.totalorder %s176, 0
      %s179 = sadd.s32 %s178, 1
      %s180 = scalar_select %p177, %s178, %s179
      %p183 = pneg %p177
      %p184 = scmp.eq.s32.totalorder %s16, 1
      %p185 = por %p183, %p184
      %p186 = scmp.ne.s32.totalorder %s178, %s181
      %p187 = scmp.eq.s32.totalorder %s16, 0
      %p188 = por %p186, %p187
      %p189 = scmp.ne.s32.totalorder %s178, %s181
      %p190 = scmp.eq.s32.totalorder %s21, 1
      %p191 = por %p189, %p190
      %p192 = scmp.ne.s32.totalorder %s181, %s182
      %p193 = scmp.eq.s32.totalorder %s21, 0
      %p194 = por %p192, %p193
      %p195 = scmp.ne.s32.totalorder %s181, %s182
      %p196 = scmp.eq.s32.totalorder %s22, 1
      %p197 = por %p195, %p196
      %p199 = scmp.ne.s32.totalorder %s182, %s198
      %p200 = scmp.eq.s32.totalorder %s22, 0
      %p201 = por %p199, %p200
      %p202 = scmp.le.s32.totalorder 1, %s16
      %p203 = scmp.lt.s32.totalorder %s16, 3
      %p204 = pnand %p202, %p203
      %p205 = pneg %p204
      // Predicated region
      $region9: #{image_model_forward.5} parent=5 // pred_check
        _
      $region10: #{image_model_forward.5} parent=5 // pred_check_branch
        %207 = sbr.rel (%p204) target = $region12
      $region11: #{image_model_forward.5} parent=5 // pred_region
        %s208 = ssub.s32 %s16, 1
        // Predicated region
        $region13: #{image_model_forward.5} parent=11 // pred_check
          %p209 = pneg %p63
        $region14: #{image_model_forward.5} parent=11 // pred_check_branch
          %211 = sbr.rel (%p209) target = $region16
        $region15: #{image_model_forward.5} parent=11 // pred_region
          _
        $region16: #{image_model_forward.5} parent=11 // pred_fallthru
          _
        // Predicated region
        $region17: #{image_model_forward.5} parent=11 // pred_check
          %p212 = pneg %p84
        $region18: #{image_model_forward.5} parent=11 // pred_check_branch
          %214 = sbr.rel (%p212) target = $region20
        $region19: #{image_model_forward.5} parent=11 // pred_region
          _
        $region20: #{image_model_forward.5} parent=11 // pred_fallthru
          _
        // Predicated region
        $region21: #{image_model_forward.5} parent=11 // pred_check
          %p215 = pneg %p105
        $region22: #{image_model_forward.5} parent=11 // pred_check_branch
          %217 = sbr.rel (%p215) target = $region24
        $region23: #{image_model_forward.5} parent=11 // pred_region
          _
        $region24: #{image_model_forward.5} parent=11 // pred_fallthru
          _
        // Predicated region
        $region25: #{image_model_forward.5} parent=11 // pred_check
          %p218 = pneg %p126
        $region26: #{image_model_forward.5} parent=11 // pred_check_branch
          %220 = sbr.rel (%p218) target = $region28
        $region27: #{image_model_forward.5} parent=11 // pred_region
          _
        $region28: #{image_model_forward.5} parent=11 // pred_fallthru
          _
        // Predicated region
        $region29: #{image_model_forward.5} parent=11 // pred_check
          %p221 = pneg %p147
        $region30: #{image_model_forward.5} parent=11 // pred_check_branch
          %223 = sbr.rel (%p221) target = $region32
        $region31: #{image_model_forward.5} parent=11 // pred_region
          _
        $region32: #{image_model_forward.5} parent=11 // pred_fallthru
          _
        // Predicated region
        $region33: #{image_model_forward.5} parent=11 // pred_check
          %p224 = pneg %p168
        $region34: #{image_model_forward.5} parent=11 // pred_check_branch
          %226 = sbr.rel (%p224) target = $region36
        $region35: #{image_model_forward.5} parent=11 // pred_region
          _
        $region36: #{image_model_forward.5} parent=11 // pred_fallthru
          _
      $region12: #{image_model_forward.5} parent=5 // pred_fallthru
        _
      %p227 = scmp.lt.s32.totalorder %s16, 2
      // Predicated region
      $region37: #{image_model_forward.5} parent=5 // pred_check
        %p228 = pneg %p227
      $region38: #{image_model_forward.5} parent=5 // pred_check_branch
        %230 = sbr.rel (%p228) target = $region40
      $region39: #{image_model_forward.5} parent=5 // pred_region
        // Predicated region
        $region41: #{image_model_forward.5} parent=39 // pred_check
          %p231 = pneg %p36
        $region42: #{image_model_forward.5} parent=39 // pred_check_branch
          %233 = sbr.rel (%p231) target = $region44
        $region43: #{image_model_forward.5} parent=39 // pred_region
          %p234 = scmp.lt.s32.totalorder %s16, 1
          %s235 = scalar_select %p234, %s16, 1
          %s236 = smul.addr %s235, 4
          %s237 = smul.addr %s236, 2
          %s238 = scalar_lea.vmem %s0, %s237
        $region44: #{image_model_forward.5} parent=39 // pred_fallthru
          _
      $region40: #{image_model_forward.5} parent=5 // pred_fallthru
        _
      %p239 = scmp.le.s32.totalorder 1, %s16
      %p240 = scmp.lt.s32.totalorder %s16, 3
      %p241 = pnand %p239, %p240
      %p242 = pneg %p241
      // Predicated region
      $region45: #{image_model_forward.5} parent=5 // pred_check
        _
      $region46: #{image_model_forward.5} parent=5 // pred_check_branch
        %244 = sbr.rel (%p241) target = $region48
      $region47: #{image_model_forward.5} parent=5 // pred_region
        %s245 = ssub.s32 %s16, 1
        %p246 = scmp.lt.s32.totalorder %s21, 1
        %s247 = scalar_select %p246, %s21, 1
        %s248 = smul.addr %s247, 4
        %s249 = smul.addr %s248, 2
        %s250 = scalar_lea.vmem %s0, %s249
        %p251 = pneg %p42
        %p252 = pneg %p39
        %p253 = pneg %p63
        %p254 = pneg %p60
        %p255 = pneg %p84
        %p256 = pneg %p81
        %p257 = pneg %p105
        %p258 = pneg %p102
        %p259 = pneg %p126
        %p260 = pneg %p123
        %p261 = pneg %p147
        %p262 = pneg %p144
        %p263 = pneg %p168
        %p264 = pneg %p165
        %p265 = pneg %p194
        %p266 = pneg %p191
        %s267 = sand.u32 %s181, 1
        %s268 = scalar_lea.sflag [#allocation3], %s267
        %s269 = sand.u32 %s181, 1
        %s270 = scalar_lea.vmem [#allocation2], %s269
        %p271 = scmp.lt.s32.totalorder %s21, 1
        %s272 = scalar_select %p271, %s21, 1
        %s273 = smul.addr %s272, 4
        %s274 = smul.addr %s273, 2
        %s275 = scalar_lea.vmem %s0, %s274
        %v277 = vld [vmem:[%s275] sm:$0x1]
        %v278 = vld [vmem:[%s1] sm:$0xf]
        %v279 = vld [vmem:[%s1 + $0x4] sm:$0xf]
        %v280 = vld [vmem:[%s1 + $0x8] sm:$0xf]
        %v281 = vld [vmem:[%s1 + $0xc] sm:$0xf]
        %s282 = scalar_lea.vmem %s275, 2
        %v283 = vld [vmem:[%s282] sm:$0x1]
        %s284 = scalar_lea.vmem %s1, 16
        %v285 = vld [vmem:[%s284] sm:$0xf]
        %v286 = vld [vmem:[%s284 + $0x4] sm:$0xf]
        %v287 = vld [vmem:[%s284 + $0x8] sm:$0xf]
        %v288 = vld [vmem:[%s284 + $0xc] sm:$0xf]
        %v293 = vunpack.c.l.b16 %v285
        %v294 = vunpack.c.l.b16 %v286
        %v295 = vunpack.c.l.b16 %v287
        %v296 = vunpack.c.l.b16 %v288
        %v297 = vpack.c.b16 %v294, %v293
        %v298 = vpack.c.b16 %v296, %v295
        %vm301 = vcmask 261120
        %v303 = vsel %vm301, %v283, 0
        %305 = vmatprep.subr.bf16.mxu0 0
        %306 = vmatpush1.bf16.msra.mxu0 0
        %307 = vmatprep.subr.bf16.mxu0 0
        %308 = vmatpush1.bf16.msra.mxu0 0
        %309 = vmatprep.subr.bf16.mxu0 0
        %310 = vmatpush1.bf16.msra.mxu0 0
        %311 = vmatprep.subr.bf16.mxu0 0
        %312 = vmatpush1.bf16.msra.mxu0 0
        %313 = vmatprep.subr.bf16.mxu0 0
        %314 = vmatpush1.bf16.msra.mxu0 0
        %315 = vmatprep.subr.bf16.mxu0 0
        %316 = vmatpush1.bf16.msra.mxu0 0
        %317 = vmatprep.subr.bf16.mxu0 0
        %318 = vmatpush1.bf16.msra.mxu0 %v298
        %319 = vmatprep.subr.bf16.mxu0 0
        %320 = vmatpush1.bf16.msra.mxu0 %v297
        %321 = vmatprep.subr.bf16.mxu0 0
        %322 = vmatpush2.bf16.msra.mxu0 0
        %323 = vmatprep.subr.bf16.mxu0 0
        %324 = vmatpush2.bf16.msra.mxu0 0
        %325 = vmatprep.subr.bf16.mxu0 0
        %326 = vmatpush2.bf16.msra.mxu0 0
        %327 = vmatprep.subr.bf16.mxu0 0
        %328 = vmatpush2.bf16.msra.mxu0 0
        %329 = vmatprep.subr.bf16.mxu0 0
        %330 = vmatpush2.bf16.msra.mxu0 0
        %331 = vmatprep.subr.bf16.mxu0 0
        %332 = vmatpush2.bf16.msra.mxu0 0
        %333 = vmatprep.subr.bf16.mxu0 0
        %334 = vmatpush2.bf16.msra.mxu0 0
        %335 = vmatprep.subr.bf16.mxu0 0
        %336 = vmatpush2.bf16.msra.mxu0 0
        %337 = vmatprep.mubr.bf16.mxu0 0
        %338 = vmatmul.mubr.bf16.gmra.mxu0 %v303
        %v339 = vpop.f32.mrf.mxu0
        %v340 = vadd.f32 0.0, %v339
        %v341 = vpop.f32.mrf.mxu0
        %v342 = vpop.f32.mrf.mxu0
        %v343 = vpop.f32.mrf.mxu0
        %344 = vdwg.mxu0
        %v349 = vunpack.c.l.b16 %v278
        %v350 = vunpack.c.l.b16 %v279
        %v351 = vunpack.c.l.b16 %v280
        %v352 = vunpack.c.l.b16 %v281
        %v353 = vpack.c.b16 %v350, %v349
        %v354 = vpack.c.b16 %v352, %v351
        %v358 = vsel %vm301, %v277, 0
        %360 = vmatprep.subr.bf16.mxu0 0
        %361 = vmatpush1.bf16.msra.mxu0 0
        %362 = vmatprep.subr.bf16.mxu0 0
        %363 = vmatpush1.bf16.msra.mxu0 0
        %364 = vmatprep.subr.bf16.mxu0 0
        %365 = vmatpush1.bf16.msra.mxu0 0
        %366 = vmatprep.subr.bf16.mxu0 0
        %367 = vmatpush1.bf16.msra.mxu0 0
        %368 = vmatprep.subr.bf16.mxu0 0
        %369 = vmatpush1.bf16.msra.mxu0 0
        %370 = vmatprep.subr.bf16.mxu0 0
        %371 = vmatpush1.bf16.msra.mxu0 0
        %372 = vmatprep.subr.bf16.mxu0 0
        %373 = vmatpush1.bf16.msra.mxu0 %v354
        %374 = vmatprep.subr.bf16.mxu0 0
        %375 = vmatpush1.bf16.msra.mxu0 %v353
        %376 = vmatprep.subr.bf16.mxu0 0
        %377 = vmatpush2.bf16.msra.mxu0 0
        %378 = vmatprep.subr.bf16.mxu0 0
        %379 = vmatpush2.bf16.msra.mxu0 0
        %380 = vmatprep.subr.bf16.mxu0 0
        %381 = vmatpush2.bf16.msra.mxu0 0
        %382 = vmatprep.subr.bf16.mxu0 0
        %383 = vmatpush2.bf16.msra.mxu0 0
        %384 = vmatprep.subr.bf16.mxu0 0
        %385 = vmatpush2.bf16.msra.mxu0 0
        %386 = vmatprep.subr.bf16.mxu0 0
        %387 = vmatpush2.bf16.msra.mxu0 0
        %388 = vmatprep.subr.bf16.mxu0 0
        %389 = vmatpush2.bf16.msra.mxu0 0
        %390 = vmatprep.subr.bf16.mxu0 0
        %391 = vmatpush2.bf16.msra.mxu0 0
        %392 = vmatprep.mubr.bf16.mxu0 0
        %393 = vmatmul.mubr.bf16.gmra.mxu0 %v358
        %v394 = vpop.f32.mrf.mxu0
        %v395 = vadd.f32 %v340, %v394
        %v396 = vpop.f32.mrf.mxu0
        %v397 = vpop.f32.mrf.mxu0
        %v398 = vpop.f32.mrf.mxu0
        %399 = vdwg.mxu0
        %s400 = scalar_lea.vmem %s1, 32
        %v401 = vld [vmem:[%s400] sm:$0xf]
        %v402 = vld [vmem:[%s400 + $0x4] sm:$0xf]
        %v403 = vld [vmem:[%s400 + $0x8] sm:$0xf]
        %v404 = vld [vmem:[%s400 + $0xc] sm:$0xf]
        %v407 = vunpack.c.l.s4 1983009808
        %v408 = vunpack.c.0.s8 %v407
        %v409 = vlaneseq
        %v410 = vshrl.u32 %v409, 7
        %v411 = vsub.s32 %v408, %v410
        %v412 = vrot.slane %v277, %v411
        %413 = vrot.lane.b32.xlu0 %v412, 112
        %v414 = vpop.permute.xlu0 %413
        %v419 = vunpack.c.l.b16 %v401
        %v420 = vunpack.c.l.b16 %v402
        %v421 = vunpack.c.l.b16 %v403
        %v422 = vunpack.c.l.b16 %v404
        %v423 = vpack.c.b16 %v420, %v419
        %v424 = vpack.c.b16 %v422, %v421
        %v428 = vsel %vm301, %v414, 0
        %430 = vmatprep.subr.bf16.mxu0 0
        %431 = vmatpush1.bf16.msra.mxu0 0
        %432 = vmatprep.subr.bf16.mxu0 0
        %433 = vmatpush1.bf16.msra.mxu0 0
        %434 = vmatprep.subr.bf16.mxu0 0
        %435 = vmatpush1.bf16.msra.mxu0 0
        %436 = vmatprep.subr.bf16.mxu0 0
        %437 = vmatpush1.bf16.msra.mxu0 0
        %438 = vmatprep.subr.bf16.mxu0 0
        %439 = vmatpush1.bf16.msra.mxu0 0
        %440 = vmatprep.subr.bf16.mxu0 0
        %441 = vmatpush1.bf16.msra.mxu0 0
        %442 = vmatprep.subr.bf16.mxu0 0
        %443 = vmatpush1.bf16.msra.mxu0 %v424
        %444 = vmatprep.subr.bf16.mxu0 0
        %445 = vmatpush1.bf16.msra.mxu0 %v423
        %446 = vmatprep.subr.bf16.mxu0 0
        %447 = vmatpush2.bf16.msra.mxu0 0
        %448 = vmatprep.subr.bf16.mxu0 0
        %449 = vmatpush2.bf16.msra.mxu0 0
        %450 = vmatprep.subr.bf16.mxu0 0
        %451 = vmatpush2.bf16.msra.mxu0 0
        %452 = vmatprep.subr.bf16.mxu0 0
        %453 = vmatpush2.bf16.msra.mxu0 0
        %454 = vmatprep.subr.bf16.mxu0 0
        %455 = vmatpush2.bf16.msra.mxu0 0
        %456 = vmatprep.subr.bf16.mxu0 0
        %457 = vmatpush2.bf16.msra.mxu0 0
        %458 = vmatprep.subr.bf16.mxu0 0
        %459 = vmatpush2.bf16.msra.mxu0 0
        %460 = vmatprep.subr.bf16.mxu0 0
        %461 = vmatpush2.bf16.msra.mxu0 0
        %462 = vmatprep.mubr.bf16.mxu0 0
        %463 = vmatmul.mubr.bf16.gmra.mxu0 %v428
        %v464 = vpop.f32.mrf.mxu0
        %v465 = vadd.f32 0.0, %v464
        %v466 = vpop.f32.mrf.mxu0
        %v467 = vpop.f32.mrf.mxu0
        %v468 = vpop.f32.mrf.mxu0
        %469 = vdwg.mxu0
        %v470 = vadd.f32 %v395, %v465
        %s471 = scalar_lea.vmem %s275, 4
        %v472 = vld [vmem:[%s471] sm:$0x1]
        %s473 = scalar_lea.vmem %s1, 48
        %v474 = vld [vmem:[%s473] sm:$0xf]
        %v475 = vld [vmem:[%s473 + $0x4] sm:$0xf]
        %v476 = vld [vmem:[%s473 + $0x8] sm:$0xf]
        %v477 = vld [vmem:[%s473 + $0xc] sm:$0xf]
        %v482 = vunpack.c.l.b16 %v474
        %v483 = vunpack.c.l.b16 %v475
        %v484 = vunpack.c.l.b16 %v476
        %v485 = vunpack.c.l.b16 %v477
        %v486 = vpack.c.b16 %v483, %v482
        %v487 = vpack.c.b16 %v485, %v484
        %v491 = vsel %vm301, %v472, 0
        %493 = vmatprep.subr.bf16.mxu0 0
        %494 = vmatpush1.bf16.msra.mxu0 0
        %495 = vmatprep.subr.bf16.mxu0 0
        %496 = vmatpush1.bf16.msra.mxu0 0
        %497 = vmatprep.subr.bf16.mxu0 0
        %498 = vmatpush1.bf16.msra.mxu0 0
        %499 = vmatprep.subr.bf16.mxu0 0
        %500 = vmatpush1.bf16.msra.mxu0 0
        %501 = vmatprep.subr.bf16.mxu0 0
        %502 = vmatpush1.bf16.msra.mxu0 0
        %503 = vmatprep.subr.bf16.mxu0 0
        %504 = vmatpush1.bf16.msra.mxu0 0
        %505 = vmatprep.subr.bf16.mxu0 0
        %506 = vmatpush1.bf16.msra.mxu0 %v487
        %507 = vmatprep.subr.bf16.mxu0 0
        %508 = vmatpush1.bf16.msra.mxu0 %v486
        %509 = vmatprep.subr.bf16.mxu0 0
        %510 = vmatpush2.bf16.msra.mxu0 0
        %511 = vmatprep.subr.bf16.mxu0 0
        %512 = vmatpush2.bf16.msra.mxu0 0
        %513 = vmatprep.subr.bf16.mxu0 0
        %514 = vmatpush2.bf16.msra.mxu0 0
        %515 = vmatprep.subr.bf16.mxu0 0
        %516 = vmatpush2.bf16.msra.mxu0 0
        %517 = vmatprep.subr.bf16.mxu0 0
        %518 = vmatpush2.bf16.msra.mxu0 0
        %519 = vmatprep.subr.bf16.mxu0 0
        %520 = vmatpush2.bf16.msra.mxu0 0
        %521 = vmatprep.subr.bf16.mxu0 0
        %522 = vmatpush2.bf16.msra.mxu0 0
        %523 = vmatprep.subr.bf16.mxu0 0
        %524 = vmatpush2.bf16.msra.mxu0 0
        %525 = vmatprep.mubr.bf16.mxu0 0
        %526 = vmatmul.mubr.bf16.gmra.mxu0 %v491
        %v527 = vpop.f32.mrf.mxu0
        %v528 = vadd.f32 0.0, %v527
        %v529 = vpop.f32.mrf.mxu0
        %v530 = vpop.f32.mrf.mxu0
        %v531 = vpop.f32.mrf.mxu0
        %532 = vdwg.mxu0
        %v533 = vadd.f32 %v470, %v528
        %s534 = scalar_lea.vmem %s275, 6
        %v535 = vld [vmem:[%s534] sm:$0x1]
        %s536 = scalar_lea.vmem %s1, 64
        %v537 = vld [vmem:[%s536] sm:$0xf]
        %v538 = vld [vmem:[%s536 + $0x4] sm:$0xf]
        %v539 = vld [vmem:[%s536 + $0x8] sm:$0xf]
        %v540 = vld [vmem:[%s536 + $0xc] sm:$0xf]
        %v545 = vunpack.c.l.b16 %v537
        %v546 = vunpack.c.l.b16 %v538
        %v547 = vunpack.c.l.b16 %v539
        %v548 = vunpack.c.l.b16 %v540
        %v549 = vpack.c.b16 %v546, %v545
        %v550 = vpack.c.b16 %v548, %v547
        %v554 = vsel %vm301, %v535, 0
        %556 = vmatprep.subr.bf16.mxu0 0
        %557 = vmatpush1.bf16.msra.mxu0 0
        %558 = vmatprep.subr.bf16.mxu0 0
        %559 = vmatpush1.bf16.msra.mxu0 0
        %560 = vmatprep.subr.bf16.mxu0 0
        %561 = vmatpush1.bf16.msra.mxu0 0
        %562 = vmatprep.subr.bf16.mxu0 0
        %563 = vmatpush1.bf16.msra.mxu0 0
        %564 = vmatprep.subr.bf16.mxu0 0
        %565 = vmatpush1.bf16.msra.mxu0 0
        %566 = vmatprep.subr.bf16.mxu0 0
        %567 = vmatpush1.bf16.msra.mxu0 0
        %568 = vmatprep.subr.bf16.mxu0 0
        %569 = vmatpush1.bf16.msra.mxu0 %v550
        %570 = vmatprep.subr.bf16.mxu0 0
        %571 = vmatpush1.bf16.msra.mxu0 %v549
        %572 = vmatprep.subr.bf16.mxu0 0
        %573 = vmatpush2.bf16.msra.mxu0 0
        %574 = vmatprep.subr.bf16.mxu0 0
        %575 = vmatpush2.bf16.msra.mxu0 0
        %576 = vmatprep.subr.bf16.mxu0 0
        %577 = vmatpush2.bf16.msra.mxu0 0
        %578 = vmatprep.subr.bf16.mxu0 0
        %579 = vmatpush2.bf16.msra.mxu0 0
        %580 = vmatprep.subr.bf16.mxu0 0
        %581 = vmatpush2.bf16.msra.mxu0 0
        %582 = vmatprep.subr.bf16.mxu0 0
        %583 = vmatpush2.bf16.msra.mxu0 0
        %584 = vmatprep.subr.bf16.mxu0 0
        %585 = vmatpush2.bf16.msra.mxu0 0
        %586 = vmatprep.subr.bf16.mxu0 0
        %587 = vmatpush2.bf16.msra.mxu0 0
        %588 = vmatprep.mubr.bf16.mxu0 0
        %589 = vmatmul.mubr.bf16.gmra.mxu0 %v554
        %v590 = vpop.f32.mrf.mxu0
        %v591 = vadd.f32 0.0, %v590
        %v592 = vpop.f32.mrf.mxu0
        %v593 = vpop.f32.mrf.mxu0
        %v594 = vpop.f32.mrf.mxu0
        %595 = vdwg.mxu0
        %v596 = vadd.f32 %v533, %v591
        %s597 = scalar_lea.vmem %s1, 80
        %v598 = vld [vmem:[%s597] sm:$0xf]
        %v599 = vld [vmem:[%s597 + $0x4] sm:$0xf]
        %v600 = vld [vmem:[%s597 + $0x8] sm:$0xf]
        %v601 = vld [vmem:[%s597 + $0xc] sm:$0xf]
        %v604 = vunpack.c.l.s4 1983009808
        %v605 = vunpack.c.0.s8 %v604
        %v606 = vlaneseq
        %v607 = vshrl.u32 %v606, 7
        %v608 = vsub.s32 %v605, %v607
        %v609 = vrot.slane %v472, %v608
        %610 = vrot.lane.b32.xlu0 %v609, 112
        %v611 = vpop.permute.xlu0 %610
        %v616 = vunpack.c.l.b16 %v598
        %v617 = vunpack.c.l.b16 %v599
        %v618 = vunpack.c.l.b16 %v600
        %v619 = vunpack.c.l.b16 %v601
        %v620 = vpack.c.b16 %v617, %v616
        %v621 = vpack.c.b16 %v619, %v618
        %v625 = vsel %vm301, %v611, 0
        %627 = vmatprep.subr.bf16.mxu0 0
        %628 = vmatpush1.bf16.msra.mxu0 0
        %629 = vmatprep.subr.bf16.mxu0 0
        %630 = vmatpush1.bf16.msra.mxu0 0
        %631 = vmatprep.subr.bf16.mxu0 0
        %632 = vmatpush1.bf16.msra.mxu0 0
        %633 = vmatprep.subr.bf16.mxu0 0
        %634 = vmatpush1.bf16.msra.mxu0 0
        %635 = vmatprep.subr.bf16.mxu0 0
        %636 = vmatpush1.bf16.msra.mxu0 0
        %637 = vmatprep.subr.bf16.mxu0 0
        %638 = vmatpush1.bf16.msra.mxu0 0
        %639 = vmatprep.subr.bf16.mxu0 0
        %640 = vmatpush1.bf16.msra.mxu0 %v621
        %641 = vmatprep.subr.bf16.mxu0 0
        %642 = vmatpush1.bf16.msra.mxu0 %v620
        %643 = vmatprep.subr.bf16.mxu0 0
        %644 = vmatpush2.bf16.msra.mxu0 0
        %645 = vmatprep.subr.bf16.mxu0 0
        %646 = vmatpush2.bf16.msra.mxu0 0
        %647 = vmatprep.subr.bf16.mxu0 0
        %648 = vmatpush2.bf16.msra.mxu0 0
        %649 = vmatprep.subr.bf16.mxu0 0
        %650 = vmatpush2.bf16.msra.mxu0 0
        %651 = vmatprep.subr.bf16.mxu0 0
        %652 = vmatpush2.bf16.msra.mxu0 0
        %653 = vmatprep.subr.bf16.mxu0 0
        %654 = vmatpush2.bf16.msra.mxu0 0
        %655 = vmatprep.subr.bf16.mxu0 0
        %656 = vmatpush2.bf16.msra.mxu0 0
        %657 = vmatprep.subr.bf16.mxu0 0
        %658 = vmatpush2.bf16.msra.mxu0 0
        %659 = vmatprep.mubr.bf16.mxu0 0
        %660 = vmatmul.mubr.bf16.gmra.mxu0 %v625
        %v661 = vpop.f32.mrf.mxu0
        %v662 = vadd.f32 0.0, %v661
        %v663 = vpop.f32.mrf.mxu0
        %v664 = vpop.f32.mrf.mxu0
        %v665 = vpop.f32.mrf.mxu0
        %666 = vdwg.mxu0
        %v667 = vadd.f32 %v596, %v662
        %v668 = vld [vmem:[%s275] sm:$0x3]
        %s669 = scalar_lea.vmem %s1, 96
        %v670 = vld [vmem:[%s669] sm:$0xf]
        %v671 = vld [vmem:[%s669 + $0x4] sm:$0xf]
        %v672 = vld [vmem:[%s669 + $0x8] sm:$0xf]
        %v673 = vld [vmem:[%s669 + $0xc] sm:$0xf]
        %v676 = vunpack.c.l.s4 1983009808
        %v677 = vunpack.c.0.s8 %v676
        %v678 = vlaneseq
        %v679 = vshrl.u32 %v678, 7
        %v680 = vsub.s32 %v677, %v679
        %v681 = vrot.slane %v668, %v680
        %v683 = vshrl.u32 %v681, 16
        %v685 = vshll.u32 %v681, 16
        %v687 = vrot.slane %v685, 1
        %v688 = vor.u32 %v683, %v687
        %v693 = vunpack.c.l.b16 %v670
        %v694 = vunpack.c.l.b16 %v671
        %v695 = vunpack.c.l.b16 %v672
        %v696 = vunpack.c.l.b16 %v673
        %v697 = vpack.c.b16 %v694, %v693
        %v698 = vpack.c.b16 %v696, %v695
        %v702 = vsel %vm301, %v688, 0
        %704 = vmatprep.subr.bf16.mxu0 0
        %705 = vmatpush1.bf16.msra.mxu0 0
        %706 = vmatprep.subr.bf16.mxu0 0
        %707 = vmatpush1.bf16.msra.mxu0 0
        %708 = vmatprep.subr.bf16.mxu0 0
        %709 = vmatpush1.bf16.msra.mxu0 0
        %710 = vmatprep.subr.bf16.mxu0 0
        %711 = vmatpush1.bf16.msra.mxu0 0
        %712 = vmatprep.subr.bf16.mxu0 0
        %713 = vmatpush1.bf16.msra.mxu0 0
        %714 = vmatprep.subr.bf16.mxu0 0
        %715 = vmatpush1.bf16.msra.mxu0 0
        %716 = vmatprep.subr.bf16.mxu0 0
        %717 = vmatpush1.bf16.msra.mxu0 %v698
        %718 = vmatprep.subr.bf16.mxu0 0
        %719 = vmatpush1.bf16.msra.mxu0 %v697
        %720 = vmatprep.subr.bf16.mxu0 0
        %721 = vmatpush2.bf16.msra.mxu0 0
        %722 = vmatprep.subr.bf16.mxu0 0
        %723 = vmatpush2.bf16.msra.mxu0 0
        %724 = vmatprep.subr.bf16.mxu0 0
        %725 = vmatpush2.bf16.msra.mxu0 0
        %726 = vmatprep.subr.bf16.mxu0 0
        %727 = vmatpush2.bf16.msra.mxu0 0
        %728 = vmatprep.subr.bf16.mxu0 0
        %729 = vmatpush2.bf16.msra.mxu0 0
        %730 = vmatprep.subr.bf16.mxu0 0
        %731 = vmatpush2.bf16.msra.mxu0 0
        %732 = vmatprep.subr.bf16.mxu0 0
        %733 = vmatpush2.bf16.msra.mxu0 0
        %734 = vmatprep.subr.bf16.mxu0 0
        %735 = vmatpush2.bf16.msra.mxu0 0
        %736 = vmatprep.mubr.bf16.mxu0 0
        %737 = vmatmul.mubr.bf16.gmra.mxu0 %v702
        %v738 = vpop.f32.mrf.mxu0
        %v739 = vadd.f32 0.0, %v738
        %v740 = vpop.f32.mrf.mxu0
        %v741 = vpop.f32.mrf.mxu0
        %v742 = vpop.f32.mrf.mxu0
        %743 = vdwg.mxu0
        %v744 = vadd.f32 %v667, %v739
        %v745 = vld [vmem:[%s282] sm:$0x3]
        %s746 = scalar_lea.vmem %s1, 112
        %v747 = vld [vmem:[%s746] sm:$0xf]
        %v748 = vld [vmem:[%s746 + $0x4] sm:$0xf]
        %v749 = vld [vmem:[%s746 + $0x8] sm:$0xf]
        %v750 = vld [vmem:[%s746 + $0xc] sm:$0xf]
        %v753 = vunpack.c.l.s4 1983009808
        %v754 = vunpack.c.0.s8 %v753
        %v755 = vlaneseq
        %v756 = vshrl.u32 %v755, 7
        %v757 = vsub.s32 %v754, %v756
        %v758 = vrot.slane %v745, %v757
        %v760 = vshrl.u32 %v758, 16
        %v762 = vshll.u32 %v758, 16
        %v764 = vrot.slane %v762, 1
        %v765 = vor.u32 %v760, %v764
        %v770 = vunpack.c.l.b16 %v747
        %v771 = vunpack.c.l.b16 %v748
        %v772 = vunpack.c.l.b16 %v749
        %v773 = vunpack.c.l.b16 %v750
        %v774 = vpack.c.b16 %v771, %v770
        %v775 = vpack.c.b16 %v773, %v772
        %v779 = vsel %vm301, %v765, 0
        %781 = vmatprep.subr.bf16.mxu0 0
        %782 = vmatpush1.bf16.msra.mxu0 0
        %783 = vmatprep.subr.bf16.mxu0 0
        %784 = vmatpush1.bf16.msra.mxu0 0
        %785 = vmatprep.subr.bf16.mxu0 0
        %786 = vmatpush1.bf16.msra.mxu0 0
        %787 = vmatprep.subr.bf16.mxu0 0
        %788 = vmatpush1.bf16.msra.mxu0 0
        %789 = vmatprep.subr.bf16.mxu0 0
        %790 = vmatpush1.bf16.msra.mxu0 0
        %791 = vmatprep.subr.bf16.mxu0 0
        %792 = vmatpush1.bf16.msra.mxu0 0
        %793 = vmatprep.subr.bf16.mxu0 0
        %794 = vmatpush1.bf16.msra.mxu0 %v775
        %795 = vmatprep.subr.bf16.mxu0 0
        %796 = vmatpush1.bf16.msra.mxu0 %v774
        %797 = vmatprep.subr.bf16.mxu0 0
        %798 = vmatpush2.bf16.msra.mxu0 0
        %799 = vmatprep.subr.bf16.mxu0 0
        %800 = vmatpush2.bf16.msra.mxu0 0
        %801 = vmatprep.subr.bf16.mxu0 0
        %802 = vmatpush2.bf16.msra.mxu0 0
        %803 = vmatprep.subr.bf16.mxu0 0
        %804 = vmatpush2.bf16.msra.mxu0 0
        %805 = vmatprep.subr.bf16.mxu0 0
        %806 = vmatpush2.bf16.msra.mxu0 0
        %807 = vmatprep.subr.bf16.mxu0 0
        %808 = vmatpush2.bf16.msra.mxu0 0
        %809 = vmatprep.subr.bf16.mxu0 0
        %810 = vmatpush2.bf16.msra.mxu0 0
        %811 = vmatprep.subr.bf16.mxu0 0
        %812 = vmatpush2.bf16.msra.mxu0 0
        %813 = vmatprep.mubr.bf16.mxu0 0
        %814 = vmatmul.mubr.bf16.gmra.mxu0 %v779
        %v815 = vpop.f32.mrf.mxu0
        %v816 = vadd.f32 0.0, %v815
        %v817 = vpop.f32.mrf.mxu0
        %v818 = vpop.f32.mrf.mxu0
        %v819 = vpop.f32.mrf.mxu0
        %820 = vdwg.mxu0
        %v821 = vadd.f32 %v744, %v816
        %v822 = vld [vmem:[%s275] sm:$0x3]
        %s823 = scalar_lea.vmem %s1, 128
        %v824 = vld [vmem:[%s823] sm:$0xf]
        %v825 = vld [vmem:[%s823 + $0x4] sm:$0xf]
        %v826 = vld [vmem:[%s823 + $0x8] sm:$0xf]
        %v827 = vld [vmem:[%s823 + $0xc] sm:$0xf]
        %v830 = vunpack.c.l.s4 1983009808
        %v831 = vunpack.c.0.s8 %v830
        %v832 = vlaneseq
        %v833 = vshrl.u32 %v832, 7
        %v834 = vsub.s32 %v831, %v833
        %v835 = vrot.slane %v822, %v834
        %v837 = vshrl.u32 %v835, 16
        %v839 = vshll.u32 %v835, 16
        %v841 = vrot.slane %v839, 1
        %v842 = vor.u32 %v837, %v841
        %843 = vrot.lane.b32.xlu0 %v842, 112
        %v844 = vpop.permute.xlu0 %843
        %v849 = vunpack.c.l.b16 %v824
        %v850 = vunpack.c.l.b16 %v825
        %v851 = vunpack.c.l.b16 %v826
        %v852 = vunpack.c.l.b16 %v827
        %v853 = vpack.c.b16 %v850, %v849
        %v854 = vpack.c.b16 %v852, %v851
        %v858 = vsel %vm301, %v844, 0
        %860 = vmatprep.subr.bf16.mxu0 0
        %861 = vmatpush1.bf16.msra.mxu0 0
        %862 = vmatprep.subr.bf16.mxu0 0
        %863 = vmatpush1.bf16.msra.mxu0 0
        %864 = vmatprep.subr.bf16.mxu0 0
        %865 = vmatpush1.bf16.msra.mxu0 0
        %866 = vmatprep.subr.bf16.mxu0 0
        %867 = vmatpush1.bf16.msra.mxu0 0
        %868 = vmatprep.subr.bf16.mxu0 0
        %869 = vmatpush1.bf16.msra.mxu0 0
        %870 = vmatprep.subr.bf16.mxu0 0
        %871 = vmatpush1.bf16.msra.mxu0 0
        %872 = vmatprep.subr.bf16.mxu0 0
        %873 = vmatpush1.bf16.msra.mxu0 %v854
        %874 = vmatprep.subr.bf16.mxu0 0
        %875 = vmatpush1.bf16.msra.mxu0 %v853
        %876 = vmatprep.subr.bf16.mxu0 0
        %877 = vmatpush2.bf16.msra.mxu0 0
        %878 = vmatprep.subr.bf16.mxu0 0
        %879 = vmatpush2.bf16.msra.mxu0 0
        %880 = vmatprep.subr.bf16.mxu0 0
        %881 = vmatpush2.bf16.msra.mxu0 0
        %882 = vmatprep.subr.bf16.mxu0 0
        %883 = vmatpush2.bf16.msra.mxu0 0
        %884 = vmatprep.subr.bf16.mxu0 0
        %885 = vmatpush2.bf16.msra.mxu0 0
        %886 = vmatprep.subr.bf16.mxu0 0
        %887 = vmatpush2.bf16.msra.mxu0 0
        %888 = vmatprep.subr.bf16.mxu0 0
        %889 = vmatpush2.bf16.msra.mxu0 0
        %890 = vmatprep.subr.bf16.mxu0 0
        %891 = vmatpush2.bf16.msra.mxu0 0
        %892 = vmatprep.mubr.bf16.mxu0 0
        %893 = vmatmul.mubr.bf16.gmra.mxu0 %v858
        %v894 = vpop.f32.mrf.mxu0
        %v895 = vadd.f32 0.0, %v894
        %v896 = vpop.f32.mrf.mxu0
        %v897 = vpop.f32.mrf.mxu0
        %v898 = vpop.f32.mrf.mxu0
        %899 = vdwg.mxu0
        %v900 = vadd.f32 %v821, %v895
        %v901 = vld [vmem:[%s2] sm:$0x1]
        %v903 = vlaneseq
        %v904 = vshrl.u32 %v903, 7
        %v905 = vsub.s32 0, %v904
        %v906 = vrot.slane %v901, %v905
        %v908 = vadd.f32 %v900, %v906
        %v909 = vmax.f32 %v908, 0.0
        %v910 = vpack.c.bf16 %v909, %v909
        %v911 = vld [vmem:[%s3] sm:$0x1]
        %vm912 = vcmask 15360
        %v914 = vsel %vm912, %v911, 0
        %vm916 = vcmask 1040384
        %v918 = vsel %vm916, %v910, 0
        %920 = vmatprep.subr.bf16.mxu0 0
        %921 = vmatpush1.bf16.msra.mxu0 0
        %922 = vmatprep.subr.bf16.mxu0 0
        %923 = vmatpush1.bf16.msra.mxu0 0
        %924 = vmatprep.subr.bf16.mxu0 0
        %925 = vmatpush1.bf16.msra.mxu0 0
        %926 = vmatprep.subr.bf16.mxu0 0
        %927 = vmatpush1.bf16.msra.mxu0 0
        %928 = vmatprep.subr.bf16.mxu0 0
        %929 = vmatpush1.bf16.msra.mxu0 0
        %930 = vmatprep.subr.bf16.mxu0 0
        %931 = vmatpush1.bf16.msra.mxu0 0
        %932 = vmatprep.subr.bf16.mxu0 0
        %933 = vmatpush1.bf16.msra.mxu0 0
        %934 = vmatprep.subr.bf16.mxu0 0
        %935 = vmatpush1.bf16.msra.mxu0 %v918
        %936 = vmatprep.subr.bf16.mxu0 0
        %937 = vmatpush2.bf16.msra.mxu0 0
        %938 = vmatprep.subr.bf16.mxu0 0
        %939 = vmatpush2.bf16.msra.mxu0 0
        %940 = vmatprep.subr.bf16.mxu0 0
        %941 = vmatpush2.bf16.msra.mxu0 0
        %942 = vmatprep.subr.bf16.mxu0 0
        %943 = vmatpush2.bf16.msra.mxu0 0
        %944 = vmatprep.subr.bf16.mxu0 0
        %945 = vmatpush2.bf16.msra.mxu0 0
        %946 = vmatprep.subr.bf16.mxu0 0
        %947 = vmatpush2.bf16.msra.mxu0 0
        %948 = vmatprep.subr.bf16.mxu0 0
        %949 = vmatpush2.bf16.msra.mxu0 0
        %950 = vmatprep.subr.bf16.mxu0 0
        %951 = vmatpush2.bf16.msra.mxu0 0
        %952 = vmatprep.mubr.bf16.mxu0 0
        %953 = vmatmul.mubr.bf16.gmra.mxu0 %v914
        %v954 = vpop.f32.mrf.mxu0
        %v955 = vadd.f32 0.0, %v954
        %v956 = vpop.f32.mrf.mxu0
        %v957 = vpop.f32.mrf.mxu0
        %v958 = vpop.f32.mrf.mxu0
        %959 = vdwg.mxu0
        %v960 = vld [vmem:[%s4] sm:$0x1]
        %v962 = vsel %vm912, %v960, 0
        %964 = vmatprep.subr.bf16.mxu0 0
        %965 = vmatpush1.bf16.msra.mxu0 0
        %966 = vmatprep.subr.bf16.mxu0 0
        %967 = vmatpush1.bf16.msra.mxu0 0
        %968 = vmatprep.subr.bf16.mxu0 0
        %969 = vmatpush1.bf16.msra.mxu0 0
        %970 = vmatprep.subr.bf16.mxu0 0
        %971 = vmatpush1.bf16.msra.mxu0 0
        %972 = vmatprep.subr.bf16.mxu0 0
        %973 = vmatpush1.bf16.msra.mxu0 0
        %974 = vmatprep.subr.bf16.mxu0 0
        %975 = vmatpush1.bf16.msra.mxu0 0
        %976 = vmatprep.subr.bf16.mxu0 0
        %977 = vmatpush1.bf16.msra.mxu0 0
        %978 = vmatprep.subr.bf16.mxu0 0
        %979 = vmatpush1.bf16.msra.mxu0 %v918
        %980 = vmatprep.subr.bf16.mxu0 0
        %981 = vmatpush2.bf16.msra.mxu0 0
        %982 = vmatprep.subr.bf16.mxu0 0
        %983 = vmatpush2.bf16.msra.mxu0 0
        %984 = vmatprep.subr.bf16.mxu0 0
        %985 = vmatpush2.bf16.msra.mxu0 0
        %986 = vmatprep.subr.bf16.mxu0 0
        %987 = vmatpush2.bf16.msra.mxu0 0
        %988 = vmatprep.subr.bf16.mxu0 0
        %989 = vmatpush2.bf16.msra.mxu0 0
        %990 = vmatprep.subr.bf16.mxu0 0
        %991 = vmatpush2.bf16.msra.mxu0 0
        %992 = vmatprep.subr.bf16.mxu0 0
        %993 = vmatpush2.bf16.msra.mxu0 0
        %994 = vmatprep.subr.bf16.mxu0 0
        %995 = vmatpush2.bf16.msra.mxu0 0
        %996 = vmatprep.mubr.bf16.mxu0 0
        %997 = vmatmul.mubr.bf16.gmra.mxu0 %v962
        %v998 = vpop.f32.mrf.mxu0
        %v999 = vadd.f32 0.0, %v998
        %v1000 = vpop.f32.mrf.mxu0
        %v1001 = vpop.f32.mrf.mxu0
        %v1002 = vpop.f32.mrf.mxu0
        %1003 = vdwg.mxu0
        %v1004 = vmax.f32 %v955, %v999
        %v1005 = vpack.c.bf16 %v1004, %v1004
        %v1006 = vld [vmem:[%s5] sm:$0xf]
        %v1007 = vld [vmem:[%s5 + $0x4] sm:$0xf]
        %v1008 = vld [vmem:[%s5 + $0x8] sm:$0xf]
        %v1009 = vld [vmem:[%s5 + $0xc] sm:$0xf]
        %v1010 = vld [vmem:[%s5 + $0x10] sm:$0xf]
        %v1011 = vld [vmem:[%s5 + $0x14] sm:$0xf]
        %v1012 = vld [vmem:[%s5 + $0x18] sm:$0xf]
        %v1013 = vld [vmem:[%s5 + $0x1c] sm:$0xf]
        %v1022 = vunpack.c.l.b16 %v1006
        %v1023 = vunpack.c.l.b16 %v1007
        %v1024 = vunpack.c.l.b16 %v1008
        %v1025 = vunpack.c.l.b16 %v1009
        %v1026 = vunpack.c.l.b16 %v1010
        %v1027 = vunpack.c.l.b16 %v1011
        %v1028 = vunpack.c.l.b16 %v1012
        %v1029 = vunpack.c.l.b16 %v1013
        %v1030 = vpack.c.b16 %v1023, %v1022
        %v1031 = vpack.c.b16 %v1025, %v1024
        %v1032 = vpack.c.b16 %v1027, %v1026
        %v1033 = vpack.c.b16 %v1029, %v1028
        %vm1038 = vcmask 523264
        %v1040 = vsel %vm1038, %v1005, 0
        %1042 = vmatprep.subr.bf16.mxu0 0
        %1043 = vmatpush1.bf16.msra.mxu0 0
        %1044 = vmatprep.subr.bf16.mxu0 0
        %1045 = vmatpush1.bf16.msra.mxu0 0
        %1046 = vmatprep.subr.bf16.mxu0 0
        %1047 = vmatpush1.bf16.msra.mxu0 0
        %1048 = vmatprep.subr.bf16.mxu0 0
        %1049 = vmatpush1.bf16.msra.mxu0 0
        %1050 = vmatprep.subr.bf16.mxu0 0
        %1051 = vmatpush1.bf16.msra.mxu0 %v1033
        %1052 = vmatprep.subr.bf16.mxu0 0
        %1053 = vmatpush1.bf16.msra.mxu0 %v1032
        %1054 = vmatprep.subr.bf16.mxu0 0
        %1055 = vmatpush1.bf16.msra.mxu0 %v1031
        %1056 = vmatprep.subr.bf16.mxu0 0
        %1057 = vmatpush1.bf16.msra.mxu0 %v1030
        %1058 = vmatprep.subr.bf16.mxu0 0
        %1059 = vmatpush2.bf16.msra.mxu0 0
        %1060 = vmatprep.subr.bf16.mxu0 0
        %1061 = vmatpush2.bf16.msra.mxu0 0
        %1062 = vmatprep.subr.bf16.mxu0 0
        %1063 = vmatpush2.bf16.msra.mxu0 0
        %1064 = vmatprep.subr.bf16.mxu0 0
        %1065 = vmatpush2.bf16.msra.mxu0 0
        %1066 = vmatprep.subr.bf16.mxu0 0
        %1067 = vmatpush2.bf16.msra.mxu0 0
        %1068 = vmatprep.subr.bf16.mxu0 0
        %1069 = vmatpush2.bf16.msra.mxu0 0
        %1070 = vmatprep.subr.bf16.mxu0 0
        %1071 = vmatpush2.bf16.msra.mxu0 0
        %1072 = vmatprep.subr.bf16.mxu0 0
        %1073 = vmatpush2.bf16.msra.mxu0 0
        %1074 = vmatprep.mubr.bf16.mxu0 0
        %1075 = vmatmul.mubr.bf16.gmra.mxu0 %v1040
        %v1076 = vpop.f32.mrf.mxu0
        %v1077 = vadd.f32 0.0, %v1076
        %v1078 = vpop.f32.mrf.mxu0
        %v1079 = vpop.f32.mrf.mxu0
        %v1080 = vpop.f32.mrf.mxu0
        %1081 = vdwg.mxu0
        %v1082 = vld [vmem:[%s6] sm:$0xf]
        %v1083 = vld [vmem:[%s6 + $0x4] sm:$0xf]
        %v1084 = vld [vmem:[%s6 + $0x8] sm:$0xf]
        %v1085 = vld [vmem:[%s6 + $0xc] sm:$0xf]
        %v1086 = vld [vmem:[%s6 + $0x10] sm:$0xf]
        %v1087 = vld [vmem:[%s6 + $0x14] sm:$0xf]
        %v1088 = vld [vmem:[%s6 + $0x18] sm:$0xf]
        %v1089 = vld [vmem:[%s6 + $0x1c] sm:$0xf]
        %v1098 = vunpack.c.l.b16 %v1082
        %v1099 = vunpack.c.l.b16 %v1083
        %v1100 = vunpack.c.l.b16 %v1084
        %v1101 = vunpack.c.l.b16 %v1085
        %v1102 = vunpack.c.l.b16 %v1086
        %v1103 = vunpack.c.l.b16 %v1087
        %v1104 = vunpack.c.l.b16 %v1088
        %v1105 = vunpack.c.l.b16 %v1089
        %v1106 = vpack.c.b16 %v1099, %v1098
        %v1107 = vpack.c.b16 %v1101, %v1100
        %v1108 = vpack.c.b16 %v1103, %v1102
        %v1109 = vpack.c.b16 %v1105, %v1104
        %1114 = vmatprep.subr.bf16.mxu0 0
        %1115 = vmatpush1.bf16.msra.mxu0 0
        %1116 = vmatprep.subr.bf16.mxu0 0
        %1117 = vmatpush1.bf16.msra.mxu0 0
        %1118 = vmatprep.subr.bf16.mxu0 0
        %1119 = vmatpush1.bf16.msra.mxu0 0
        %1120 = vmatprep.subr.bf16.mxu0 0
        %1121 = vmatpush1.bf16.msra.mxu0 0
        %1122 = vmatprep.subr.bf16.mxu0 0
        %1123 = vmatpush1.bf16.msra.mxu0 %v1109
        %1124 = vmatprep.subr.bf16.mxu0 0
        %1125 = vmatpush1.bf16.msra.mxu0 %v1108
        %1126 = vmatprep.subr.bf16.mxu0 0
        %1127 = vmatpush1.bf16.msra.mxu0 %v1107
        %1128 = vmatprep.subr.bf16.mxu0 0
        %1129 = vmatpush1.bf16.msra.mxu0 %v1106
        %1130 = vmatprep.subr.bf16.mxu0 0
        %1131 = vmatpush2.bf16.msra.mxu0 0
        %1132 = vmatprep.subr.bf16.mxu0 0
        %1133 = vmatpush2.bf16.msra.mxu0 0
        %1134 = vmatprep.subr.bf16.mxu0 0
        %1135 = vmatpush2.bf16.msra.mxu0 0
        %1136 = vmatprep.subr.bf16.mxu0 0
        %1137 = vmatpush2.bf16.msra.mxu0 0
        %1138 = vmatprep.subr.bf16.mxu0 0
        %1139 = vmatpush2.bf16.msra.mxu0 0
        %1140 = vmatprep.subr.bf16.mxu0 0
        %1141 = vmatpush2.bf16.msra.mxu0 0
        %1142 = vmatprep.subr.bf16.mxu0 0
        %1143 = vmatpush2.bf16.msra.mxu0 0
        %1144 = vmatprep.subr.bf16.mxu0 0
        %1145 = vmatpush2.bf16.msra.mxu0 0
        %1146 = vmatprep.mubr.bf16.mxu0 0
        %1147 = vmatmul.mubr.bf16.gmra.mxu0 %v1040
        %v1148 = vpop.f32.mrf.mxu0
        %v1149 = vadd.f32 0.0, %v1148
        %v1150 = vpop.f32.mrf.mxu0
        %v1151 = vpop.f32.mrf.mxu0
        %v1152 = vpop.f32.mrf.mxu0
        %1153 = vdwg.mxu0
        %v1154 = vmax.f32 %v1077, %v1149
        %vm1155 = vcmask 253952
        %1156 = vst.msk [vmem:[%s270] sm:$0x1] %vm1155, %v1154
        %s1157 = sand.u32 %s181, 1
        %s1158 = scalar_lea.sflag [#allocation3], %s1157
        %s1159 = sand.u32 %s181, 1
        %s1160 = scalar_lea.vmem [#allocation2], %s1159
        // Predicated region
        $region49: #{image_model_forward.5} parent=47 // pred_check
          %p1161 = pneg %p191
        $region50: #{image_model_forward.5} parent=47 // pred_check_branch
          %1163 = sbr.rel (%p1161) target = $region52
        $region51: #{image_model_forward.5} parent=47 // pred_region
          %s1165 = ssub.s32 16, 16
          %1166 = vsyncadd %s1158, %s1165
          %s1167 = smul.addr %s21, 16
          %s1168 = scalar_lea.hbm %s7, %s1167
          %s1170 = sshll.u32 %s1160, 4
          %s1171 = int_to_ptr.vmem [resolvable:$true] %s1170
          %1173 = dma.vmem_to_hbm [thread:$0]  %s1171, 16, %s1168, %s1158
        $region52: #{image_model_forward.5} parent=47 // pred_fallthru
          _
      $region48: #{image_model_forward.5} parent=5 // pred_fallthru
        _
      %p1174 = scmp.le.s32.totalorder 2, %s16
      // Predicated region
      $region53: #{image_model_forward.5} parent=5 // pred_check
        %p1175 = pneg %p1174
      $region54: #{image_model_forward.5} parent=5 // pred_check_branch
        %1177 = sbr.rel (%p1175) target = $region56
      $region55: #{image_model_forward.5} parent=5 // pred_region
        %s1178 = ssub.s32 %s16, 2
        // Predicated region
        $region57: #{image_model_forward.5} parent=55 // pred_check
          %p1179 = pneg %p197
        $region58: #{image_model_forward.5} parent=55 // pred_check_branch
          %1181 = sbr.rel (%p1179) target = $region60
        $region59: #{image_model_forward.5} parent=55 // pred_region
          %s1182 = sand.u32 %s182, 1
          %s1183 = scalar_lea.sflag [#allocation3], %s1182
          %s1184 = sand.u32 %s182, 1
          %s1185 = scalar_lea.vmem [#allocation2], %s1184
          %1186 = dma.done %s1183, 16
        $region60: #{image_model_forward.5} parent=55 // pred_fallthru
          _
      $region56: #{image_model_forward.5} parent=5 // pred_fallthru
        _
    $region6: #{image_model_forward.5} parent=1 // loop_footer
      %s20 = sadd.s32 1, %s16
    $region7: #{image_model_forward.5} parent=1 // loop_footer_branch
      %15 = sbr.rel target = $region3
    $region8: #{image_model_forward.5} parent=1 // loop_exit
      _
    %1187 = vsyncpa [#allocation3], 1
    %s1188 = scalar_lea.sflag [#allocation3], 1
    %1189 = vsyncpa %s1188, 1

</llo_original>
